<compile_context>
chip_gen: v5e
topology: v5e:2x2
jax: 0.10.0
libtpu: 0.0.40
codegen_flags: <defaults>
</compile_context>

<pallas_src>
import functools
import math

import jax
import jax.numpy as jnp
from jax import lax
from jax.experimental import pallas as pl
from jax.experimental.pallas import tpu as pltpu


_INV_SQRT2 = 1.0 / math.sqrt(2.0)
# v5e perf lever: tanh-approx GELU runs on the otherwise-idle EUP instead of
# the VALU. Exact erf matches nn.GELU() (timm ViT default), so keep it default.
_APPROX_GELU = False


# ----------------------------- in-kernel helpers -----------------------------

def _gelu(y):
    if _APPROX_GELU:
        return jax.nn.gelu(y, approximate=True)
    return 0.5 * y * (1.0 + lax.erf(y * _INV_SQRT2))


def _ln(x, g, b, eps):
    # two-pass LayerNorm (avoids E[x^2]-E[x]^2 cancellation)
    mu = jnp.mean(x, axis=-1, keepdims=True)
    xc = x - mu
    var = jnp.mean(xc * xc, axis=-1, keepdims=True)
    return xc * lax.rsqrt(var + eps) * g + b


def _mm(a, w):
    # bf16 operands, f32 accumulation on the MXU (weights are stored bf16)
    return jnp.dot(a.astype(jnp.bfloat16), w, preferred_element_type=jnp.float32)


# ------------------------------ fused kernel ----------------------------------

def _encoder_kernel(patches_ref, patch_w_ref, patch_b_ref, cls_ref, pos_ref,
                    ln1_g_ref, ln1_b_ref, wqkv_ref, bqkv_ref, wp_ref, bp_ref,
                    ln2_g_ref, ln2_b_ref, fc1_w_ref, fc1_b_ref, fc2_w_ref,
                    fc2_b_ref, norm_g_ref, norm_b_ref, hw_ref, hb_ref, o_ref,
                    *, B, nP, heads, depth, eps):
    N = nP + 1
    D = patch_w_ref.shape[1]
    Dh = D // heads

    # --- patch embedding: patchified pixels (bf16) @ patch weights (bf16) ---
    pe = jnp.dot(patches_ref[...], patch_w_ref[...],
                 preferred_element_type=jnp.float32) + patch_b_ref[...]   # (B*nP, D)

    # --- prepend cls token, add positional embedding; flatten to (B*N, D) ---
    cls = cls_ref[...]                        # (1, D)
    pos = pos_ref[...]                        # (N, D)
    x = jnp.concatenate(
        [jnp.concatenate([cls, pe[b * nP:(b + 1) * nP]], axis=0) + pos
         for b in range(B)], axis=0)          # (B*N, D) f32

    # --- transformer blocks (weights stacked along a leading depth axis) ---
    for d in range(depth):
        # LN1 + fused lane-dense QKV projection (scale pre-folded into Q cols)
        h = _ln(x, ln1_g_ref[d], ln1_b_ref[d], eps)
        qkv = _mm(h, wqkv_ref[d]) + bqkv_ref[d]                   # (B*N, 3D) f32
        q = qkv[:, :D].astype(jnp.bfloat16)
        k = qkv[:, D:2 * D].astype(jnp.bfloat16)
        v = qkv[:, 2 * D:].astype(jnp.bfloat16)

        # per-(batch, head) softmax attention on (N, Dh) tiles
        att_rows = []
        for b in range(B):
            qb = q[b * N:(b + 1) * N]
            kb = k[b * N:(b + 1) * N]
            vb = v[b * N:(b + 1) * N]
            head_outs = []
            for hh in range(heads):
                sl = slice(hh * Dh, (hh + 1) * Dh)
                s = lax.dot_general(qb[:, sl], kb[:, sl],
                                    (((1,), (1,)), ((), ())),
                                    preferred_element_type=jnp.float32)   # (N, N)
                m = jnp.max(s, axis=-1, keepdims=True)
                p = jnp.exp(s - m)
                p = p * pl.reciprocal(jnp.sum(p, axis=-1, keepdims=True),
                                      approx=True)
                head_outs.append(
                    jnp.dot(p.astype(jnp.bfloat16), vb[:, sl],
                            preferred_element_type=jnp.float32))          # (N, Dh)
            att_rows.append(jnp.concatenate(head_outs, axis=-1))          # (N, D)
        att = jnp.concatenate(att_rows, axis=0)                           # (B*N, D)

        # ONE fused output projection + residual
        x = x + _mm(att, wp_ref[d]) + bp_ref[d]

        # LN2 + MLP (fc1 -> GELU -> fc2) + residual
        h2 = _ln(x, ln2_g_ref[d], ln2_b_ref[d], eps)
        f = _gelu(_mm(h2, fc1_w_ref[d]) + fc1_b_ref[d])
        x = x + _mm(f, fc2_w_ref[d]) + fc2_b_ref[d]

    # --- final LN on the cls rows + composed head@embed linear ---
    cls_rows = jnp.concatenate([x[b * N:b * N + 1] for b in range(B)], axis=0)
    hc = _ln(cls_rows, norm_g_ref[...], norm_b_ref[...], eps)
    o_ref[...] = (_mm(hc, hw_ref[...]) + hb_ref[...]).astype(o_ref.dtype)


# ------------------------------ forward wrapper --------------------------------

def encoder_forward(kp, images, cfg):
    B, C, H, W = images.shape
    P = cfg["patch"]
    D = cfg["dim"]
    nH, nW = H // P, W // P
    nP = nH * nW
    N = nP + 1
    depth = cfg["depth"]
    hidden = D * cfg["mlp_ratio"]
    E = cfg["embed_size"]

    # Conv2d(k=s=P) patch embed == patchify + matmul; patchify is pure layout.
    patches = images.reshape(B, C, nH, P, nW, P)
    patches = patches.transpose(0, 2, 4, 1, 3, 5).reshape(B * nP, C * P * P)
    patches = patches.astype(jnp.bfloat16)   # halve activation DMA bytes

    def full(shape):
        if len(shape) == 2:
            return pl.BlockSpec(shape, lambda i: (0, 0))
        return pl.BlockSpec(shape, lambda i: (0, 0, 0))

    kernel = functools.partial(
        _encoder_kernel, B=B, nP=nP, heads=cfg["heads"], depth=depth, eps=1e-6)

    return pl.pallas_call(
        kernel,
        grid=(1,),
        out_shape=jax.ShapeDtypeStruct((B, E), jnp.float32),
        in_specs=[
            full((B * nP, C * P * P)),       # patches (bf16)
            full((C * P * P, D)),            # patch_w (bf16)
            full((1, D)),                    # patch_b
            full((1, D)),                    # cls token
            full((N, D)),                    # pos embed
            full((depth, 1, D)),             # ln1 gamma
            full((depth, 1, D)),             # ln1 beta
            full((depth, D, 3 * D)),         # wqkv (bf16, scale folded into Q)
            full((depth, 1, 3 * D)),         # bqkv
            full((depth, D, D)),             # proj w (bf16)
            full((depth, 1, D)),             # proj b
            full((depth, 1, D)),             # ln2 gamma
            full((depth, 1, D)),             # ln2 beta
            full((depth, D, hidden)),        # fc1 w (bf16)
            full((depth, 1, hidden)),        # fc1 b
            full((depth, hidden, D)),        # fc2 w (bf16)
            full((depth, 1, D)),             # fc2 b
            full((1, D)),                    # final norm gamma
            full((1, D)),                    # final norm beta
            full((D, E)),                    # composed head@embed w (bf16)
            full((1, E)),                    # composed head@embed b
        ],
        out_specs=full((B, E)),
        # TODO(synk): at real DeiT-B scale, budget VMEM explicitly here
        # (vmem_limit_bytes, single-buffered weight slabs, MLP tiling) so the
        # fused-block design survives v7x's 64 MiB VMEM.
        compiler_params=pltpu.CompilerParams(
            dimension_semantics=("arbitrary",)),
    )(patches, kp["patch_w"], kp["patch_b"], kp["cls_token"], kp["pos_embed"],
      kp["ln1_g"], kp["ln1_b"], kp["wqkv"], kp["bqkv"], kp["wp"], kp["bp"],
      kp["ln2_g"], kp["ln2_b"], kp["fc1_w"], kp["fc1_b"], kp["fc2_w"],
      kp["fc2_b"], kp["norm_g"], kp["norm_b"],
      kp["head_embed_w"], kp["head_embed_b"])


# ---------------------------- params & prep ------------------------------------

def init_params(key, cfg):
    """PyTorch-like parameter layout (random stand-in for pretrained DeiT)."""
    D = cfg["dim"]
    P = cfg["patch"]
    C = cfg["in_chans"]
    hidden = D * cfg["mlp_ratio"]
    nP = (cfg["img"] // P) ** 2
    depth = cfg["depth"]

    keys = jax.random.split(key, 8 + depth)

    def w(k, shape, std=0.02):
        return jax.random.normal(k, shape, jnp.float32) * std

    params = {
        "patch_w": w(keys[0], (C * P * P, D)),
        "patch_b": jnp.zeros((D,), jnp.float32),
        "cls_token": w(keys[1], (1, 1, D)),
        "pos_embed": w(keys[2], (1, nP + 1, D)),
        "norm_g": jnp.ones((D,), jnp.float32),
        "norm_b": jnp.zeros((D,), jnp.float32),
        "head_w": w(keys[3], (D, cfg["num_classes"])),
        "head_b": jnp.zeros((cfg["num_classes"],), jnp.float32),
        "embed_w": w(keys[4], (cfg["num_classes"], cfg["embed_size"])),
        "embed_b": jnp.zeros((cfg["embed_size"],), jnp.float32),
        "blocks": [],
    }
    for i in range(depth):
        bk = jax.random.split(keys[8 + i], 4)
        params["blocks"].append({
            "ln1_g": jnp.ones((D,), jnp.float32),
            "ln1_b": jnp.zeros((D,), jnp.float32),
            "qkv_w": w(bk[0], (D, 3 * D)),
            "qkv_b": jnp.zeros((3 * D,), jnp.float32),
            "proj_w": w(bk[1], (D, D)),
            "proj_b": jnp.zeros((D,), jnp.float32),
            "ln2_g": jnp.ones((D,), jnp.float32),
            "ln2_b": jnp.zeros((D,), jnp.float32),
            "fc1_w": w(bk[2], (D, hidden)),
            "fc1_b": jnp.zeros((hidden,), jnp.float32),
            "fc2_w": w(bk[3], (hidden, D)),
            "fc2_b": jnp.zeros((D,), jnp.float32),
        })
    return params


def prepare_kernel_params(params, cfg):
    """One-time conversion to kernel-friendly layouts:
       lane-dense 2-D weight slabs stacked over depth, folded softmax scale,
       composed head@embed, bf16 weights / f32 biases & LN params."""
    D = cfg["dim"]
    heads = cfg["heads"]
    Dh = D // heads
    hidden = D * cfg["mlp_ratio"]
    scale = Dh ** -0.5
    bf = lambda a: a.astype(jnp.bfloat16)

    # NOTE: real DeiT weights are stored (3D, D); if loaded later they must be
    # transposed and the Q/K/V column layout preserved (correctness concern).
    def fold_scale_w(wqkv):
        return jnp.concatenate([wqkv[:, :D] * scale, wqkv[:, D:]], axis=1)

    def fold_scale_b(bqkv):
        return jnp.concatenate([bqkv[:D] * scale, bqkv[D:]])

    def stack(fn, cast=None):
        arr = jnp.stack([fn(blk) for blk in params["blocks"]], axis=0)
        return cast(arr) if cast is not None else arr

    return {
        "patch_w": bf(params["patch_w"]),
        "patch_b": params["patch_b"].reshape(1, D),
        "cls_token": params["cls_token"].reshape(1, D),
        "pos_embed": params["pos_embed"].reshape(-1, D),
        "norm_g": params["norm_g"].reshape(1, D),
        "norm_b": params["norm_b"].reshape(1, D),
        # compose the narrow head output away: one (D, embed) matmul
        "head_embed_w": bf(params["head_w"] @ params["embed_w"]),
        "head_embed_b": (params["head_b"] @ params["embed_w"]
                         + params["embed_b"]).reshape(1, -1),
        "ln1_g": stack(lambda b: b["ln1_g"].reshape(1, D)),
        "ln1_b": stack(lambda b: b["ln1_b"].reshape(1, D)),
        "wqkv": stack(lambda b: fold_scale_w(b["qkv_w"]), bf),
        "bqkv": stack(lambda b: fold_scale_b(b["qkv_b"]).reshape(1, 3 * D)),
        "wp": stack(lambda b: b["proj_w"], bf),
        "bp": stack(lambda b: b["proj_b"].reshape(1, D)),
        "ln2_g": stack(lambda b: b["ln2_g"].reshape(1, D)),
        "ln2_b": stack(lambda b: b["ln2_b"].reshape(1, D)),
        "fc1_w": stack(lambda b: b["fc1_w"], bf),
        "fc1_b": stack(lambda b: b["fc1_b"].reshape(1, hidden)),
        "fc2_w": stack(lambda b: b["fc2_w"], bf),
        "fc2_b": stack(lambda b: b["fc2_b"].reshape(1, D)),
    }


# --------------------------------- main -----------------------------------------

if __name__ == "__main__":
    cfg = dict(
        img=32, patch=16, in_chans=3,
        dim=64, depth=2, heads=4, mlp_ratio=4,
        num_classes=16,   # stand-in for DeiT's 1000-way head
        embed_size=32,
    )
    key = jax.random.PRNGKey(0)
    pkey, xkey = jax.random.split(key)
    params = init_params(pkey, cfg)
    kparams = prepare_kernel_params(params, cfg)
    images = jax.random.normal(
        xkey, (2, cfg["in_chans"], cfg["img"], cfg["img"]), jnp.float32)

    fwd = jax.jit(functools.partial(encoder_forward, cfg=cfg))
    feats = fwd(kparams, images)
    feats = jax.block_until_ready(feats)
    assert feats.shape == (2, cfg["embed_size"])
    assert bool(jnp.all(jnp.isfinite(feats)))
    print("KERNEL_OK")
</pallas_src>

<mosaic_0001>
module attributes {stable_mosaic.version = 11 : i64} {
  func.func @_encoder_kernel(%arg0: i32, %arg1: memref<8x768xbf16, #tpu.memory_space<vmem>>, %arg2: memref<768x64xbf16, #tpu.memory_space<vmem>>, %arg3: memref<1x64xf32, #tpu.memory_space<vmem>>, %arg4: memref<1x64xf32, #tpu.memory_space<vmem>>, %arg5: memref<5x64xf32, #tpu.memory_space<vmem>>, %arg6: memref<2x1x64xf32, #tpu.memory_space<vmem>>, %arg7: memref<2x1x64xf32, #tpu.memory_space<vmem>>, %arg8: memref<2x64x192xbf16, #tpu.memory_space<vmem>>, %arg9: memref<2x1x192xf32, #tpu.memory_space<vmem>>, %arg10: memref<2x64x64xbf16, #tpu.memory_space<vmem>>, %arg11: memref<2x1x64xf32, #tpu.memory_space<vmem>>, %arg12: memref<2x1x64xf32, #tpu.memory_space<vmem>>, %arg13: memref<2x1x64xf32, #tpu.memory_space<vmem>>, %arg14: memref<2x64x256xbf16, #tpu.memory_space<vmem>>, %arg15: memref<2x1x256xf32, #tpu.memory_space<vmem>>, %arg16: memref<2x256x64xbf16, #tpu.memory_space<vmem>>, %arg17: memref<2x1x64xf32, #tpu.memory_space<vmem>>, %arg18: memref<1x64xf32, #tpu.memory_space<vmem>>, %arg19: memref<1x64xf32, #tpu.memory_space<vmem>>, %arg20: memref<64x32xbf16, #tpu.memory_space<vmem>>, %arg21: memref<1x32xf32, #tpu.memory_space<vmem>>, %arg22: memref<2x32xf32, #tpu.memory_space<vmem>>) attributes {dimension_semantics = [#tpu.dimension_semantics<arbitrary>], iteration_bounds = array<i64: 1>, scalar_prefetch = 0 : i64, scratch_operands = 0 : i64, tpu.core_type = #tpu.core_type<tc>, window_params = [{pipeline_mode = #tpu.pipeline_mode<synchronous>, transform_indices = @transform_0, window_bounds = array<i64: 8, 768>}, {pipeline_mode = #tpu.pipeline_mode<synchronous>, transform_indices = @transform_1, window_bounds = array<i64: 768, 64>}, {pipeline_mode = #tpu.pipeline_mode<synchronous>, transform_indices = @transform_2, window_bounds = array<i64: 1, 64>}, {pipeline_mode = #tpu.pipeline_mode<synchronous>, transform_indices = @transform_3, window_bounds = array<i64: 1, 64>}, {pipeline_mode = #tpu.pipeline_mode<synchronous>, transform_indices = @transform_4, window_bounds = array<i64: 5, 64>}, {pipeline_mode = #tpu.pipeline_mode<synchronous>, transform_indices = @transform_5, window_bounds = array<i64: 2, 1, 64>}, {pipeline_mode = #tpu.pipeline_mode<synchronous>, transform_indices = @transform_6, window_bounds = array<i64: 2, 1, 64>}, {pipeline_mode = #tpu.pipeline_mode<synchronous>, transform_indices = @transform_7, window_bounds = array<i64: 2, 64, 192>}, {pipeline_mode = #tpu.pipeline_mode<synchronous>, transform_indices = @transform_8, window_bounds = array<i64: 2, 1, 192>}, {pipeline_mode = #tpu.pipeline_mode<synchronous>, transform_indices = @transform_9, window_bounds = array<i64: 2, 64, 64>}, {pipeline_mode = #tpu.pipeline_mode<synchronous>, transform_indices = @transform_10, window_bounds = array<i64: 2, 1, 64>}, {pipeline_mode = #tpu.pipeline_mode<synchronous>, transform_indices = @transform_11, window_bounds = array<i64: 2, 1, 64>}, {pipeline_mode = #tpu.pipeline_mode<synchronous>, transform_indices = @transform_12, window_bounds = array<i64: 2, 1, 64>}, {pipeline_mode = #tpu.pipeline_mode<synchronous>, transform_indices = @transform_13, window_bounds = array<i64: 2, 64, 256>}, {pipeline_mode = #tpu.pipeline_mode<synchronous>, transform_indices = @transform_14, window_bounds = array<i64: 2, 1, 256>}, {pipeline_mode = #tpu.pipeline_mode<synchronous>, transform_indices = @transform_15, window_bounds = array<i64: 2, 256, 64>}, {pipeline_mode = #tpu.pipeline_mode<synchronous>, transform_indices = @transform_16, window_bounds = array<i64: 2, 1, 64>}, {pipeline_mode = #tpu.pipeline_mode<synchronous>, transform_indices = @transform_17, window_bounds = array<i64: 1, 64>}, {pipeline_mode = #tpu.pipeline_mode<synchronous>, transform_indices = @transform_18, window_bounds = array<i64: 1, 64>}, {pipeline_mode = #tpu.pipeline_mode<synchronous>, transform_indices = @transform_19, window_bounds = array<i64: 64, 32>}, {pipeline_mode = #tpu.pipeline_mode<synchronous>, transform_indices = @transform_20, window_bounds = array<i64: 1, 32>}, {pipeline_mode = #tpu.pipeline_mode<synchronous>, transform_indices = @transform_21, window_bounds = array<i64: 2, 32>}]} {
    %c0 = arith.constant 0 : index
    %c0_0 = arith.constant 0 : index
    %0 = vector.load %arg1[%c0, %c0_0] : memref<8x768xbf16, #tpu.memory_space<vmem>>, vector<8x768xbf16>
    %c0_1 = arith.constant 0 : index
    %c0_2 = arith.constant 0 : index
    %1 = vector.load %arg2[%c0_1, %c0_2] : memref<768x64xbf16, #tpu.memory_space<vmem>>, vector<768x64xbf16>
    %cst = arith.constant dense<0.000000e+00> : vector<8x64xf32>
    %2 = tpu.matmul %0, %1, %cst {dimension_numbers = #tpu.dot_dimension_numbers<[1], [0], [0], [1], [0, 0, 1, 1], [], []>} : vector<8x768xbf16>, vector<768x64xbf16>, vector<8x64xf32> -> vector<8x64xf32>
    %c0_3 = arith.constant 0 : index
    %c0_4 = arith.constant 0 : index
    %3 = vector.load %arg3[%c0_3, %c0_4] : memref<1x64xf32, #tpu.memory_space<vmem>>, vector<1x64xf32>
    %4 = vector.broadcast %3 : vector<1x64xf32> to vector<8x64xf32>
    %5 = arith.addf %2, %4 : vector<8x64xf32>
    %c0_5 = arith.constant 0 : index
    %c0_6 = arith.constant 0 : index
    %6 = vector.load %arg4[%c0_5, %c0_6] : memref<1x64xf32, #tpu.memory_space<vmem>>, vector<1x64xf32>
    %c0_7 = arith.constant 0 : index
    %c0_8 = arith.constant 0 : index
    %7 = vector.load %arg5[%c0_7, %c0_8] : memref<5x64xf32, #tpu.memory_space<vmem>>, vector<5x64xf32>
    %8 = vector.extract_strided_slice %5 {offsets = [0, 0], sizes = [4, 64], strides = [1, 1]} : vector<8x64xf32> to vector<4x64xf32>
    %9 = tpu.concatenate %6, %8 in 0 : vector<1x64xf32>, vector<4x64xf32> -> vector<5x64xf32>
    %10 = arith.addf %9, %7 : vector<5x64xf32>
    %11 = vector.extract_strided_slice %5 {offsets = [4, 0], sizes = [4, 64], strides = [1, 1]} : vector<8x64xf32> to vector<4x64xf32>
    %12 = tpu.concatenate %6, %11 in 0 : vector<1x64xf32>, vector<4x64xf32> -> vector<5x64xf32>
    %13 = arith.addf %12, %7 : vector<5x64xf32>
    %14 = tpu.concatenate %10, %13 in 0 : vector<5x64xf32>, vector<5x64xf32> -> vector<10x64xf32>
    %c0_9 = arith.constant 0 : index
    %c0_10 = arith.constant 0 : index
    %c0_11 = arith.constant 0 : index
    %15 = vector.load %arg6[%c0_9, %c0_10, %c0_11] : memref<2x1x64xf32, #tpu.memory_space<vmem>>, vector<1x1x64xf32>
    %16 = vector.shape_cast %15 : vector<1x1x64xf32> to vector<1x64xf32>
    %c0_12 = arith.constant 0 : index
    %c0_13 = arith.constant 0 : index
    %c0_14 = arith.constant 0 : index
    %17 = vector.load %arg7[%c0_12, %c0_13, %c0_14] : memref<2x1x64xf32, #tpu.memory_space<vmem>>, vector<1x1x64xf32>
    %18 = vector.shape_cast %17 : vector<1x1x64xf32> to vector<1x64xf32>
    %cst_15 = arith.constant dense<0.000000e+00> : vector<10xf32>
    %19 = vector.multi_reduction <add>, %14, %cst_15 [1] : vector<10x64xf32> to vector<10xf32>
    %20 = vector.shape_cast %19 : vector<10xf32> to vector<10x1xf32>
    %cst_16 = arith.constant 6.400000e+01 : f32
    %21 = vector.broadcast %cst_16 : f32 to vector<10x1xf32>
    %22 = arith.divf %20, %21 : vector<10x1xf32>
    %23 = vector.broadcast %22 : vector<10x1xf32> to vector<10x64xf32>
    %24 = arith.subf %14, %23 : vector<10x64xf32>
    %25 = arith.mulf %24, %24 : vector<10x64xf32>
    %cst_17 = arith.constant dense<0.000000e+00> : vector<10xf32>
    %26 = vector.multi_reduction <add>, %25, %cst_17 [1] : vector<10x64xf32> to vector<10xf32>
    %27 = vector.shape_cast %26 : vector<10xf32> to vector<10x1xf32>
    %cst_18 = arith.constant 6.400000e+01 : f32
    %28 = vector.broadcast %cst_18 : f32 to vector<10x1xf32>
    %29 = arith.divf %27, %28 : vector<10x1xf32>
    %cst_19 = arith.constant 9.99999997E-7 : f32
    %30 = vector.broadcast %cst_19 : f32 to vector<10x1xf32>
    %31 = arith.addf %29, %30 : vector<10x1xf32>
    %32 = math.rsqrt %31 : vector<10x1xf32>
    %33 = vector.broadcast %32 : vector<10x1xf32> to vector<10x64xf32>
    %34 = arith.mulf %24, %33 : vector<10x64xf32>
    %35 = vector.broadcast %16 : vector<1x64xf32> to vector<10x64xf32>
    %36 = arith.mulf %34, %35 : vector<10x64xf32>
    %37 = vector.broadcast %18 : vector<1x64xf32> to vector<10x64xf32>
    %38 = arith.addf %36, %37 : vector<10x64xf32>
    %c0_20 = arith.constant 0 : index
    %c0_21 = arith.constant 0 : index
    %c0_22 = arith.constant 0 : index
    %39 = vector.load %arg8[%c0_20, %c0_21, %c0_22] : memref<2x64x192xbf16, #tpu.memory_space<vmem>>, vector<1x64x192xbf16>
    %40 = vector.shape_cast %39 : vector<1x64x192xbf16> to vector<64x192xbf16>
    %41 = arith.truncf %38 : vector<10x64xf32> to vector<10x64xbf16>
    %cst_23 = arith.constant dense<0.000000e+00> : vector<10x192xf32>
    %42 = tpu.matmul %41, %40, %cst_23 {dimension_numbers = #tpu.dot_dimension_numbers<[1], [0], [0], [1], [0, 0, 1, 1], [], []>} : vector<10x64xbf16>, vector<64x192xbf16>, vector<10x192xf32> -> vector<10x192xf32>
    %c0_24 = arith.constant 0 : index
    %c0_25 = arith.constant 0 : index
    %c0_26 = arith.constant 0 : index
    %43 = vector.load %arg9[%c0_24, %c0_25, %c0_26] : memref<2x1x192xf32, #tpu.memory_space<vmem>>, vector<1x1x192xf32>
    %44 = vector.shape_cast %43 : vector<1x1x192xf32> to vector<1x192xf32>
    %45 = vector.broadcast %44 : vector<1x192xf32> to vector<10x192xf32>
    %46 = arith.addf %42, %45 : vector<10x192xf32>
    %47 = vector.extract_strided_slice %46 {offsets = [0, 0], sizes = [10, 64], strides = [1, 1]} : vector<10x192xf32> to vector<10x64xf32>
    %48 = arith.truncf %47 : vector<10x64xf32> to vector<10x64xbf16>
    %49 = vector.extract_strided_slice %46 {offsets = [0, 64], sizes = [10, 64], strides = [1, 1]} : vector<10x192xf32> to vector<10x64xf32>
    %50 = arith.truncf %49 : vector<10x64xf32> to vector<10x64xbf16>
    %51 = vector.extract_strided_slice %46 {offsets = [0, 128], sizes = [10, 64], strides = [1, 1]} : vector<10x192xf32> to vector<10x64xf32>
    %52 = arith.truncf %51 : vector<10x64xf32> to vector<10x64xbf16>
    %53 = vector.extract_strided_slice %48 {offsets = [0, 0], sizes = [5, 64], strides = [1, 1]} : vector<10x64xbf16> to vector<5x64xbf16>
    %54 = vector.extract_strided_slice %50 {offsets = [0, 0], sizes = [5, 64], strides = [1, 1]} : vector<10x64xbf16> to vector<5x64xbf16>
    %55 = vector.extract_strided_slice %52 {offsets = [0, 0], sizes = [5, 64], strides = [1, 1]} : vector<10x64xbf16> to vector<5x64xbf16>
    %56 = vector.extract_strided_slice %53 {offsets = [0, 0], sizes = [5, 16], strides = [1, 1]} : vector<5x64xbf16> to vector<5x16xbf16>
    %57 = vector.extract_strided_slice %54 {offsets = [0, 0], sizes = [5, 16], strides = [1, 1]} : vector<5x64xbf16> to vector<5x16xbf16>
    %cst_27 = arith.constant dense<0.000000e+00> : vector<5x5xf32>
    %58 = tpu.matmul %56, %57, %cst_27 {dimension_numbers = #tpu.dot_dimension_numbers<[1], [1], [0], [0], [0, 0, 1, 0], [], []>} : vector<5x16xbf16>, vector<5x16xbf16>, vector<5x5xf32> -> vector<5x5xf32>
    %cst_28 = arith.constant dense<0xFF800000> : vector<5xf32>
    %59 = vector.multi_reduction <maximumf>, %58, %cst_28 [1] : vector<5x5xf32> to vector<5xf32>
    %60 = vector.shape_cast %59 : vector<5xf32> to vector<5x1xf32>
    %61 = vector.broadcast %60 : vector<5x1xf32> to vector<5x5xf32>
    %62 = arith.subf %58, %61 : vector<5x5xf32>
    %63 = math.exp %62 : vector<5x5xf32>
    %cst_29 = arith.constant dense<0.000000e+00> : vector<5xf32>
    %64 = vector.multi_reduction <add>, %63, %cst_29 [1] : vector<5x5xf32> to vector<5xf32>
    %65 = vector.shape_cast %64 : vector<5xf32> to vector<5x1xf32>
    %66 = tpu.reciprocal %65 {approx = true} : vector<5x1xf32> -> vector<5x1xf32>
    %67 = vector.broadcast %66 : vector<5x1xf32> to vector<5x5xf32>
    %68 = arith.mulf %63, %67 : vector<5x5xf32>
    %69 = arith.truncf %68 : vector<5x5xf32> to vector<5x5xbf16>
    %70 = vector.extract_strided_slice %55 {offsets = [0, 0], sizes = [5, 16], strides = [1, 1]} : vector<5x64xbf16> to vector<5x16xbf16>
    %cst_30 = arith.constant dense<0.000000e+00> : vector<5x16xf32>
    %71 = tpu.matmul %69, %70, %cst_30 {dimension_numbers = #tpu.dot_dimension_numbers<[1], [0], [0], [1], [0, 0, 1, 1], [], []>} : vector<5x5xbf16>, vector<5x16xbf16>, vector<5x16xf32> -> vector<5x16xf32>
    %72 = vector.extract_strided_slice %53 {offsets = [0, 16], sizes = [5, 16], strides = [1, 1]} : vector<5x64xbf16> to vector<5x16xbf16>
    %73 = vector.extract_strided_slice %54 {offsets = [0, 16], sizes = [5, 16], strides = [1, 1]} : vector<5x64xbf16> to vector<5x16xbf16>
    %cst_31 = arith.constant dense<0.000000e+00> : vector<5x5xf32>
    %74 = tpu.matmul %72, %73, %cst_31 {dimension_numbers = #tpu.dot_dimension_numbers<[1], [1], [0], [0], [0, 0, 1, 0], [], []>} : vector<5x16xbf16>, vector<5x16xbf16>, vector<5x5xf32> -> vector<5x5xf32>
    %cst_32 = arith.constant dense<0xFF800000> : vector<5xf32>
    %75 = vector.multi_reduction <maximumf>, %74, %cst_32 [1] : vector<5x5xf32> to vector<5xf32>
    %76 = vector.shape_cast %75 : vector<5xf32> to vector<5x1xf32>
    %77 = vector.broadcast %76 : vector<5x1xf32> to vector<5x5xf32>
    %78 = arith.subf %74, %77 : vector<5x5xf32>
    %79 = math.exp %78 : vector<5x5xf32>
    %cst_33 = arith.constant dense<0.000000e+00> : vector<5xf32>
    %80 = vector.multi_reduction <add>, %79, %cst_33 [1] : vector<5x5xf32> to vector<5xf32>
    %81 = vector.shape_cast %80 : vector<5xf32> to vector<5x1xf32>
    %82 = tpu.reciprocal %81 {approx = true} : vector<5x1xf32> -> vector<5x1xf32>
    %83 = vector.broadcast %82 : vector<5x1xf32> to vector<5x5xf32>
    %84 = arith.mulf %79, %83 : vector<5x5xf32>
    %85 = arith.truncf %84 : vector<5x5xf32> to vector<5x5xbf16>
    %86 = vector.extract_strided_slice %55 {offsets = [0, 16], sizes = [5, 16], strides = [1, 1]} : vector<5x64xbf16> to vector<5x16xbf16>
    %cst_34 = arith.constant dense<0.000000e+00> : vector<5x16xf32>
    %87 = tpu.matmul %85, %86, %cst_34 {dimension_numbers = #tpu.dot_dimension_numbers<[1], [0], [0], [1], [0, 0, 1, 1], [], []>} : vector<5x5xbf16>, vector<5x16xbf16>, vector<5x16xf32> -> vector<5x16xf32>
    %88 = vector.extract_strided_slice %53 {offsets = [0, 32], sizes = [5, 16], strides = [1, 1]} : vector<5x64xbf16> to vector<5x16xbf16>
    %89 = vector.extract_strided_slice %54 {offsets = [0, 32], sizes = [5, 16], strides = [1, 1]} : vector<5x64xbf16> to vector<5x16xbf16>
    %cst_35 = arith.constant dense<0.000000e+00> : vector<5x5xf32>
    %90 = tpu.matmul %88, %89, %cst_35 {dimension_numbers = #tpu.dot_dimension_numbers<[1], [1], [0], [0], [0, 0, 1, 0], [], []>} : vector<5x16xbf16>, vector<5x16xbf16>, vector<5x5xf32> -> vector<5x5xf32>
    %cst_36 = arith.constant dense<0xFF800000> : vector<5xf32>
    %91 = vector.multi_reduction <maximumf>, %90, %cst_36 [1] : vector<5x5xf32> to vector<5xf32>
    %92 = vector.shape_cast %91 : vector<5xf32> to vector<5x1xf32>
    %93 = vector.broadcast %92 : vector<5x1xf32> to vector<5x5xf32>
    %94 = arith.subf %90, %93 : vector<5x5xf32>
    %95 = math.exp %94 : vector<5x5xf32>
    %cst_37 = arith.constant dense<0.000000e+00> : vector<5xf32>
    %96 = vector.multi_reduction <add>, %95, %cst_37 [1] : vector<5x5xf32> to vector<5xf32>
    %97 = vector.shape_cast %96 : vector<5xf32> to vector<5x1xf32>
    %98 = tpu.reciprocal %97 {approx = true} : vector<5x1xf32> -> vector<5x1xf32>
    %99 = vector.broadcast %98 : vector<5x1xf32> to vector<5x5xf32>
    %100 = arith.mulf %95, %99 : vector<5x5xf32>
    %101 = arith.truncf %100 : vector<5x5xf32> to vector<5x5xbf16>
    %102 = vector.extract_strided_slice %55 {offsets = [0, 32], sizes = [5, 16], strides = [1, 1]} : vector<5x64xbf16> to vector<5x16xbf16>
    %cst_38 = arith.constant dense<0.000000e+00> : vector<5x16xf32>
    %103 = tpu.matmul %101, %102, %cst_38 {dimension_numbers = #tpu.dot_dimension_numbers<[1], [0], [0], [1], [0, 0, 1, 1], [], []>} : vector<5x5xbf16>, vector<5x16xbf16>, vector<5x16xf32> -> vector<5x16xf32>
    %104 = vector.extract_strided_slice %53 {offsets = [0, 48], sizes = [5, 16], strides = [1, 1]} : vector<5x64xbf16> to vector<5x16xbf16>
    %105 = vector.extract_strided_slice %54 {offsets = [0, 48], sizes = [5, 16], strides = [1, 1]} : vector<5x64xbf16> to vector<5x16xbf16>
    %cst_39 = arith.constant dense<0.000000e+00> : vector<5x5xf32>
    %106 = tpu.matmul %104, %105, %cst_39 {dimension_numbers = #tpu.dot_dimension_numbers<[1], [1], [0], [0], [0, 0, 1, 0], [], []>} : vector<5x16xbf16>, vector<5x16xbf16>, vector<5x5xf32> -> vector<5x5xf32>
    %cst_40 = arith.constant dense<0xFF800000> : vector<5xf32>
    %107 = vector.multi_reduction <maximumf>, %106, %cst_40 [1] : vector<5x5xf32> to vector<5xf32>
    %108 = vector.shape_cast %107 : vector<5xf32> to vector<5x1xf32>
    %109 = vector.broadcast %108 : vector<5x1xf32> to vector<5x5xf32>
    %110 = arith.subf %106, %109 : vector<5x5xf32>
    %111 = math.exp %110 : vector<5x5xf32>
    %cst_41 = arith.constant dense<0.000000e+00> : vector<5xf32>
    %112 = vector.multi_reduction <add>, %111, %cst_41 [1] : vector<5x5xf32> to vector<5xf32>
    %113 = vector.shape_cast %112 : vector<5xf32> to vector<5x1xf32>
    %114 = tpu.reciprocal %113 {approx = true} : vector<5x1xf32> -> vector<5x1xf32>
    %115 = vector.broadcast %114 : vector<5x1xf32> to vector<5x5xf32>
    %116 = arith.mulf %111, %115 : vector<5x5xf32>
    %117 = arith.truncf %116 : vector<5x5xf32> to vector<5x5xbf16>
    %118 = vector.extract_strided_slice %55 {offsets = [0, 48], sizes = [5, 16], strides = [1, 1]} : vector<5x64xbf16> to vector<5x16xbf16>
    %cst_42 = arith.constant dense<0.000000e+00> : vector<5x16xf32>
    %119 = tpu.matmul %117, %118, %cst_42 {dimension_numbers = #tpu.dot_dimension_numbers<[1], [0], [0], [1], [0, 0, 1, 1], [], []>} : vector<5x5xbf16>, vector<5x16xbf16>, vector<5x16xf32> -> vector<5x16xf32>
    %120 = tpu.concatenate %71, %87, %103, %119 in 1 : vector<5x16xf32>, vector<5x16xf32>, vector<5x16xf32>, vector<5x16xf32> -> vector<5x64xf32>
    %121 = vector.extract_strided_slice %48 {offsets = [5, 0], sizes = [5, 64], strides = [1, 1]} : vector<10x64xbf16> to vector<5x64xbf16>
    %122 = vector.extract_strided_slice %50 {offsets = [5, 0], sizes = [5, 64], strides = [1, 1]} : vector<10x64xbf16> to vector<5x64xbf16>
    %123 = vector.extract_strided_slice %52 {offsets = [5, 0], sizes = [5, 64], strides = [1, 1]} : vector<10x64xbf16> to vector<5x64xbf16>
    %124 = vector.extract_strided_slice %121 {offsets = [0, 0], sizes = [5, 16], strides = [1, 1]} : vector<5x64xbf16> to vector<5x16xbf16>
    %125 = vector.extract_strided_slice %122 {offsets = [0, 0], sizes = [5, 16], strides = [1, 1]} : vector<5x64xbf16> to vector<5x16xbf16>
    %cst_43 = arith.constant dense<0.000000e+00> : vector<5x5xf32>
    %126 = tpu.matmul %124, %125, %cst_43 {dimension_numbers = #tpu.dot_dimension_numbers<[1], [1], [0], [0], [0, 0, 1, 0], [], []>} : vector<5x16xbf16>, vector<5x16xbf16>, vector<5x5xf32> -> vector<5x5xf32>
    %cst_44 = arith.constant dense<0xFF800000> : vector<5xf32>
    %127 = vector.multi_reduction <maximumf>, %126, %cst_44 [1] : vector<5x5xf32> to vector<5xf32>
    %128 = vector.shape_cast %127 : vector<5xf32> to vector<5x1xf32>
    %129 = vector.broadcast %128 : vector<5x1xf32> to vector<5x5xf32>
    %130 = arith.subf %126, %129 : vector<5x5xf32>
    %131 = math.exp %130 : vector<5x5xf32>
    %cst_45 = arith.constant dense<0.000000e+00> : vector<5xf32>
    %132 = vector.multi_reduction <add>, %131, %cst_45 [1] : vector<5x5xf32> to vector<5xf32>
    %133 = vector.shape_cast %132 : vector<5xf32> to vector<5x1xf32>
    %134 = tpu.reciprocal %133 {approx = true} : vector<5x1xf32> -> vector<5x1xf32>
    %135 = vector.broadcast %134 : vector<5x1xf32> to vector<5x5xf32>
    %136 = arith.mulf %131, %135 : vector<5x5xf32>
    %137 = arith.truncf %136 : vector<5x5xf32> to vector<5x5xbf16>
    %138 = vector.extract_strided_slice %123 {offsets = [0, 0], sizes = [5, 16], strides = [1, 1]} : vector<5x64xbf16> to vector<5x16xbf16>
    %cst_46 = arith.constant dense<0.000000e+00> : vector<5x16xf32>
    %139 = tpu.matmul %137, %138, %cst_46 {dimension_numbers = #tpu.dot_dimension_numbers<[1], [0], [0], [1], [0, 0, 1, 1], [], []>} : vector<5x5xbf16>, vector<5x16xbf16>, vector<5x16xf32> -> vector<5x16xf32>
    %140 = vector.extract_strided_slice %121 {offsets = [0, 16], sizes = [5, 16], strides = [1, 1]} : vector<5x64xbf16> to vector<5x16xbf16>
    %141 = vector.extract_strided_slice %122 {offsets = [0, 16], sizes = [5, 16], strides = [1, 1]} : vector<5x64xbf16> to vector<5x16xbf16>
    %cst_47 = arith.constant dense<0.000000e+00> : vector<5x5xf32>
    %142 = tpu.matmul %140, %141, %cst_47 {dimension_numbers = #tpu.dot_dimension_numbers<[1], [1], [0], [0], [0, 0, 1, 0], [], []>} : vector<5x16xbf16>, vector<5x16xbf16>, vector<5x5xf32> -> vector<5x5xf32>
    %cst_48 = arith.constant dense<0xFF800000> : vector<5xf32>
    %143 = vector.multi_reduction <maximumf>, %142, %cst_48 [1] : vector<5x5xf32> to vector<5xf32>
    %144 = vector.shape_cast %143 : vector<5xf32> to vector<5x1xf32>
    %145 = vector.broadcast %144 : vector<5x1xf32> to vector<5x5xf32>
    %146 = arith.subf %142, %145 : vector<5x5xf32>
    %147 = math.exp %146 : vector<5x5xf32>
    %cst_49 = arith.constant dense<0.000000e+00> : vector<5xf32>
    %148 = vector.multi_reduction <add>, %147, %cst_49 [1] : vector<5x5xf32> to vector<5xf32>
    %149 = vector.shape_cast %148 : vector<5xf32> to vector<5x1xf32>
    %150 = tpu.reciprocal %149 {approx = true} : vector<5x1xf32> -> vector<5x1xf32>
    %151 = vector.broadcast %150 : vector<5x1xf32> to vector<5x5xf32>
    %152 = arith.mulf %147, %151 : vector<5x5xf32>
    %153 = arith.truncf %152 : vector<5x5xf32> to vector<5x5xbf16>
    %154 = vector.extract_strided_slice %123 {offsets = [0, 16], sizes = [5, 16], strides = [1, 1]} : vector<5x64xbf16> to vector<5x16xbf16>
    %cst_50 = arith.constant dense<0.000000e+00> : vector<5x16xf32>
    %155 = tpu.matmul %153, %154, %cst_50 {dimension_numbers = #tpu.dot_dimension_numbers<[1], [0], [0], [1], [0, 0, 1, 1], [], []>} : vector<5x5xbf16>, vector<5x16xbf16>, vector<5x16xf32> -> vector<5x16xf32>
    %156 = vector.extract_strided_slice %121 {offsets = [0, 32], sizes = [5, 16], strides = [1, 1]} : vector<5x64xbf16> to vector<5x16xbf16>
    %157 = vector.extract_strided_slice %122 {offsets = [0, 32], sizes = [5, 16], strides = [1, 1]} : vector<5x64xbf16> to vector<5x16xbf16>
    %cst_51 = arith.constant dense<0.000000e+00> : vector<5x5xf32>
    %158 = tpu.matmul %156, %157, %cst_51 {dimension_numbers = #tpu.dot_dimension_numbers<[1], [1], [0], [0], [0, 0, 1, 0], [], []>} : vector<5x16xbf16>, vector<5x16xbf16>, vector<5x5xf32> -> vector<5x5xf32>
    %cst_52 = arith.constant dense<0xFF800000> : vector<5xf32>
    %159 = vector.multi_reduction <maximumf>, %158, %cst_52 [1] : vector<5x5xf32> to vector<5xf32>
    %160 = vector.shape_cast %159 : vector<5xf32> to vector<5x1xf32>
    %161 = vector.broadcast %160 : vector<5x1xf32> to vector<5x5xf32>
    %162 = arith.subf %158, %161 : vector<5x5xf32>
    %163 = math.exp %162 : vector<5x5xf32>
    %cst_53 = arith.constant dense<0.000000e+00> : vector<5xf32>
    %164 = vector.multi_reduction <add>, %163, %cst_53 [1] : vector<5x5xf32> to vector<5xf32>
    %165 = vector.shape_cast %164 : vector<5xf32> to vector<5x1xf32>
    %166 = tpu.reciprocal %165 {approx = true} : vector<5x1xf32> -> vector<5x1xf32>
    %167 = vector.broadcast %166 : vector<5x1xf32> to vector<5x5xf32>
    %168 = arith.mulf %163, %167 : vector<5x5xf32>
    %169 = arith.truncf %168 : vector<5x5xf32> to vector<5x5xbf16>
    %170 = vector.extract_strided_slice %123 {offsets = [0, 32], sizes = [5, 16], strides = [1, 1]} : vector<5x64xbf16> to vector<5x16xbf16>
    %cst_54 = arith.constant dense<0.000000e+00> : vector<5x16xf32>
    %171 = tpu.matmul %169, %170, %cst_54 {dimension_numbers = #tpu.dot_dimension_numbers<[1], [0], [0], [1], [0, 0, 1, 1], [], []>} : vector<5x5xbf16>, vector<5x16xbf16>, vector<5x16xf32> -> vector<5x16xf32>
    %172 = vector.extract_strided_slice %121 {offsets = [0, 48], sizes = [5, 16], strides = [1, 1]} : vector<5x64xbf16> to vector<5x16xbf16>
    %173 = vector.extract_strided_slice %122 {offsets = [0, 48], sizes = [5, 16], strides = [1, 1]} : vector<5x64xbf16> to vector<5x16xbf16>
    %cst_55 = arith.constant dense<0.000000e+00> : vector<5x5xf32>
    %174 = tpu.matmul %172, %173, %cst_55 {dimension_numbers = #tpu.dot_dimension_numbers<[1], [1], [0], [0], [0, 0, 1, 0], [], []>} : vector<5x16xbf16>, vector<5x16xbf16>, vector<5x5xf32> -> vector<5x5xf32>
    %cst_56 = arith.constant dense<0xFF800000> : vector<5xf32>
    %175 = vector.multi_reduction <maximumf>, %174, %cst_56 [1] : vector<5x5xf32> to vector<5xf32>
    %176 = vector.shape_cast %175 : vector<5xf32> to vector<5x1xf32>
    %177 = vector.broadcast %176 : vector<5x1xf32> to vector<5x5xf32>
    %178 = arith.subf %174, %177 : vector<5x5xf32>
    %179 = math.exp %178 : vector<5x5xf32>
    %cst_57 = arith.constant dense<0.000000e+00> : vector<5xf32>
    %180 = vector.multi_reduction <add>, %179, %cst_57 [1] : vector<5x5xf32> to vector<5xf32>
    %181 = vector.shape_cast %180 : vector<5xf32> to vector<5x1xf32>
    %182 = tpu.reciprocal %181 {approx = true} : vector<5x1xf32> -> vector<5x1xf32>
    %183 = vector.broadcast %182 : vector<5x1xf32> to vector<5x5xf32>
    %184 = arith.mulf %179, %183 : vector<5x5xf32>
    %185 = arith.truncf %184 : vector<5x5xf32> to vector<5x5xbf16>
    %186 = vector.extract_strided_slice %123 {offsets = [0, 48], sizes = [5, 16], strides = [1, 1]} : vector<5x64xbf16> to vector<5x16xbf16>
    %cst_58 = arith.constant dense<0.000000e+00> : vector<5x16xf32>
    %187 = tpu.matmul %185, %186, %cst_58 {dimension_numbers = #tpu.dot_dimension_numbers<[1], [0], [0], [1], [0, 0, 1, 1], [], []>} : vector<5x5xbf16>, vector<5x16xbf16>, vector<5x16xf32> -> vector<5x16xf32>
    %188 = tpu.concatenate %139, %155, %171, %187 in 1 : vector<5x16xf32>, vector<5x16xf32>, vector<5x16xf32>, vector<5x16xf32> -> vector<5x64xf32>
    %189 = tpu.concatenate %120, %188 in 0 : vector<5x64xf32>, vector<5x64xf32> -> vector<10x64xf32>
    %c0_59 = arith.constant 0 : index
    %c0_60 = arith.constant 0 : index
    %c0_61 = arith.constant 0 : index
    %190 = vector.load %arg10[%c0_59, %c0_60, %c0_61] : memref<2x64x64xbf16, #tpu.memory_space<vmem>>, vector<1x64x64xbf16>
    %191 = vector.shape_cast %190 : vector<1x64x64xbf16> to vector<64x64xbf16>
    %192 = arith.truncf %189 : vector<10x64xf32> to vector<10x64xbf16>
    %cst_62 = arith.constant dense<0.000000e+00> : vector<10x64xf32>
    %193 = tpu.matmul %192, %191, %cst_62 {dimension_numbers = #tpu.dot_dimension_numbers<[1], [0], [0], [1], [0, 0, 1, 1], [], []>} : vector<10x64xbf16>, vector<64x64xbf16>, vector<10x64xf32> -> vector<10x64xf32>
    %194 = arith.addf %14, %193 : vector<10x64xf32>
    %c0_63 = arith.constant 0 : index
    %c0_64 = arith.constant 0 : index
    %c0_65 = arith.constant 0 : index
    %195 = vector.load %arg11[%c0_63, %c0_64, %c0_65] : memref<2x1x64xf32, #tpu.memory_space<vmem>>, vector<1x1x64xf32>
    %196 = vector.shape_cast %195 : vector<1x1x64xf32> to vector<1x64xf32>
    %197 = vector.broadcast %196 : vector<1x64xf32> to vector<10x64xf32>
    %198 = arith.addf %194, %197 : vector<10x64xf32>
    %c0_66 = arith.constant 0 : index
    %c0_67 = arith.constant 0 : index
    %c0_68 = arith.constant 0 : index
    %199 = vector.load %arg12[%c0_66, %c0_67, %c0_68] : memref<2x1x64xf32, #tpu.memory_space<vmem>>, vector<1x1x64xf32>
    %200 = vector.shape_cast %199 : vector<1x1x64xf32> to vector<1x64xf32>
    %c0_69 = arith.constant 0 : index
    %c0_70 = arith.constant 0 : index
    %c0_71 = arith.constant 0 : index
    %201 = vector.load %arg13[%c0_69, %c0_70, %c0_71] : memref<2x1x64xf32, #tpu.memory_space<vmem>>, vector<1x1x64xf32>
    %202 = vector.shape_cast %201 : vector<1x1x64xf32> to vector<1x64xf32>
    %cst_72 = arith.constant dense<0.000000e+00> : vector<10xf32>
    %203 = vector.multi_reduction <add>, %198, %cst_72 [1] : vector<10x64xf32> to vector<10xf32>
    %204 = vector.shape_cast %203 : vector<10xf32> to vector<10x1xf32>
    %cst_73 = arith.constant 6.400000e+01 : f32
    %205 = vector.broadcast %cst_73 : f32 to vector<10x1xf32>
    %206 = arith.divf %204, %205 : vector<10x1xf32>
    %207 = vector.broadcast %206 : vector<10x1xf32> to vector<10x64xf32>
    %208 = arith.subf %198, %207 : vector<10x64xf32>
    %209 = arith.mulf %208, %208 : vector<10x64xf32>
    %cst_74 = arith.constant dense<0.000000e+00> : vector<10xf32>
    %210 = vector.multi_reduction <add>, %209, %cst_74 [1] : vector<10x64xf32> to vector<10xf32>
    %211 = vector.shape_cast %210 : vector<10xf32> to vector<10x1xf32>
    %cst_75 = arith.constant 6.400000e+01 : f32
    %212 = vector.broadcast %cst_75 : f32 to vector<10x1xf32>
    %213 = arith.divf %211, %212 : vector<10x1xf32>
    %cst_76 = arith.constant 9.99999997E-7 : f32
    %214 = vector.broadcast %cst_76 : f32 to vector<10x1xf32>
    %215 = arith.addf %213, %214 : vector<10x1xf32>
    %216 = math.rsqrt %215 : vector<10x1xf32>
    %217 = vector.broadcast %216 : vector<10x1xf32> to vector<10x64xf32>
    %218 = arith.mulf %208, %217 : vector<10x64xf32>
    %219 = vector.broadcast %200 : vector<1x64xf32> to vector<10x64xf32>
    %220 = arith.mulf %218, %219 : vector<10x64xf32>
    %221 = vector.broadcast %202 : vector<1x64xf32> to vector<10x64xf32>
    %222 = arith.addf %220, %221 : vector<10x64xf32>
    %c0_77 = arith.constant 0 : index
    %c0_78 = arith.constant 0 : index
    %c0_79 = arith.constant 0 : index
    %223 = vector.load %arg14[%c0_77, %c0_78, %c0_79] : memref<2x64x256xbf16, #tpu.memory_space<vmem>>, vector<1x64x256xbf16>
    %224 = vector.shape_cast %223 : vector<1x64x256xbf16> to vector<64x256xbf16>
    %225 = arith.truncf %222 : vector<10x64xf32> to vector<10x64xbf16>
    %cst_80 = arith.constant dense<0.000000e+00> : vector<10x256xf32>
    %226 = tpu.matmul %225, %224, %cst_80 {dimension_numbers = #tpu.dot_dimension_numbers<[1], [0], [0], [1], [0, 0, 1, 1], [], []>} : vector<10x64xbf16>, vector<64x256xbf16>, vector<10x256xf32> -> vector<10x256xf32>
    %c0_81 = arith.constant 0 : index
    %c0_82 = arith.constant 0 : index
    %c0_83 = arith.constant 0 : index
    %227 = vector.load %arg15[%c0_81, %c0_82, %c0_83] : memref<2x1x256xf32, #tpu.memory_space<vmem>>, vector<1x1x256xf32>
    %228 = vector.shape_cast %227 : vector<1x1x256xf32> to vector<1x256xf32>
    %229 = vector.broadcast %228 : vector<1x256xf32> to vector<10x256xf32>
    %230 = arith.addf %226, %229 : vector<10x256xf32>
    %cst_84 = arith.constant 5.000000e-01 : f32
    %231 = vector.broadcast %cst_84 : f32 to vector<10x256xf32>
    %232 = arith.mulf %231, %230 : vector<10x256xf32>
    %cst_85 = arith.constant 0.707106769 : f32
    %233 = vector.broadcast %cst_85 : f32 to vector<10x256xf32>
    %234 = arith.mulf %230, %233 : vector<10x256xf32>
    %235 = math.erf %234 : vector<10x256xf32>
    %cst_86 = arith.constant 1.000000e+00 : f32
    %236 = vector.broadcast %cst_86 : f32 to vector<10x256xf32>
    %237 = arith.addf %236, %235 : vector<10x256xf32>
    %238 = arith.mulf %232, %237 : vector<10x256xf32>
    %c0_87 = arith.constant 0 : index
    %c0_88 = arith.constant 0 : index
    %c0_89 = arith.constant 0 : index
    %239 = vector.load %arg16[%c0_87, %c0_88, %c0_89] : memref<2x256x64xbf16, #tpu.memory_space<vmem>>, vector<1x256x64xbf16>
    %240 = vector.shape_cast %239 : vector<1x256x64xbf16> to vector<256x64xbf16>
    %241 = arith.truncf %238 : vector<10x256xf32> to vector<10x256xbf16>
    %cst_90 = arith.constant dense<0.000000e+00> : vector<10x64xf32>
    %242 = tpu.matmul %241, %240, %cst_90 {dimension_numbers = #tpu.dot_dimension_numbers<[1], [0], [0], [1], [0, 0, 1, 1], [], []>} : vector<10x256xbf16>, vector<256x64xbf16>, vector<10x64xf32> -> vector<10x64xf32>
    %243 = arith.addf %198, %242 : vector<10x64xf32>
    %c0_91 = arith.constant 0 : index
    %c0_92 = arith.constant 0 : index
    %c0_93 = arith.constant 0 : index
    %244 = vector.load %arg17[%c0_91, %c0_92, %c0_93] : memref<2x1x64xf32, #tpu.memory_space<vmem>>, vector<1x1x64xf32>
    %245 = vector.shape_cast %244 : vector<1x1x64xf32> to vector<1x64xf32>
    %246 = vector.broadcast %245 : vector<1x64xf32> to vector<10x64xf32>
    %247 = arith.addf %243, %246 : vector<10x64xf32>
    %c1 = arith.constant 1 : index
    %c0_94 = arith.constant 0 : index
    %c0_95 = arith.constant 0 : index
    %248 = vector.load %arg6[%c1, %c0_94, %c0_95] : memref<2x1x64xf32, #tpu.memory_space<vmem>>, vector<1x1x64xf32>
    %249 = vector.shape_cast %248 : vector<1x1x64xf32> to vector<1x64xf32>
    %c1_96 = arith.constant 1 : index
    %c0_97 = arith.constant 0 : index
    %c0_98 = arith.constant 0 : index
    %250 = vector.load %arg7[%c1_96, %c0_97, %c0_98] : memref<2x1x64xf32, #tpu.memory_space<vmem>>, vector<1x1x64xf32>
    %251 = vector.shape_cast %250 : vector<1x1x64xf32> to vector<1x64xf32>
    %cst_99 = arith.constant dense<0.000000e+00> : vector<10xf32>
    %252 = vector.multi_reduction <add>, %247, %cst_99 [1] : vector<10x64xf32> to vector<10xf32>
    %253 = vector.shape_cast %252 : vector<10xf32> to vector<10x1xf32>
    %cst_100 = arith.constant 6.400000e+01 : f32
    %254 = vector.broadcast %cst_100 : f32 to vector<10x1xf32>
    %255 = arith.divf %253, %254 : vector<10x1xf32>
    %256 = vector.broadcast %255 : vector<10x1xf32> to vector<10x64xf32>
    %257 = arith.subf %247, %256 : vector<10x64xf32>
    %258 = arith.mulf %257, %257 : vector<10x64xf32>
    %cst_101 = arith.constant dense<0.000000e+00> : vector<10xf32>
    %259 = vector.multi_reduction <add>, %258, %cst_101 [1] : vector<10x64xf32> to vector<10xf32>
    %260 = vector.shape_cast %259 : vector<10xf32> to vector<10x1xf32>
    %cst_102 = arith.constant 6.400000e+01 : f32
    %261 = vector.broadcast %cst_102 : f32 to vector<10x1xf32>
    %262 = arith.divf %260, %261 : vector<10x1xf32>
    %cst_103 = arith.constant 9.99999997E-7 : f32
    %263 = vector.broadcast %cst_103 : f32 to vector<10x1xf32>
    %264 = arith.addf %262, %263 : vector<10x1xf32>
    %265 = math.rsqrt %264 : vector<10x1xf32>
    %266 = vector.broadcast %265 : vector<10x1xf32> to vector<10x64xf32>
    %267 = arith.mulf %257, %266 : vector<10x64xf32>
    %268 = vector.broadcast %249 : vector<1x64xf32> to vector<10x64xf32>
    %269 = arith.mulf %267, %268 : vector<10x64xf32>
    %270 = vector.broadcast %251 : vector<1x64xf32> to vector<10x64xf32>
    %271 = arith.addf %269, %270 : vector<10x64xf32>
    %c1_104 = arith.constant 1 : index
    %c0_105 = arith.constant 0 : index
    %c0_106 = arith.constant 0 : index
    %272 = vector.load %arg8[%c1_104, %c0_105, %c0_106] : memref<2x64x192xbf16, #tpu.memory_space<vmem>>, vector<1x64x192xbf16>
    %273 = vector.shape_cast %272 : vector<1x64x192xbf16> to vector<64x192xbf16>
    %274 = arith.truncf %271 : vector<10x64xf32> to vector<10x64xbf16>
    %cst_107 = arith.constant dense<0.000000e+00> : vector<10x192xf32>
    %275 = tpu.matmul %274, %273, %cst_107 {dimension_numbers = #tpu.dot_dimension_numbers<[1], [0], [0], [1], [0, 0, 1, 1], [], []>} : vector<10x64xbf16>, vector<64x192xbf16>, vector<10x192xf32> -> vector<10x192xf32>
    %c1_108 = arith.constant 1 : index
    %c0_109 = arith.constant 0 : index
    %c0_110 = arith.constant 0 : index
    %276 = vector.load %arg9[%c1_108, %c0_109, %c0_110] : memref<2x1x192xf32, #tpu.memory_space<vmem>>, vector<1x1x192xf32>
    %277 = vector.shape_cast %276 : vector<1x1x192xf32> to vector<1x192xf32>
    %278 = vector.broadcast %277 : vector<1x192xf32> to vector<10x192xf32>
    %279 = arith.addf %275, %278 : vector<10x192xf32>
    %280 = vector.extract_strided_slice %279 {offsets = [0, 0], sizes = [10, 64], strides = [1, 1]} : vector<10x192xf32> to vector<10x64xf32>
    %281 = arith.truncf %280 : vector<10x64xf32> to vector<10x64xbf16>
    %282 = vector.extract_strided_slice %279 {offsets = [0, 64], sizes = [10, 64], strides = [1, 1]} : vector<10x192xf32> to vector<10x64xf32>
    %283 = arith.truncf %282 : vector<10x64xf32> to vector<10x64xbf16>
    %284 = vector.extract_strided_slice %279 {offsets = [0, 128], sizes = [10, 64], strides = [1, 1]} : vector<10x192xf32> to vector<10x64xf32>
    %285 = arith.truncf %284 : vector<10x64xf32> to vector<10x64xbf16>
    %286 = vector.extract_strided_slice %281 {offsets = [0, 0], sizes = [5, 64], strides = [1, 1]} : vector<10x64xbf16> to vector<5x64xbf16>
    %287 = vector.extract_strided_slice %283 {offsets = [0, 0], sizes = [5, 64], strides = [1, 1]} : vector<10x64xbf16> to vector<5x64xbf16>
    %288 = vector.extract_strided_slice %285 {offsets = [0, 0], sizes = [5, 64], strides = [1, 1]} : vector<10x64xbf16> to vector<5x64xbf16>
    %289 = vector.extract_strided_slice %286 {offsets = [0, 0], sizes = [5, 16], strides = [1, 1]} : vector<5x64xbf16> to vector<5x16xbf16>
    %290 = vector.extract_strided_slice %287 {offsets = [0, 0], sizes = [5, 16], strides = [1, 1]} : vector<5x64xbf16> to vector<5x16xbf16>
    %cst_111 = arith.constant dense<0.000000e+00> : vector<5x5xf32>
    %291 = tpu.matmul %289, %290, %cst_111 {dimension_numbers = #tpu.dot_dimension_numbers<[1], [1], [0], [0], [0, 0, 1, 0], [], []>} : vector<5x16xbf16>, vector<5x16xbf16>, vector<5x5xf32> -> vector<5x5xf32>
    %cst_112 = arith.constant dense<0xFF800000> : vector<5xf32>
    %292 = vector.multi_reduction <maximumf>, %291, %cst_112 [1] : vector<5x5xf32> to vector<5xf32>
    %293 = vector.shape_cast %292 : vector<5xf32> to vector<5x1xf32>
    %294 = vector.broadcast %293 : vector<5x1xf32> to vector<5x5xf32>
    %295 = arith.subf %291, %294 : vector<5x5xf32>
    %296 = math.exp %295 : vector<5x5xf32>
    %cst_113 = arith.constant dense<0.000000e+00> : vector<5xf32>
    %297 = vector.multi_reduction <add>, %296, %cst_113 [1] : vector<5x5xf32> to vector<5xf32>
    %298 = vector.shape_cast %297 : vector<5xf32> to vector<5x1xf32>
    %299 = tpu.reciprocal %298 {approx = true} : vector<5x1xf32> -> vector<5x1xf32>
    %300 = vector.broadcast %299 : vector<5x1xf32> to vector<5x5xf32>
    %301 = arith.mulf %296, %300 : vector<5x5xf32>
    %302 = arith.truncf %301 : vector<5x5xf32> to vector<5x5xbf16>
    %303 = vector.extract_strided_slice %288 {offsets = [0, 0], sizes = [5, 16], strides = [1, 1]} : vector<5x64xbf16> to vector<5x16xbf16>
    %cst_114 = arith.constant dense<0.000000e+00> : vector<5x16xf32>
    %304 = tpu.matmul %302, %303, %cst_114 {dimension_numbers = #tpu.dot_dimension_numbers<[1], [0], [0], [1], [0, 0, 1, 1], [], []>} : vector<5x5xbf16>, vector<5x16xbf16>, vector<5x16xf32> -> vector<5x16xf32>
    %305 = vector.extract_strided_slice %286 {offsets = [0, 16], sizes = [5, 16], strides = [1, 1]} : vector<5x64xbf16> to vector<5x16xbf16>
    %306 = vector.extract_strided_slice %287 {offsets = [0, 16], sizes = [5, 16], strides = [1, 1]} : vector<5x64xbf16> to vector<5x16xbf16>
    %cst_115 = arith.constant dense<0.000000e+00> : vector<5x5xf32>
    %307 = tpu.matmul %305, %306, %cst_115 {dimension_numbers = #tpu.dot_dimension_numbers<[1], [1], [0], [0], [0, 0, 1, 0], [], []>} : vector<5x16xbf16>, vector<5x16xbf16>, vector<5x5xf32> -> vector<5x5xf32>
    %cst_116 = arith.constant dense<0xFF800000> : vector<5xf32>
    %308 = vector.multi_reduction <maximumf>, %307, %cst_116 [1] : vector<5x5xf32> to vector<5xf32>
    %309 = vector.shape_cast %308 : vector<5xf32> to vector<5x1xf32>
    %310 = vector.broadcast %309 : vector<5x1xf32> to vector<5x5xf32>
    %311 = arith.subf %307, %310 : vector<5x5xf32>
    %312 = math.exp %311 : vector<5x5xf32>
    %cst_117 = arith.constant dense<0.000000e+00> : vector<5xf32>
    %313 = vector.multi_reduction <add>, %312, %cst_117 [1] : vector<5x5xf32> to vector<5xf32>
    %314 = vector.shape_cast %313 : vector<5xf32> to vector<5x1xf32>
    %315 = tpu.reciprocal %314 {approx = true} : vector<5x1xf32> -> vector<5x1xf32>
    %316 = vector.broadcast %315 : vector<5x1xf32> to vector<5x5xf32>
    %317 = arith.mulf %312, %316 : vector<5x5xf32>
    %318 = arith.truncf %317 : vector<5x5xf32> to vector<5x5xbf16>
    %319 = vector.extract_strided_slice %288 {offsets = [0, 16], sizes = [5, 16], strides = [1, 1]} : vector<5x64xbf16> to vector<5x16xbf16>
    %cst_118 = arith.constant dense<0.000000e+00> : vector<5x16xf32>
    %320 = tpu.matmul %318, %319, %cst_118 {dimension_numbers = #tpu.dot_dimension_numbers<[1], [0], [0], [1], [0, 0, 1, 1], [], []>} : vector<5x5xbf16>, vector<5x16xbf16>, vector<5x16xf32> -> vector<5x16xf32>
    %321 = vector.extract_strided_slice %286 {offsets = [0, 32], sizes = [5, 16], strides = [1, 1]} : vector<5x64xbf16> to vector<5x16xbf16>
    %322 = vector.extract_strided_slice %287 {offsets = [0, 32], sizes = [5, 16], strides = [1, 1]} : vector<5x64xbf16> to vector<5x16xbf16>
    %cst_119 = arith.constant dense<0.000000e+00> : vector<5x5xf32>
    %323 = tpu.matmul %321, %322, %cst_119 {dimension_numbers = #tpu.dot_dimension_numbers<[1], [1], [0], [0], [0, 0, 1, 0], [], []>} : vector<5x16xbf16>, vector<5x16xbf16>, vector<5x5xf32> -> vector<5x5xf32>
    %cst_120 = arith.constant dense<0xFF800000> : vector<5xf32>
    %324 = vector.multi_reduction <maximumf>, %323, %cst_120 [1] : vector<5x5xf32> to vector<5xf32>
    %325 = vector.shape_cast %324 : vector<5xf32> to vector<5x1xf32>
    %326 = vector.broadcast %325 : vector<5x1xf32> to vector<5x5xf32>
    %327 = arith.subf %323, %326 : vector<5x5xf32>
    %328 = math.exp %327 : vector<5x5xf32>
    %cst_121 = arith.constant dense<0.000000e+00> : vector<5xf32>
    %329 = vector.multi_reduction <add>, %328, %cst_121 [1] : vector<5x5xf32> to vector<5xf32>
    %330 = vector.shape_cast %329 : vector<5xf32> to vector<5x1xf32>
    %331 = tpu.reciprocal %330 {approx = true} : vector<5x1xf32> -> vector<5x1xf32>
    %332 = vector.broadcast %331 : vector<5x1xf32> to vector<5x5xf32>
    %333 = arith.mulf %328, %332 : vector<5x5xf32>
    %334 = arith.truncf %333 : vector<5x5xf32> to vector<5x5xbf16>
    %335 = vector.extract_strided_slice %288 {offsets = [0, 32], sizes = [5, 16], strides = [1, 1]} : vector<5x64xbf16> to vector<5x16xbf16>
    %cst_122 = arith.constant dense<0.000000e+00> : vector<5x16xf32>
    %336 = tpu.matmul %334, %335, %cst_122 {dimension_numbers = #tpu.dot_dimension_numbers<[1], [0], [0], [1], [0, 0, 1, 1], [], []>} : vector<5x5xbf16>, vector<5x16xbf16>, vector<5x16xf32> -> vector<5x16xf32>
    %337 = vector.extract_strided_slice %286 {offsets = [0, 48], sizes = [5, 16], strides = [1, 1]} : vector<5x64xbf16> to vector<5x16xbf16>
    %338 = vector.extract_strided_slice %287 {offsets = [0, 48], sizes = [5, 16], strides = [1, 1]} : vector<5x64xbf16> to vector<5x16xbf16>
    %cst_123 = arith.constant dense<0.000000e+00> : vector<5x5xf32>
    %339 = tpu.matmul %337, %338, %cst_123 {dimension_numbers = #tpu.dot_dimension_numbers<[1], [1], [0], [0], [0, 0, 1, 0], [], []>} : vector<5x16xbf16>, vector<5x16xbf16>, vector<5x5xf32> -> vector<5x5xf32>
    %cst_124 = arith.constant dense<0xFF800000> : vector<5xf32>
    %340 = vector.multi_reduction <maximumf>, %339, %cst_124 [1] : vector<5x5xf32> to vector<5xf32>
    %341 = vector.shape_cast %340 : vector<5xf32> to vector<5x1xf32>
    %342 = vector.broadcast %341 : vector<5x1xf32> to vector<5x5xf32>
    %343 = arith.subf %339, %342 : vector<5x5xf32>
    %344 = math.exp %343 : vector<5x5xf32>
    %cst_125 = arith.constant dense<0.000000e+00> : vector<5xf32>
    %345 = vector.multi_reduction <add>, %344, %cst_125 [1] : vector<5x5xf32> to vector<5xf32>
    %346 = vector.shape_cast %345 : vector<5xf32> to vector<5x1xf32>
    %347 = tpu.reciprocal %346 {approx = true} : vector<5x1xf32> -> vector<5x1xf32>
    %348 = vector.broadcast %347 : vector<5x1xf32> to vector<5x5xf32>
    %349 = arith.mulf %344, %348 : vector<5x5xf32>
    %350 = arith.truncf %349 : vector<5x5xf32> to vector<5x5xbf16>
    %351 = vector.extract_strided_slice %288 {offsets = [0, 48], sizes = [5, 16], strides = [1, 1]} : vector<5x64xbf16> to vector<5x16xbf16>
    %cst_126 = arith.constant dense<0.000000e+00> : vector<5x16xf32>
    %352 = tpu.matmul %350, %351, %cst_126 {dimension_numbers = #tpu.dot_dimension_numbers<[1], [0], [0], [1], [0, 0, 1, 1], [], []>} : vector<5x5xbf16>, vector<5x16xbf16>, vector<5x16xf32> -> vector<5x16xf32>
    %353 = tpu.concatenate %304, %320, %336, %352 in 1 : vector<5x16xf32>, vector<5x16xf32>, vector<5x16xf32>, vector<5x16xf32> -> vector<5x64xf32>
    %354 = vector.extract_strided_slice %281 {offsets = [5, 0], sizes = [5, 64], strides = [1, 1]} : vector<10x64xbf16> to vector<5x64xbf16>
    %355 = vector.extract_strided_slice %283 {offsets = [5, 0], sizes = [5, 64], strides = [1, 1]} : vector<10x64xbf16> to vector<5x64xbf16>
    %356 = vector.extract_strided_slice %285 {offsets = [5, 0], sizes = [5, 64], strides = [1, 1]} : vector<10x64xbf16> to vector<5x64xbf16>
    %357 = vector.extract_strided_slice %354 {offsets = [0, 0], sizes = [5, 16], strides = [1, 1]} : vector<5x64xbf16> to vector<5x16xbf16>
    %358 = vector.extract_strided_slice %355 {offsets = [0, 0], sizes = [5, 16], strides = [1, 1]} : vector<5x64xbf16> to vector<5x16xbf16>
    %cst_127 = arith.constant dense<0.000000e+00> : vector<5x5xf32>
    %359 = tpu.matmul %357, %358, %cst_127 {dimension_numbers = #tpu.dot_dimension_numbers<[1], [1], [0], [0], [0, 0, 1, 0], [], []>} : vector<5x16xbf16>, vector<5x16xbf16>, vector<5x5xf32> -> vector<5x5xf32>
    %cst_128 = arith.constant dense<0xFF800000> : vector<5xf32>
    %360 = vector.multi_reduction <maximumf>, %359, %cst_128 [1] : vector<5x5xf32> to vector<5xf32>
    %361 = vector.shape_cast %360 : vector<5xf32> to vector<5x1xf32>
    %362 = vector.broadcast %361 : vector<5x1xf32> to vector<5x5xf32>
    %363 = arith.subf %359, %362 : vector<5x5xf32>
    %364 = math.exp %363 : vector<5x5xf32>
    %cst_129 = arith.constant dense<0.000000e+00> : vector<5xf32>
    %365 = vector.multi_reduction <add>, %364, %cst_129 [1] : vector<5x5xf32> to vector<5xf32>
    %366 = vector.shape_cast %365 : vector<5xf32> to vector<5x1xf32>
    %367 = tpu.reciprocal %366 {approx = true} : vector<5x1xf32> -> vector<5x1xf32>
    %368 = vector.broadcast %367 : vector<5x1xf32> to vector<5x5xf32>
    %369 = arith.mulf %364, %368 : vector<5x5xf32>
    %370 = arith.truncf %369 : vector<5x5xf32> to vector<5x5xbf16>
    %371 = vector.extract_strided_slice %356 {offsets = [0, 0], sizes = [5, 16], strides = [1, 1]} : vector<5x64xbf16> to vector<5x16xbf16>
    %cst_130 = arith.constant dense<0.000000e+00> : vector<5x16xf32>
    %372 = tpu.matmul %370, %371, %cst_130 {dimension_numbers = #tpu.dot_dimension_numbers<[1], [0], [0], [1], [0, 0, 1, 1], [], []>} : vector<5x5xbf16>, vector<5x16xbf16>, vector<5x16xf32> -> vector<5x16xf32>
    %373 = vector.extract_strided_slice %354 {offsets = [0, 16], sizes = [5, 16], strides = [1, 1]} : vector<5x64xbf16> to vector<5x16xbf16>
    %374 = vector.extract_strided_slice %355 {offsets = [0, 16], sizes = [5, 16], strides = [1, 1]} : vector<5x64xbf16> to vector<5x16xbf16>
    %cst_131 = arith.constant dense<0.000000e+00> : vector<5x5xf32>
    %375 = tpu.matmul %373, %374, %cst_131 {dimension_numbers = #tpu.dot_dimension_numbers<[1], [1], [0], [0], [0, 0, 1, 0], [], []>} : vector<5x16xbf16>, vector<5x16xbf16>, vector<5x5xf32> -> vector<5x5xf32>
    %cst_132 = arith.constant dense<0xFF800000> : vector<5xf32>
    %376 = vector.multi_reduction <maximumf>, %375, %cst_132 [1] : vector<5x5xf32> to vector<5xf32>
    %377 = vector.shape_cast %376 : vector<5xf32> to vector<5x1xf32>
    %378 = vector.broadcast %377 : vector<5x1xf32> to vector<5x5xf32>
    %379 = arith.subf %375, %378 : vector<5x5xf32>
    %380 = math.exp %379 : vector<5x5xf32>
    %cst_133 = arith.constant dense<0.000000e+00> : vector<5xf32>
    %381 = vector.multi_reduction <add>, %380, %cst_133 [1] : vector<5x5xf32> to vector<5xf32>
    %382 = vector.shape_cast %381 : vector<5xf32> to vector<5x1xf32>
    %383 = tpu.reciprocal %382 {approx = true} : vector<5x1xf32> -> vector<5x1xf32>
    %384 = vector.broadcast %383 : vector<5x1xf32> to vector<5x5xf32>
    %385 = arith.mulf %380, %384 : vector<5x5xf32>
    %386 = arith.truncf %385 : vector<5x5xf32> to vector<5x5xbf16>
    %387 = vector.extract_strided_slice %356 {offsets = [0, 16], sizes = [5, 16], strides = [1, 1]} : vector<5x64xbf16> to vector<5x16xbf16>
    %cst_134 = arith.constant dense<0.000000e+00> : vector<5x16xf32>
    %388 = tpu.matmul %386, %387, %cst_134 {dimension_numbers = #tpu.dot_dimension_numbers<[1], [0], [0], [1], [0, 0, 1, 1], [], []>} : vector<5x5xbf16>, vector<5x16xbf16>, vector<5x16xf32> -> vector<5x16xf32>
    %389 = vector.extract_strided_slice %354 {offsets = [0, 32], sizes = [5, 16], strides = [1, 1]} : vector<5x64xbf16> to vector<5x16xbf16>
    %390 = vector.extract_strided_slice %355 {offsets = [0, 32], sizes = [5, 16], strides = [1, 1]} : vector<5x64xbf16> to vector<5x16xbf16>
    %cst_135 = arith.constant dense<0.000000e+00> : vector<5x5xf32>
    %391 = tpu.matmul %389, %390, %cst_135 {dimension_numbers = #tpu.dot_dimension_numbers<[1], [1], [0], [0], [0, 0, 1, 0], [], []>} : vector<5x16xbf16>, vector<5x16xbf16>, vector<5x5xf32> -> vector<5x5xf32>
    %cst_136 = arith.constant dense<0xFF800000> : vector<5xf32>
    %392 = vector.multi_reduction <maximumf>, %391, %cst_136 [1] : vector<5x5xf32> to vector<5xf32>
    %393 = vector.shape_cast %392 : vector<5xf32> to vector<5x1xf32>
    %394 = vector.broadcast %393 : vector<5x1xf32> to vector<5x5xf32>
    %395 = arith.subf %391, %394 : vector<5x5xf32>
    %396 = math.exp %395 : vector<5x5xf32>
    %cst_137 = arith.constant dense<0.000000e+00> : vector<5xf32>
    %397 = vector.multi_reduction <add>, %396, %cst_137 [1] : vector<5x5xf32> to vector<5xf32>
    %398 = vector.shape_cast %397 : vector<5xf32> to vector<5x1xf32>
    %399 = tpu.reciprocal %398 {approx = true} : vector<5x1xf32> -> vector<5x1xf32>
    %400 = vector.broadcast %399 : vector<5x1xf32> to vector<5x5xf32>
    %401 = arith.mulf %396, %400 : vector<5x5xf32>
    %402 = arith.truncf %401 : vector<5x5xf32> to vector<5x5xbf16>
    %403 = vector.extract_strided_slice %356 {offsets = [0, 32], sizes = [5, 16], strides = [1, 1]} : vector<5x64xbf16> to vector<5x16xbf16>
    %cst_138 = arith.constant dense<0.000000e+00> : vector<5x16xf32>
    %404 = tpu.matmul %402, %403, %cst_138 {dimension_numbers = #tpu.dot_dimension_numbers<[1], [0], [0], [1], [0, 0, 1, 1], [], []>} : vector<5x5xbf16>, vector<5x16xbf16>, vector<5x16xf32> -> vector<5x16xf32>
    %405 = vector.extract_strided_slice %354 {offsets = [0, 48], sizes = [5, 16], strides = [1, 1]} : vector<5x64xbf16> to vector<5x16xbf16>
    %406 = vector.extract_strided_slice %355 {offsets = [0, 48], sizes = [5, 16], strides = [1, 1]} : vector<5x64xbf16> to vector<5x16xbf16>
    %cst_139 = arith.constant dense<0.000000e+00> : vector<5x5xf32>
    %407 = tpu.matmul %405, %406, %cst_139 {dimension_numbers = #tpu.dot_dimension_numbers<[1], [1], [0], [0], [0, 0, 1, 0], [], []>} : vector<5x16xbf16>, vector<5x16xbf16>, vector<5x5xf32> -> vector<5x5xf32>
    %cst_140 = arith.constant dense<0xFF800000> : vector<5xf32>
    %408 = vector.multi_reduction <maximumf>, %407, %cst_140 [1] : vector<5x5xf32> to vector<5xf32>
    %409 = vector.shape_cast %408 : vector<5xf32> to vector<5x1xf32>
    %410 = vector.broadcast %409 : vector<5x1xf32> to vector<5x5xf32>
    %411 = arith.subf %407, %410 : vector<5x5xf32>
    %412 = math.exp %411 : vector<5x5xf32>
    %cst_141 = arith.constant dense<0.000000e+00> : vector<5xf32>
    %413 = vector.multi_reduction <add>, %412, %cst_141 [1] : vector<5x5xf32> to vector<5xf32>
    %414 = vector.shape_cast %413 : vector<5xf32> to vector<5x1xf32>
    %415 = tpu.reciprocal %414 {approx = true} : vector<5x1xf32> -> vector<5x1xf32>
    %416 = vector.broadcast %415 : vector<5x1xf32> to vector<5x5xf32>
    %417 = arith.mulf %412, %416 : vector<5x5xf32>
    %418 = arith.truncf %417 : vector<5x5xf32> to vector<5x5xbf16>
    %419 = vector.extract_strided_slice %356 {offsets = [0, 48], sizes = [5, 16], strides = [1, 1]} : vector<5x64xbf16> to vector<5x16xbf16>
    %cst_142 = arith.constant dense<0.000000e+00> : vector<5x16xf32>
    %420 = tpu.matmul %418, %419, %cst_142 {dimension_numbers = #tpu.dot_dimension_numbers<[1], [0], [0], [1], [0, 0, 1, 1], [], []>} : vector<5x5xbf16>, vector<5x16xbf16>, vector<5x16xf32> -> vector<5x16xf32>
    %421 = tpu.concatenate %372, %388, %404, %420 in 1 : vector<5x16xf32>, vector<5x16xf32>, vector<5x16xf32>, vector<5x16xf32> -> vector<5x64xf32>
    %422 = tpu.concatenate %353, %421 in 0 : vector<5x64xf32>, vector<5x64xf32> -> vector<10x64xf32>
    %c1_143 = arith.constant 1 : index
    %c0_144 = arith.constant 0 : index
    %c0_145 = arith.constant 0 : index
    %423 = vector.load %arg10[%c1_143, %c0_144, %c0_145] : memref<2x64x64xbf16, #tpu.memory_space<vmem>>, vector<1x64x64xbf16>
    %424 = vector.shape_cast %423 : vector<1x64x64xbf16> to vector<64x64xbf16>
    %425 = arith.truncf %422 : vector<10x64xf32> to vector<10x64xbf16>
    %cst_146 = arith.constant dense<0.000000e+00> : vector<10x64xf32>
    %426 = tpu.matmul %425, %424, %cst_146 {dimension_numbers = #tpu.dot_dimension_numbers<[1], [0], [0], [1], [0, 0, 1, 1], [], []>} : vector<10x64xbf16>, vector<64x64xbf16>, vector<10x64xf32> -> vector<10x64xf32>
    %427 = arith.addf %247, %426 : vector<10x64xf32>
    %c1_147 = arith.constant 1 : index
    %c0_148 = arith.constant 0 : index
    %c0_149 = arith.constant 0 : index
    %428 = vector.load %arg11[%c1_147, %c0_148, %c0_149] : memref<2x1x64xf32, #tpu.memory_space<vmem>>, vector<1x1x64xf32>
    %429 = vector.shape_cast %428 : vector<1x1x64xf32> to vector<1x64xf32>
    %430 = vector.broadcast %429 : vector<1x64xf32> to vector<10x64xf32>
    %431 = arith.addf %427, %430 : vector<10x64xf32>
    %c1_150 = arith.constant 1 : index
    %c0_151 = arith.constant 0 : index
    %c0_152 = arith.constant 0 : index
    %432 = vector.load %arg12[%c1_150, %c0_151, %c0_152] : memref<2x1x64xf32, #tpu.memory_space<vmem>>, vector<1x1x64xf32>
    %433 = vector.shape_cast %432 : vector<1x1x64xf32> to vector<1x64xf32>
    %c1_153 = arith.constant 1 : index
    %c0_154 = arith.constant 0 : index
    %c0_155 = arith.constant 0 : index
    %434 = vector.load %arg13[%c1_153, %c0_154, %c0_155] : memref<2x1x64xf32, #tpu.memory_space<vmem>>, vector<1x1x64xf32>
    %435 = vector.shape_cast %434 : vector<1x1x64xf32> to vector<1x64xf32>
    %cst_156 = arith.constant dense<0.000000e+00> : vector<10xf32>
    %436 = vector.multi_reduction <add>, %431, %cst_156 [1] : vector<10x64xf32> to vector<10xf32>
    %437 = vector.shape_cast %436 : vector<10xf32> to vector<10x1xf32>
    %cst_157 = arith.constant 6.400000e+01 : f32
    %438 = vector.broadcast %cst_157 : f32 to vector<10x1xf32>
    %439 = arith.divf %437, %438 : vector<10x1xf32>
    %440 = vector.broadcast %439 : vector<10x1xf32> to vector<10x64xf32>
    %441 = arith.subf %431, %440 : vector<10x64xf32>
    %442 = arith.mulf %441, %441 : vector<10x64xf32>
    %cst_158 = arith.constant dense<0.000000e+00> : vector<10xf32>
    %443 = vector.multi_reduction <add>, %442, %cst_158 [1] : vector<10x64xf32> to vector<10xf32>
    %444 = vector.shape_cast %443 : vector<10xf32> to vector<10x1xf32>
    %cst_159 = arith.constant 6.400000e+01 : f32
    %445 = vector.broadcast %cst_159 : f32 to vector<10x1xf32>
    %446 = arith.divf %444, %445 : vector<10x1xf32>
    %cst_160 = arith.constant 9.99999997E-7 : f32
    %447 = vector.broadcast %cst_160 : f32 to vector<10x1xf32>
    %448 = arith.addf %446, %447 : vector<10x1xf32>
    %449 = math.rsqrt %448 : vector<10x1xf32>
    %450 = vector.broadcast %449 : vector<10x1xf32> to vector<10x64xf32>
    %451 = arith.mulf %441, %450 : vector<10x64xf32>
    %452 = vector.broadcast %433 : vector<1x64xf32> to vector<10x64xf32>
    %453 = arith.mulf %451, %452 : vector<10x64xf32>
    %454 = vector.broadcast %435 : vector<1x64xf32> to vector<10x64xf32>
    %455 = arith.addf %453, %454 : vector<10x64xf32>
    %c1_161 = arith.constant 1 : index
    %c0_162 = arith.constant 0 : index
    %c0_163 = arith.constant 0 : index
    %456 = vector.load %arg14[%c1_161, %c0_162, %c0_163] : memref<2x64x256xbf16, #tpu.memory_space<vmem>>, vector<1x64x256xbf16>
    %457 = vector.shape_cast %456 : vector<1x64x256xbf16> to vector<64x256xbf16>
    %458 = arith.truncf %455 : vector<10x64xf32> to vector<10x64xbf16>
    %cst_164 = arith.constant dense<0.000000e+00> : vector<10x256xf32>
    %459 = tpu.matmul %458, %457, %cst_164 {dimension_numbers = #tpu.dot_dimension_numbers<[1], [0], [0], [1], [0, 0, 1, 1], [], []>} : vector<10x64xbf16>, vector<64x256xbf16>, vector<10x256xf32> -> vector<10x256xf32>
    %c1_165 = arith.constant 1 : index
    %c0_166 = arith.constant 0 : index
    %c0_167 = arith.constant 0 : index
    %460 = vector.load %arg15[%c1_165, %c0_166, %c0_167] : memref<2x1x256xf32, #tpu.memory_space<vmem>>, vector<1x1x256xf32>
    %461 = vector.shape_cast %460 : vector<1x1x256xf32> to vector<1x256xf32>
    %462 = vector.broadcast %461 : vector<1x256xf32> to vector<10x256xf32>
    %463 = arith.addf %459, %462 : vector<10x256xf32>
    %cst_168 = arith.constant 5.000000e-01 : f32
    %464 = vector.broadcast %cst_168 : f32 to vector<10x256xf32>
    %465 = arith.mulf %464, %463 : vector<10x256xf32>
    %cst_169 = arith.constant 0.707106769 : f32
    %466 = vector.broadcast %cst_169 : f32 to vector<10x256xf32>
    %467 = arith.mulf %463, %466 : vector<10x256xf32>
    %468 = math.erf %467 : vector<10x256xf32>
    %cst_170 = arith.constant 1.000000e+00 : f32
    %469 = vector.broadcast %cst_170 : f32 to vector<10x256xf32>
    %470 = arith.addf %469, %468 : vector<10x256xf32>
    %471 = arith.mulf %465, %470 : vector<10x256xf32>
    %c1_171 = arith.constant 1 : index
    %c0_172 = arith.constant 0 : index
    %c0_173 = arith.constant 0 : index
    %472 = vector.load %arg16[%c1_171, %c0_172, %c0_173] : memref<2x256x64xbf16, #tpu.memory_space<vmem>>, vector<1x256x64xbf16>
    %473 = vector.shape_cast %472 : vector<1x256x64xbf16> to vector<256x64xbf16>
    %474 = arith.truncf %471 : vector<10x256xf32> to vector<10x256xbf16>
    %cst_174 = arith.constant dense<0.000000e+00> : vector<10x64xf32>
    %475 = tpu.matmul %474, %473, %cst_174 {dimension_numbers = #tpu.dot_dimension_numbers<[1], [0], [0], [1], [0, 0, 1, 1], [], []>} : vector<10x256xbf16>, vector<256x64xbf16>, vector<10x64xf32> -> vector<10x64xf32>
    %476 = arith.addf %431, %475 : vector<10x64xf32>
    %c1_175 = arith.constant 1 : index
    %c0_176 = arith.constant 0 : index
    %c0_177 = arith.constant 0 : index
    %477 = vector.load %arg17[%c1_175, %c0_176, %c0_177] : memref<2x1x64xf32, #tpu.memory_space<vmem>>, vector<1x1x64xf32>
    %478 = vector.shape_cast %477 : vector<1x1x64xf32> to vector<1x64xf32>
    %479 = vector.broadcast %478 : vector<1x64xf32> to vector<10x64xf32>
    %480 = arith.addf %476, %479 : vector<10x64xf32>
    %481 = vector.extract_strided_slice %480 {offsets = [0, 0], sizes = [1, 64], strides = [1, 1]} : vector<10x64xf32> to vector<1x64xf32>
    %482 = vector.extract_strided_slice %480 {offsets = [5, 0], sizes = [1, 64], strides = [1, 1]} : vector<10x64xf32> to vector<1x64xf32>
    %483 = tpu.concatenate %481, %482 in 0 : vector<1x64xf32>, vector<1x64xf32> -> vector<2x64xf32>
    %c0_178 = arith.constant 0 : index
    %c0_179 = arith.constant 0 : index
    %484 = vector.load %arg18[%c0_178, %c0_179] : memref<1x64xf32, #tpu.memory_space<vmem>>, vector<1x64xf32>
    %c0_180 = arith.constant 0 : index
    %c0_181 = arith.constant 0 : index
    %485 = vector.load %arg19[%c0_180, %c0_181] : memref<1x64xf32, #tpu.memory_space<vmem>>, vector<1x64xf32>
    %cst_182 = arith.constant dense<0.000000e+00> : vector<2xf32>
    %486 = vector.multi_reduction <add>, %483, %cst_182 [1] : vector<2x64xf32> to vector<2xf32>
    %487 = vector.shape_cast %486 : vector<2xf32> to vector<2x1xf32>
    %cst_183 = arith.constant 6.400000e+01 : f32
    %488 = vector.broadcast %cst_183 : f32 to vector<2x1xf32>
    %489 = arith.divf %487, %488 : vector<2x1xf32>
    %490 = vector.broadcast %489 : vector<2x1xf32> to vector<2x64xf32>
    %491 = arith.subf %483, %490 : vector<2x64xf32>
    %492 = arith.mulf %491, %491 : vector<2x64xf32>
    %cst_184 = arith.constant dense<0.000000e+00> : vector<2xf32>
    %493 = vector.multi_reduction <add>, %492, %cst_184 [1] : vector<2x64xf32> to vector<2xf32>
    %494 = vector.shape_cast %493 : vector<2xf32> to vector<2x1xf32>
    %cst_185 = arith.constant 6.400000e+01 : f32
    %495 = vector.broadcast %cst_185 : f32 to vector<2x1xf32>
    %496 = arith.divf %494, %495 : vector<2x1xf32>
    %cst_186 = arith.constant 9.99999997E-7 : f32
    %497 = vector.broadcast %cst_186 : f32 to vector<2x1xf32>
    %498 = arith.addf %496, %497 : vector<2x1xf32>
    %499 = math.rsqrt %498 : vector<2x1xf32>
    %500 = vector.broadcast %499 : vector<2x1xf32> to vector<2x64xf32>
    %501 = arith.mulf %491, %500 : vector<2x64xf32>
    %502 = vector.broadcast %484 : vector<1x64xf32> to vector<2x64xf32>
    %503 = arith.mulf %501, %502 : vector<2x64xf32>
    %504 = vector.broadcast %485 : vector<1x64xf32> to vector<2x64xf32>
    %505 = arith.addf %503, %504 : vector<2x64xf32>
    %c0_187 = arith.constant 0 : index
    %c0_188 = arith.constant 0 : index
    %506 = vector.load %arg20[%c0_187, %c0_188] : memref<64x32xbf16, #tpu.memory_space<vmem>>, vector<64x32xbf16>
    %507 = arith.truncf %505 : vector<2x64xf32> to vector<2x64xbf16>
    %cst_189 = arith.constant dense<0.000000e+00> : vector<2x32xf32>
    %508 = tpu.matmul %507, %506, %cst_189 {dimension_numbers = #tpu.dot_dimension_numbers<[1], [0], [0], [1], [0, 0, 1, 1], [], []>} : vector<2x64xbf16>, vector<64x32xbf16>, vector<2x32xf32> -> vector<2x32xf32>
    %c0_190 = arith.constant 0 : index
    %c0_191 = arith.constant 0 : index
    %509 = vector.load %arg21[%c0_190, %c0_191] : memref<1x32xf32, #tpu.memory_space<vmem>>, vector<1x32xf32>
    %510 = vector.broadcast %509 : vector<1x32xf32> to vector<2x32xf32>
    %511 = arith.addf %508, %510 : vector<2x32xf32>
    %c0_192 = arith.constant 0 : index
    %c0_193 = arith.constant 0 : index
    %512 = vector.load %arg22[%c0_192, %c0_193] : memref<2x32xf32, #tpu.memory_space<vmem>>, vector<2x32xf32>
    tpu.vector_store %arg22[%c0_192, %c0_193], %511 {strides = array<i32>} : memref<2x32xf32, #tpu.memory_space<vmem>>, vector<2x32xf32>,
    return
  }
  func.func @transform_0(%arg0: i32) -> (i32, i32) {
    %c0_i32 = arith.constant 0 : i32
    %c0_i32_0 = arith.constant 0 : i32
    %c0_i32_1 = arith.constant 0 : i32
    return %c0_i32, %c0_i32_0 : i32, i32
  }
  func.func @transform_1(%arg0: i32) -> (i32, i32) {
    %c0_i32 = arith.constant 0 : i32
    %c0_i32_0 = arith.constant 0 : i32
    %c0_i32_1 = arith.constant 0 : i32
    return %c0_i32, %c0_i32_0 : i32, i32
  }
  func.func @transform_2(%arg0: i32) -> (i32, i32) {
    %c0_i32 = arith.constant 0 : i32
    %c0_i32_0 = arith.constant 0 : i32
    %c0_i32_1 = arith.constant 0 : i32
    return %c0_i32, %c0_i32_0 : i32, i32
  }
  func.func @transform_3(%arg0: i32) -> (i32, i32) {
    %c0_i32 = arith.constant 0 : i32
    %c0_i32_0 = arith.constant 0 : i32
    %c0_i32_1 = arith.constant 0 : i32
    return %c0_i32, %c0_i32_0 : i32, i32
  }
  func.func @transform_4(%arg0: i32) -> (i32, i32) {
    %c0_i32 = arith.constant 0 : i32
    %c0_i32_0 = arith.constant 0 : i32
    %c0_i32_1 = arith.constant 0 : i32
    return %c0_i32, %c0_i32_0 : i32, i32
  }
  func.func @transform_5(%arg0: i32) -> (i32, i32, i32) {
    %c0_i32 = arith.constant 0 : i32
    %c0_i32_0 = arith.constant 0 : i32
    %c0_i32_1 = arith.constant 0 : i32
    %c0_i32_2 = arith.constant 0 : i32
    return %c0_i32, %c0_i32_0, %c0_i32_1 : i32, i32, i32
  }
  func.func @transform_6(%arg0: i32) -> (i32, i32, i32) {
    %c0_i32 = arith.constant 0 : i32
    %c0_i32_0 = arith.constant 0 : i32
    %c0_i32_1 = arith.constant 0 : i32
    %c0_i32_2 = arith.constant 0 : i32
    return %c0_i32, %c0_i32_0, %c0_i32_1 : i32, i32, i32
  }
  func.func @transform_7(%arg0: i32) -> (i32, i32, i32) {
    %c0_i32 = arith.constant 0 : i32
    %c0_i32_0 = arith.constant 0 : i32
    %c0_i32_1 = arith.constant 0 : i32
    %c0_i32_2 = arith.constant 0 : i32
    return %c0_i32, %c0_i32_0, %c0_i32_1 : i32, i32, i32
  }
  func.func @transform_8(%arg0: i32) -> (i32, i32, i32) {
    %c0_i32 = arith.constant 0 : i32
    %c0_i32_0 = arith.constant 0 : i32
    %c0_i32_1 = arith.constant 0 : i32
    %c0_i32_2 = arith.constant 0 : i32
    return %c0_i32, %c0_i32_0, %c0_i32_1 : i32, i32, i32
  }
  func.func @transform_9(%arg0: i32) -> (i32, i32, i32) {
    %c0_i32 = arith.constant 0 : i32
    %c0_i32_0 = arith.constant 0 : i32
    %c0_i32_1 = arith.constant 0 : i32
    %c0_i32_2 = arith.constant 0 : i32
    return %c0_i32, %c0_i32_0, %c0_i32_1 : i32, i32, i32
  }
  func.func @transform_10(%arg0: i32) -> (i32, i32, i32) {
    %c0_i32 = arith.constant 0 : i32
    %c0_i32_0 = arith.constant 0 : i32
    %c0_i32_1 = arith.constant 0 : i32
    %c0_i32_2 = arith.constant 0 : i32
    return %c0_i32, %c0_i32_0, %c0_i32_1 : i32, i32, i32
  }
  func.func @transform_11(%arg0: i32) -> (i32, i32, i32) {
    %c0_i32 = arith.constant 0 : i32
    %c0_i32_0 = arith.constant 0 : i32
    %c0_i32_1 = arith.constant 0 : i32
    %c0_i32_2 = arith.constant 0 : i32
    return %c0_i32, %c0_i32_0, %c0_i32_1 : i32, i32, i32
  }
  func.func @transform_12(%arg0: i32) -> (i32, i32, i32) {
    %c0_i32 = arith.constant 0 : i32
    %c0_i32_0 = arith.constant 0 : i32
    %c0_i32_1 = arith.constant 0 : i32
    %c0_i32_2 = arith.constant 0 : i32
    return %c0_i32, %c0_i32_0, %c0_i32_1 : i32, i32, i32
  }
  func.func @transform_13(%arg0: i32) -> (i32, i32, i32) {
    %c0_i32 = arith.constant 0 : i32
    %c0_i32_0 = arith.constant 0 : i32
    %c0_i32_1 = arith.constant 0 : i32
    %c0_i32_2 = arith.constant 0 : i32
    return %c0_i32, %c0_i32_0, %c0_i32_1 : i32, i32, i32
  }
  func.func @transform_14(%arg0: i32) -> (i32, i32, i32) {
    %c0_i32 = arith.constant 0 : i32
    %c0_i32_0 = arith.constant 0 : i32
    %c0_i32_1 = arith.constant 0 : i32
    %c0_i32_2 = arith.constant 0 : i32
    return %c0_i32, %c0_i32_0, %c0_i32_1 : i32, i32, i32
  }
  func.func @transform_15(%arg0: i32) -> (i32, i32, i32) {
    %c0_i32 = arith.constant 0 : i32
    %c0_i32_0 = arith.constant 0 : i32
    %c0_i32_1 = arith.constant 0 : i32
    %c0_i32_2 = arith.constant 0 : i32
    return %c0_i32, %c0_i32_0, %c0_i32_1 : i32, i32, i32
  }
  func.func @transform_16(%arg0: i32) -> (i32, i32, i32) {
    %c0_i32 = arith.constant 0 : i32
    %c0_i32_0 = arith.constant 0 : i32
    %c0_i32_1 = arith.constant 0 : i32
    %c0_i32_2 = arith.constant 0 : i32
    return %c0_i32, %c0_i32_0, %c0_i32_1 : i32, i32, i32
  }
  func.func @transform_17(%arg0: i32) -> (i32, i32) {
    %c0_i32 = arith.constant 0 : i32
    %c0_i32_0 = arith.constant 0 : i32
    %c0_i32_1 = arith.constant 0 : i32
    return %c0_i32, %c0_i32_0 : i32, i32
  }
  func.func @transform_18(%arg0: i32) -> (i32, i32) {
    %c0_i32 = arith.constant 0 : i32
    %c0_i32_0 = arith.constant 0 : i32
    %c0_i32_1 = arith.constant 0 : i32
    return %c0_i32, %c0_i32_0 : i32, i32
  }
  func.func @transform_19(%arg0: i32) -> (i32, i32) {
    %c0_i32 = arith.constant 0 : i32
    %c0_i32_0 = arith.constant 0 : i32
    %c0_i32_1 = arith.constant 0 : i32
    return %c0_i32, %c0_i32_0 : i32, i32
  }
  func.func @transform_20(%arg0: i32) -> (i32, i32) {
    %c0_i32 = arith.constant 0 : i32
    %c0_i32_0 = arith.constant 0 : i32
    %c0_i32_1 = arith.constant 0 : i32
    return %c0_i32, %c0_i32_0 : i32, i32
  }
  func.func @transform_21(%arg0: i32) -> (i32, i32) {
    %c0_i32 = arith.constant 0 : i32
    %c0_i32_0 = arith.constant 0 : i32
    %c0_i32_1 = arith.constant 0 : i32
    return %c0_i32, %c0_i32_0 : i32, i32
  }
}

</mosaic_0001>

<llo_original>
// kernel: encoder_forward.1
$region0: #{encoder_forward.1}
  #allocation0 [shape = 'u32[]', space=smem, size = 0x4, offset = 0x4, fixed_abs, tag = 'smem constant byte address 0x4 - core index']
  #allocation1 [shape = 'u32[72,128]{1,0:T(1,128)}', space=vmem, size = 0x9000, scoped, tag = 'internal scratch']
  %s0 = inlined_call_operand.vmem [shape: bf16[8,768], index: 0, kind: input, shape index: {}]
  %s1 = inlined_call_operand.vmem [shape: bf16[768,64], index: 1, kind: input, shape index: {}]
  %s2 = inlined_call_operand.vmem [shape: f32[1,64], index: 2, kind: input, shape index: {}]
  %s3 = inlined_call_operand.vmem [shape: f32[1,64], index: 3, kind: input, shape index: {}]
  %s4 = inlined_call_operand.vmem [shape: f32[5,64], index: 4, kind: input, shape index: {}]
  %s5 = inlined_call_operand.vmem [shape: f32[2,1,64], index: 5, kind: input, shape index: {}]
  %s6 = inlined_call_operand.vmem [shape: f32[2,1,64], index: 6, kind: input, shape index: {}]
  %s7 = inlined_call_operand.vmem [shape: bf16[2,64,192], index: 7, kind: input, shape index: {}]
  %s8 = inlined_call_operand.vmem [shape: f32[2,1,192], index: 8, kind: input, shape index: {}]
  %s9 = inlined_call_operand.vmem [shape: bf16[2,64,64], index: 9, kind: input, shape index: {}]
  %s10 = inlined_call_operand.vmem [shape: f32[2,1,64], index: 10, kind: input, shape index: {}]
  %s11 = inlined_call_operand.vmem [shape: f32[2,1,64], index: 11, kind: input, shape index: {}]
  %s12 = inlined_call_operand.vmem [shape: f32[2,1,64], index: 12, kind: input, shape index: {}]
  %s13 = inlined_call_operand.vmem [shape: bf16[2,64,256], index: 13, kind: input, shape index: {}]
  %s14 = inlined_call_operand.vmem [shape: f32[2,1,256], index: 14, kind: input, shape index: {}]
  %s15 = inlined_call_operand.vmem [shape: bf16[2,256,64], index: 15, kind: input, shape index: {}]
  %s16 = inlined_call_operand.vmem [shape: f32[2,1,64], index: 16, kind: input, shape index: {}]
  %s17 = inlined_call_operand.vmem [shape: f32[1,64], index: 17, kind: input, shape index: {}]
  %s18 = inlined_call_operand.vmem [shape: f32[1,64], index: 18, kind: input, shape index: {}]
  %s19 = inlined_call_operand.vmem [shape: bf16[64,32], index: 19, kind: input, shape index: {}]
  %s20 = inlined_call_operand.vmem [shape: f32[1,32], index: 20, kind: input, shape index: {}]
  %s21 = inlined_call_operand.hbm [shape: f32[2,32], index: 21, kind: output, shape index: {}]
  %s22 = sld [smem:[#allocation0]]
  $region94: #{encoder_forward.1} parent=0
    _
  %s24 = ssub.s32 1, %s22
  %s25 = scalar_select 0, %s24, %s22
  $region1: #{encoder_forward.1} parent=0
    #allocation2 [shape = 'u8[1024]{0}', space=vmem, size = 0x400, scoped, tag = 'output window, operand 0, single buffered']
    #allocation3 [shape = 's32[1]{0}', space=sflag, size = 0x4, scoped, tag = 'scoped memory for encoder_forward.1']
    %26 = vsyncpa [#allocation3], 0
    // Predicated region
    $region2: #{encoder_forward.1} parent=1 // pred_check
      _
    $region3: #{encoder_forward.1} parent=1 // pred_check_branch
      %28 = sbr.rel (0) target = $region5
    $region4: #{encoder_forward.1} parent=1 // pred_region
      _
    $region5: #{encoder_forward.1} parent=1 // pred_fallthru
      _
    // Predicated region
    $region6: #{encoder_forward.1} parent=1 // pred_check
      _
    $region7: #{encoder_forward.1} parent=1 // pred_check_branch
      %30 = sbr.rel (0) target = $region9
    $region8: #{encoder_forward.1} parent=1 // pred_region
      _
    $region9: #{encoder_forward.1} parent=1 // pred_fallthru
      _
    // Predicated region
    $region10: #{encoder_forward.1} parent=1 // pred_check
      _
    $region11: #{encoder_forward.1} parent=1 // pred_check_branch
      %32 = sbr.rel (0) target = $region13
    $region12: #{encoder_forward.1} parent=1 // pred_region
      _
    $region13: #{encoder_forward.1} parent=1 // pred_fallthru
      _
    // Predicated region
    $region14: #{encoder_forward.1} parent=1 // pred_check
      _
    $region15: #{encoder_forward.1} parent=1 // pred_check_branch
      %34 = sbr.rel (0) target = $region17
    $region16: #{encoder_forward.1} parent=1 // pred_region
      _
    $region17: #{encoder_forward.1} parent=1 // pred_fallthru
      _
    // Predicated region
    $region18: #{encoder_forward.1} parent=1 // pred_check
      _
    $region19: #{encoder_forward.1} parent=1 // pred_check_branch
      %36 = sbr.rel (0) target = $region21
    $region20: #{encoder_forward.1} parent=1 // pred_region
      _
    $region21: #{encoder_forward.1} parent=1 // pred_fallthru
      _
    // Predicated region
    $region22: #{encoder_forward.1} parent=1 // pred_check
      _
    $region23: #{encoder_forward.1} parent=1 // pred_check_branch
      %38 = sbr.rel (0) target = $region25
    $region24: #{encoder_forward.1} parent=1 // pred_region
      _
    $region25: #{encoder_forward.1} parent=1 // pred_fallthru
      _
    // Predicated region
    $region26: #{encoder_forward.1} parent=1 // pred_check
      _
    $region27: #{encoder_forward.1} parent=1 // pred_check_branch
      %40 = sbr.rel (0) target = $region29
    $region28: #{encoder_forward.1} parent=1 // pred_region
      _
    $region29: #{encoder_forward.1} parent=1 // pred_fallthru
      _
    // Predicated region
    $region30: #{encoder_forward.1} parent=1 // pred_check
      _
    $region31: #{encoder_forward.1} parent=1 // pred_check_branch
      %42 = sbr.rel (0) target = $region33
    $region32: #{encoder_forward.1} parent=1 // pred_region
      _
    $region33: #{encoder_forward.1} parent=1 // pred_fallthru
      _
    // Predicated region
    $region34: #{encoder_forward.1} parent=1 // pred_check
      _
    $region35: #{encoder_forward.1} parent=1 // pred_check_branch
      %44 = sbr.rel (0) target = $region37
    $region36: #{encoder_forward.1} parent=1 // pred_region
      _
    $region37: #{encoder_forward.1} parent=1 // pred_fallthru
      _
    // Predicated region
    $region38: #{encoder_forward.1} parent=1 // pred_check
      _
    $region39: #{encoder_forward.1} parent=1 // pred_check_branch
      %46 = sbr.rel (0) target = $region41
    $region40: #{encoder_forward.1} parent=1 // pred_region
      _
    $region41: #{encoder_forward.1} parent=1 // pred_fallthru
      _
    // Predicated region
    $region42: #{encoder_forward.1} parent=1 // pred_check
      _
    $region43: #{encoder_forward.1} parent=1 // pred_check_branch
      %48 = sbr.rel (0) target = $region45
    $region44: #{encoder_forward.1} parent=1 // pred_region
      _
    $region45: #{encoder_forward.1} parent=1 // pred_fallthru
      _
    // Predicated region
    $region46: #{encoder_forward.1} parent=1 // pred_check
      _
    $region47: #{encoder_forward.1} parent=1 // pred_check_branch
      %50 = sbr.rel (0) target = $region49
    $region48: #{encoder_forward.1} parent=1 // pred_region
      _
    $region49: #{encoder_forward.1} parent=1 // pred_fallthru
      _
    // Predicated region
    $region50: #{encoder_forward.1} parent=1 // pred_check
      _
    $region51: #{encoder_forward.1} parent=1 // pred_check_branch
      %52 = sbr.rel (0) target = $region53
    $region52: #{encoder_forward.1} parent=1 // pred_region
      _
    $region53: #{encoder_forward.1} parent=1 // pred_fallthru
      _
    // Predicated region
    $region54: #{encoder_forward.1} parent=1 // pred_check
      _
    $region55: #{encoder_forward.1} parent=1 // pred_check_branch
      %54 = sbr.rel (0) target = $region57
    $region56: #{encoder_forward.1} parent=1 // pred_region
      _
    $region57: #{encoder_forward.1} parent=1 // pred_fallthru
      _
    // Predicated region
    $region58: #{encoder_forward.1} parent=1 // pred_check
      _
    $region59: #{encoder_forward.1} parent=1 // pred_check_branch
      %56 = sbr.rel (0) target = $region61
    $region60: #{encoder_forward.1} parent=1 // pred_region
      _
    $region61: #{encoder_forward.1} parent=1 // pred_fallthru
      _
    // Predicated region
    $region62: #{encoder_forward.1} parent=1 // pred_check
      _
    $region63: #{encoder_forward.1} parent=1 // pred_check_branch
      %58 = sbr.rel (0) target = $region65
    $region64: #{encoder_forward.1} parent=1 // pred_region
      _
    $region65: #{encoder_forward.1} parent=1 // pred_fallthru
      _
    // Predicated region
    $region66: #{encoder_forward.1} parent=1 // pred_check
      _
    $region67: #{encoder_forward.1} parent=1 // pred_check_branch
      %60 = sbr.rel (0) target = $region69
    $region68: #{encoder_forward.1} parent=1 // pred_region
      _
    $region69: #{encoder_forward.1} parent=1 // pred_fallthru
      _
    // Predicated region
    $region70: #{encoder_forward.1} parent=1 // pred_check
      _
    $region71: #{encoder_forward.1} parent=1 // pred_check_branch
      %62 = sbr.rel (0) target = $region73
    $region72: #{encoder_forward.1} parent=1 // pred_region
      _
    $region73: #{encoder_forward.1} parent=1 // pred_fallthru
      _
    // Predicated region
    $region74: #{encoder_forward.1} parent=1 // pred_check
      _
    $region75: #{encoder_forward.1} parent=1 // pred_check_branch
      %64 = sbr.rel (0) target = $region77
    $region76: #{encoder_forward.1} parent=1 // pred_region
      _
    $region77: #{encoder_forward.1} parent=1 // pred_fallthru
      _
    // Predicated region
    $region78: #{encoder_forward.1} parent=1 // pred_check
      _
    $region79: #{encoder_forward.1} parent=1 // pred_check_branch
      %66 = sbr.rel (0) target = $region81
    $region80: #{encoder_forward.1} parent=1 // pred_region
      _
    $region81: #{encoder_forward.1} parent=1 // pred_fallthru
      _
    // Predicated region
    $region82: #{encoder_forward.1} parent=1 // pred_check
      _
    $region83: #{encoder_forward.1} parent=1 // pred_check_branch
      %68 = sbr.rel (0) target = $region85
    $region84: #{encoder_forward.1} parent=1 // pred_region
      _
    $region85: #{encoder_forward.1} parent=1 // pred_fallthru
      _
    %v70 = vld [vmem:[%s0] sm:$0xff]
    %v71 = vld [vmem:[%s0 + $0x8] sm:$0xff]
    %v72 = vld [vmem:[%s0 + $0x10] sm:$0xff]
    %v73 = vld [vmem:[%s1] sm:$0xf]
    %v74 = vld [vmem:[%s1 + $0x4] sm:$0xf]
    %v75 = vld [vmem:[%s1 + $0x8] sm:$0xf]
    %v76 = vld [vmem:[%s1 + $0xc] sm:$0xf]
    %v77 = vld [vmem:[%s1 + $0x10] sm:$0xf]
    %v78 = vld [vmem:[%s1 + $0x14] sm:$0xf]
    %v79 = vld [vmem:[%s1 + $0x18] sm:$0xf]
    %v80 = vld [vmem:[%s1 + $0x1c] sm:$0xf]
    %v81 = vld [vmem:[%s1 + $0x20] sm:$0xf]
    %v82 = vld [vmem:[%s1 + $0x24] sm:$0xf]
    %v83 = vld [vmem:[%s1 + $0x28] sm:$0xf]
    %v84 = vld [vmem:[%s1 + $0x2c] sm:$0xf]
    %v85 = vld [vmem:[%s1 + $0x30] sm:$0xf]
    %v86 = vld [vmem:[%s1 + $0x34] sm:$0xf]
    %v87 = vld [vmem:[%s1 + $0x38] sm:$0xf]
    %v88 = vld [vmem:[%s1 + $0x3c] sm:$0xf]
    %v89 = vld [vmem:[%s1 + $0x40] sm:$0xf]
    %v90 = vld [vmem:[%s1 + $0x44] sm:$0xf]
    %v91 = vld [vmem:[%s1 + $0x48] sm:$0xf]
    %v92 = vld [vmem:[%s1 + $0x4c] sm:$0xf]
    %v93 = vld [vmem:[%s1 + $0x50] sm:$0xf]
    %v94 = vld [vmem:[%s1 + $0x54] sm:$0xf]
    %v95 = vld [vmem:[%s1 + $0x58] sm:$0xf]
    %v96 = vld [vmem:[%s1 + $0x5c] sm:$0xf]
    %v97 = vld [vmem:[%s1 + $0x60] sm:$0xf]
    %v98 = vld [vmem:[%s1 + $0x64] sm:$0xf]
    %v99 = vld [vmem:[%s1 + $0x68] sm:$0xf]
    %v100 = vld [vmem:[%s1 + $0x6c] sm:$0xf]
    %v101 = vld [vmem:[%s1 + $0x70] sm:$0xf]
    %v102 = vld [vmem:[%s1 + $0x74] sm:$0xf]
    %v103 = vld [vmem:[%s1 + $0x78] sm:$0xf]
    %v104 = vld [vmem:[%s1 + $0x7c] sm:$0xf]
    %v105 = vld [vmem:[%s1 + $0x80] sm:$0xf]
    %v106 = vld [vmem:[%s1 + $0x84] sm:$0xf]
    %v107 = vld [vmem:[%s1 + $0x88] sm:$0xf]
    %v108 = vld [vmem:[%s1 + $0x8c] sm:$0xf]
    %v109 = vld [vmem:[%s1 + $0x90] sm:$0xf]
    %v110 = vld [vmem:[%s1 + $0x94] sm:$0xf]
    %v111 = vld [vmem:[%s1 + $0x98] sm:$0xf]
    %v112 = vld [vmem:[%s1 + $0x9c] sm:$0xf]
    %v113 = vld [vmem:[%s1 + $0xa0] sm:$0xf]
    %v114 = vld [vmem:[%s1 + $0xa4] sm:$0xf]
    %v115 = vld [vmem:[%s1 + $0xa8] sm:$0xf]
    %v116 = vld [vmem:[%s1 + $0xac] sm:$0xf]
    %v117 = vld [vmem:[%s1 + $0xb0] sm:$0xf]
    %v118 = vld [vmem:[%s1 + $0xb4] sm:$0xf]
    %v119 = vld [vmem:[%s1 + $0xb8] sm:$0xf]
    %v120 = vld [vmem:[%s1 + $0xbc] sm:$0xf]
    %v121 = vld [vmem:[%s1 + $0xc0] sm:$0xf]
    %v122 = vld [vmem:[%s1 + $0xc4] sm:$0xf]
    %v123 = vld [vmem:[%s1 + $0xc8] sm:$0xf]
    %v124 = vld [vmem:[%s1 + $0xcc] sm:$0xf]
    %v125 = vld [vmem:[%s1 + $0xd0] sm:$0xf]
    %v126 = vld [vmem:[%s1 + $0xd4] sm:$0xf]
    %v127 = vld [vmem:[%s1 + $0xd8] sm:$0xf]
    %v128 = vld [vmem:[%s1 + $0xdc] sm:$0xf]
    %v129 = vld [vmem:[%s1 + $0xe0] sm:$0xf]
    %v130 = vld [vmem:[%s1 + $0xe4] sm:$0xf]
    %v131 = vld [vmem:[%s1 + $0xe8] sm:$0xf]
    %v132 = vld [vmem:[%s1 + $0xec] sm:$0xf]
    %v133 = vld [vmem:[%s1 + $0xf0] sm:$0xf]
    %v134 = vld [vmem:[%s1 + $0xf4] sm:$0xf]
    %v135 = vld [vmem:[%s1 + $0xf8] sm:$0xf]
    %v136 = vld [vmem:[%s1 + $0xfc] sm:$0xf]
    %v137 = vld [vmem:[%s1 + $0x100] sm:$0xf]
    %v138 = vld [vmem:[%s1 + $0x104] sm:$0xf]
    %v139 = vld [vmem:[%s1 + $0x108] sm:$0xf]
    %v140 = vld [vmem:[%s1 + $0x10c] sm:$0xf]
    %v141 = vld [vmem:[%s1 + $0x110] sm:$0xf]
    %v142 = vld [vmem:[%s1 + $0x114] sm:$0xf]
    %v143 = vld [vmem:[%s1 + $0x118] sm:$0xf]
    %v144 = vld [vmem:[%s1 + $0x11c] sm:$0xf]
    %v145 = vld [vmem:[%s1 + $0x120] sm:$0xf]
    %v146 = vld [vmem:[%s1 + $0x124] sm:$0xf]
    %v147 = vld [vmem:[%s1 + $0x128] sm:$0xf]
    %v148 = vld [vmem:[%s1 + $0x12c] sm:$0xf]
    %v149 = vld [vmem:[%s1 + $0x130] sm:$0xf]
    %v150 = vld [vmem:[%s1 + $0x134] sm:$0xf]
    %v151 = vld [vmem:[%s1 + $0x138] sm:$0xf]
    %v152 = vld [vmem:[%s1 + $0x13c] sm:$0xf]
    %v153 = vld [vmem:[%s1 + $0x140] sm:$0xf]
    %v154 = vld [vmem:[%s1 + $0x144] sm:$0xf]
    %v155 = vld [vmem:[%s1 + $0x148] sm:$0xf]
    %v156 = vld [vmem:[%s1 + $0x14c] sm:$0xf]
    %v157 = vld [vmem:[%s1 + $0x150] sm:$0xf]
    %v158 = vld [vmem:[%s1 + $0x154] sm:$0xf]
    %v159 = vld [vmem:[%s1 + $0x158] sm:$0xf]
    %v160 = vld [vmem:[%s1 + $0x15c] sm:$0xf]
    %v161 = vld [vmem:[%s1 + $0x160] sm:$0xf]
    %v162 = vld [vmem:[%s1 + $0x164] sm:$0xf]
    %v163 = vld [vmem:[%s1 + $0x168] sm:$0xf]
    %v164 = vld [vmem:[%s1 + $0x16c] sm:$0xf]
    %v165 = vld [vmem:[%s1 + $0x170] sm:$0xf]
    %v166 = vld [vmem:[%s1 + $0x174] sm:$0xf]
    %v167 = vld [vmem:[%s1 + $0x178] sm:$0xf]
    %v168 = vld [vmem:[%s1 + $0x17c] sm:$0xf]
    %v169 = vld [vmem:[%s2] sm:$0x1]
    %v171 = vperm.slane %v169, 0
    %v176 = vunpack.c.l.b16 %v70
    %v177 = vunpack.c.h.b16 %v70
    %v178 = vunpack.c.l.b16 %v71
    %v179 = vunpack.c.h.b16 %v71
    %v180 = vunpack.c.l.b16 %v72
    %v181 = vunpack.c.h.b16 %v72
    %v182 = vpack.c.b16 %v176, %v176
    %v183 = vpack.c.b16 %v177, %v177
    %v184 = vpack.c.b16 %v178, %v178
    %v185 = vpack.c.b16 %v179, %v179
    %v186 = vpack.c.b16 %v180, %v180
    %v187 = vpack.c.b16 %v181, %v181
    %v290 = vunpack.c.l.b16 %v73
    %v291 = vunpack.c.l.b16 %v74
    %v292 = vunpack.c.l.b16 %v75
    %v293 = vunpack.c.l.b16 %v76
    %v294 = vunpack.c.l.b16 %v77
    %v295 = vunpack.c.l.b16 %v78
    %v296 = vunpack.c.l.b16 %v79
    %v297 = vunpack.c.l.b16 %v80
    %v298 = vunpack.c.l.b16 %v81
    %v299 = vunpack.c.l.b16 %v82
    %v300 = vunpack.c.l.b16 %v83
    %v301 = vunpack.c.l.b16 %v84
    %v302 = vunpack.c.l.b16 %v85
    %v303 = vunpack.c.l.b16 %v86
    %v304 = vunpack.c.l.b16 %v87
    %v305 = vunpack.c.l.b16 %v88
    %v306 = vunpack.c.l.b16 %v89
    %v307 = vunpack.c.l.b16 %v90
    %v308 = vunpack.c.l.b16 %v91
    %v309 = vunpack.c.l.b16 %v92
    %v310 = vunpack.c.l.b16 %v93
    %v311 = vunpack.c.l.b16 %v94
    %v312 = vunpack.c.l.b16 %v95
    %v313 = vunpack.c.l.b16 %v96
    %v314 = vunpack.c.l.b16 %v97
    %v315 = vunpack.c.l.b16 %v98
    %v316 = vunpack.c.l.b16 %v99
    %v317 = vunpack.c.l.b16 %v100
    %v318 = vunpack.c.l.b16 %v101
    %v319 = vunpack.c.l.b16 %v102
    %v320 = vunpack.c.l.b16 %v103
    %v321 = vunpack.c.l.b16 %v104
    %v322 = vunpack.c.l.b16 %v105
    %v323 = vunpack.c.l.b16 %v106
    %v324 = vunpack.c.l.b16 %v107
    %v325 = vunpack.c.l.b16 %v108
    %v326 = vunpack.c.l.b16 %v109
    %v327 = vunpack.c.l.b16 %v110
    %v328 = vunpack.c.l.b16 %v111
    %v329 = vunpack.c.l.b16 %v112
    %v330 = vunpack.c.l.b16 %v113
    %v331 = vunpack.c.l.b16 %v114
    %v332 = vunpack.c.l.b16 %v115
    %v333 = vunpack.c.l.b16 %v116
    %v334 = vunpack.c.l.b16 %v117
    %v335 = vunpack.c.l.b16 %v118
    %v336 = vunpack.c.l.b16 %v119
    %v337 = vunpack.c.l.b16 %v120
    %v338 = vunpack.c.l.b16 %v121
    %v339 = vunpack.c.l.b16 %v122
    %v340 = vunpack.c.l.b16 %v123
    %v341 = vunpack.c.l.b16 %v124
    %v342 = vunpack.c.l.b16 %v125
    %v343 = vunpack.c.l.b16 %v126
    %v344 = vunpack.c.l.b16 %v127
    %v345 = vunpack.c.l.b16 %v128
    %v346 = vunpack.c.l.b16 %v129
    %v347 = vunpack.c.l.b16 %v130
    %v348 = vunpack.c.l.b16 %v131
    %v349 = vunpack.c.l.b16 %v132
    %v350 = vunpack.c.l.b16 %v133
    %v351 = vunpack.c.l.b16 %v134
    %v352 = vunpack.c.l.b16 %v135
    %v353 = vunpack.c.l.b16 %v136
    %v354 = vunpack.c.l.b16 %v137
    %v355 = vunpack.c.l.b16 %v138
    %v356 = vunpack.c.l.b16 %v139
    %v357 = vunpack.c.l.b16 %v140
    %v358 = vunpack.c.l.b16 %v141
    %v359 = vunpack.c.l.b16 %v142
    %v360 = vunpack.c.l.b16 %v143
    %v361 = vunpack.c.l.b16 %v144
    %v362 = vunpack.c.l.b16 %v145
    %v363 = vunpack.c.l.b16 %v146
    %v364 = vunpack.c.l.b16 %v147
    %v365 = vunpack.c.l.b16 %v148
    %v366 = vunpack.c.l.b16 %v149
    %v367 = vunpack.c.l.b16 %v150
    %v368 = vunpack.c.l.b16 %v151
    %v369 = vunpack.c.l.b16 %v152
    %v370 = vunpack.c.l.b16 %v153
    %v371 = vunpack.c.l.b16 %v154
    %v372 = vunpack.c.l.b16 %v155
    %v373 = vunpack.c.l.b16 %v156
    %v374 = vunpack.c.l.b16 %v157
    %v375 = vunpack.c.l.b16 %v158
    %v376 = vunpack.c.l.b16 %v159
    %v377 = vunpack.c.l.b16 %v160
    %v378 = vunpack.c.l.b16 %v161
    %v379 = vunpack.c.l.b16 %v162
    %v380 = vunpack.c.l.b16 %v163
    %v381 = vunpack.c.l.b16 %v164
    %v382 = vunpack.c.l.b16 %v165
    %v383 = vunpack.c.l.b16 %v166
    %v384 = vunpack.c.l.b16 %v167
    %v385 = vunpack.c.l.b16 %v168
    %v386 = vpack.c.b16 %v291, %v290
    %v387 = vpack.c.b16 %v293, %v292
    %v388 = vpack.c.b16 %v295, %v294
    %v389 = vpack.c.b16 %v297, %v296
    %v390 = vpack.c.b16 %v299, %v298
    %v391 = vpack.c.b16 %v301, %v300
    %v392 = vpack.c.b16 %v303, %v302
    %v393 = vpack.c.b16 %v305, %v304
    %v394 = vpack.c.b16 %v307, %v306
    %v395 = vpack.c.b16 %v309, %v308
    %v396 = vpack.c.b16 %v311, %v310
    %v397 = vpack.c.b16 %v313, %v312
    %v398 = vpack.c.b16 %v315, %v314
    %v399 = vpack.c.b16 %v317, %v316
    %v400 = vpack.c.b16 %v319, %v318
    %v401 = vpack.c.b16 %v321, %v320
    %v402 = vpack.c.b16 %v323, %v322
    %v403 = vpack.c.b16 %v325, %v324
    %v404 = vpack.c.b16 %v327, %v326
    %v405 = vpack.c.b16 %v329, %v328
    %v406 = vpack.c.b16 %v331, %v330
    %v407 = vpack.c.b16 %v333, %v332
    %v408 = vpack.c.b16 %v335, %v334
    %v409 = vpack.c.b16 %v337, %v336
    %v410 = vpack.c.b16 %v339, %v338
    %v411 = vpack.c.b16 %v341, %v340
    %v412 = vpack.c.b16 %v343, %v342
    %v413 = vpack.c.b16 %v345, %v344
    %v414 = vpack.c.b16 %v347, %v346
    %v415 = vpack.c.b16 %v349, %v348
    %v416 = vpack.c.b16 %v351, %v350
    %v417 = vpack.c.b16 %v353, %v352
    %v418 = vpack.c.b16 %v355, %v354
    %v419 = vpack.c.b16 %v357, %v356
    %v420 = vpack.c.b16 %v359, %v358
    %v421 = vpack.c.b16 %v361, %v360
    %v422 = vpack.c.b16 %v363, %v362
    %v423 = vpack.c.b16 %v365, %v364
    %v424 = vpack.c.b16 %v367, %v366
    %v425 = vpack.c.b16 %v369, %v368
    %v426 = vpack.c.b16 %v371, %v370
    %v427 = vpack.c.b16 %v373, %v372
    %v428 = vpack.c.b16 %v375, %v374
    %v429 = vpack.c.b16 %v377, %v376
    %v430 = vpack.c.b16 %v379, %v378
    %v431 = vpack.c.b16 %v381, %v380
    %v432 = vpack.c.b16 %v383, %v382
    %v433 = vpack.c.b16 %v385, %v384
    %482 = vmatpush.bf16.msra.mxu0 %v393
    %483 = vmatpush.bf16.msra.mxu0 %v392
    %484 = vmatpush.bf16.msra.mxu0 %v391
    %485 = vmatpush.bf16.msra.mxu0 %v390
    %486 = vmatpush.bf16.msra.mxu0 %v389
    %487 = vmatpush.bf16.msra.mxu0 %v388
    %488 = vmatpush.bf16.msra.mxu0 %v387
    %489 = vmatpush.bf16.msra.mxu0 %v386
    %490 = vmatmul.bf16.gmra.mxu0 %v182
    %v491 = vpop.f32.mrf.mxu0
    %v492 = vadd.f32 %v171, %v491
    %v493 = vpop.f32.mrf.mxu0
    %494 = vdwg.mxu0
    %495 = vmatpush.bf16.msra.mxu0 %v401
    %496 = vmatpush.bf16.msra.mxu0 %v400
    %497 = vmatpush.bf16.msra.mxu0 %v399
    %498 = vmatpush.bf16.msra.mxu0 %v398
    %499 = vmatpush.bf16.msra.mxu0 %v397
    %500 = vmatpush.bf16.msra.mxu0 %v396
    %501 = vmatpush.bf16.msra.mxu0 %v395
    %502 = vmatpush.bf16.msra.mxu0 %v394
    %503 = vmatmul.bf16.gmra.mxu0 %v183
    %v504 = vpop.f32.mrf.mxu0
    %v505 = vadd.f32 %v492, %v504
    %v506 = vpop.f32.mrf.mxu0
    %507 = vdwg.mxu0
    %508 = vmatpush.bf16.msra.mxu0 %v409
    %509 = vmatpush.bf16.msra.mxu0 %v408
    %510 = vmatpush.bf16.msra.mxu0 %v407
    %511 = vmatpush.bf16.msra.mxu0 %v406
    %512 = vmatpush.bf16.msra.mxu0 %v405
    %513 = vmatpush.bf16.msra.mxu0 %v404
    %514 = vmatpush.bf16.msra.mxu0 %v403
    %515 = vmatpush.bf16.msra.mxu0 %v402
    %516 = vmatmul.bf16.gmra.mxu0 %v184
    %v517 = vpop.f32.mrf.mxu0
    %v518 = vadd.f32 %v505, %v517
    %v519 = vpop.f32.mrf.mxu0
    %520 = vdwg.mxu0
    %521 = vmatpush.bf16.msra.mxu0 %v417
    %522 = vmatpush.bf16.msra.mxu0 %v416
    %523 = vmatpush.bf16.msra.mxu0 %v415
    %524 = vmatpush.bf16.msra.mxu0 %v414
    %525 = vmatpush.bf16.msra.mxu0 %v413
    %526 = vmatpush.bf16.msra.mxu0 %v412
    %527 = vmatpush.bf16.msra.mxu0 %v411
    %528 = vmatpush.bf16.msra.mxu0 %v410
    %529 = vmatmul.bf16.gmra.mxu0 %v185
    %v530 = vpop.f32.mrf.mxu0
    %v531 = vadd.f32 %v518, %v530
    %v532 = vpop.f32.mrf.mxu0
    %533 = vdwg.mxu0
    %534 = vmatpush.bf16.msra.mxu0 %v425
    %535 = vmatpush.bf16.msra.mxu0 %v424
    %536 = vmatpush.bf16.msra.mxu0 %v423
    %537 = vmatpush.bf16.msra.mxu0 %v422
    %538 = vmatpush.bf16.msra.mxu0 %v421
    %539 = vmatpush.bf16.msra.mxu0 %v420
    %540 = vmatpush.bf16.msra.mxu0 %v419
    %541 = vmatpush.bf16.msra.mxu0 %v418
    %542 = vmatmul.bf16.gmra.mxu0 %v186
    %v543 = vpop.f32.mrf.mxu0
    %v544 = vadd.f32 %v531, %v543
    %v545 = vpop.f32.mrf.mxu0
    %546 = vdwg.mxu0
    %547 = vmatpush.bf16.msra.mxu0 %v433
    %548 = vmatpush.bf16.msra.mxu0 %v432
    %549 = vmatpush.bf16.msra.mxu0 %v431
    %550 = vmatpush.bf16.msra.mxu0 %v430
    %551 = vmatpush.bf16.msra.mxu0 %v429
    %552 = vmatpush.bf16.msra.mxu0 %v428
    %553 = vmatpush.bf16.msra.mxu0 %v427
    %554 = vmatpush.bf16.msra.mxu0 %v426
    %555 = vmatmul.bf16.gmra.mxu0 %v187
    %v556 = vpop.f32.mrf.mxu0
    %v557 = vadd.f32 %v544, %v556
    %v558 = vpop.f32.mrf.mxu0
    %559 = vdwg.mxu0
    %v560 = vld [vmem:[%s3] sm:$0x1]
    %v561 = vld [vmem:[%s4] sm:$0x1f]
    %v563 = vrot.slane %v557, 7
    %vm565 = vcmask 1040384
    %v566 = vsel %vm565, %v560, %v563
    %v567 = vadd.f32 %v566, %v561
    %v568 = vrot.slane %v557, 3
    %v570 = vsel %vm565, %v560, %v568
    %v571 = vadd.f32 %v570, %v561
    %v573 = vrot.slane %v571, 3
    %vm575 = vcmask 1044480
    %v576 = vsel %vm575, %v567, %v573
    %v577 = vld [vmem:[%s5] sm:$0x1]
    %v578 = vld [vmem:[%s6] sm:$0x1]
    %vm579 = vcmask 523264
    %v580 = vsel %vm579, %v576, 0.0
    %581 = vadd.xlane.f32.xlu0 %v580
    %v582 = vpop.xlane.xlu0 %581
    %vm583 = vcmask 517120
    %v584 = vsel %vm583, %v573, 0.0
    %585 = vadd.xlane.f32.xlu0 %v584
    %v586 = vpop.xlane.xlu0 %585
    %v587 = vrcp.pop 64.0
    %v588 = vmul.f32 64.0, %v587
    %v589 = vsub.f32 1.0, %v588
    %v590 = vmul.f32 %v587, %v589
    %v591 = vadd.f32 %v587, %v590
    %vm592 = vweird.f32 %v587
    %v593 = vsel %vm592, %v587, %v591
    %v594 = vmul.f32 %v582, %v593
    %v595 = vmul.f32 %v586, %v593
    %v596 = vsub.f32 %v576, %v594
    %v597 = vsub.f32 %v573, %v595
    %v598 = vmul.f32 %v596, %v596
    %v599 = vmul.f32 %v597, %v597
    %v600 = vsel %vm579, %v598, 0.0
    %601 = vadd.xlane.f32.xlu0 %v600
    %v602 = vpop.xlane.xlu0 %601
    %v603 = vsel %vm583, %v599, 0.0
    %604 = vadd.xlane.f32.xlu0 %v603
    %v605 = vpop.xlane.xlu0 %604
    %v606 = vmul.f32 %v602, %v593
    %v607 = vmul.f32 %v605, %v593
    %v608 = vadd.f32 %v606, 1e-06
    %v609 = vadd.f32 %v607, 1e-06
    %v610 = vrsqrt.pop %v608
    %v611 = vmul.f32 %v610, %v608
    %v612 = vmul.f32 %v611, %v610
    %v613 = vmul.f32 0.5, %v612
    %v614 = vsub.f32 1.5, %v613
    %v615 = vmul.f32 %v610, %v614
    %vm616 = vweird.f32 %v608
    %vm617 = vweird.f32 %v610
    %vm618 = vmor %vm616, %vm617
    %v619 = vsel %vm618, %v610, %v615
    %v620 = vrsqrt.pop %v609
    %v621 = vmul.f32 %v620, %v609
    %v622 = vmul.f32 %v621, %v620
    %v623 = vmul.f32 0.5, %v622
    %v624 = vsub.f32 1.5, %v623
    %v625 = vmul.f32 %v620, %v624
    %vm626 = vweird.f32 %v609
    %vm627 = vweird.f32 %v620
    %vm628 = vmor %vm626, %vm627
    %v629 = vsel %vm628, %v620, %v625
    %v630 = vmul.f32 %v596, %v619
    %v631 = vmul.f32 %v597, %v629
    %v633 = vperm.slane %v577, 0
    %v635 = vmul.f32 %v630, %v633
    %v636 = vmul.f32 %v631, %v633
    %v638 = vperm.slane %v578, 0
    %v640 = vadd.f32 %v635, %v638
    %v641 = vadd.f32 %v636, %v638
    %v642 = vld [vmem:[%s7] sm:$0xff]
    %v643 = vld [vmem:[%s7 + $0x8] sm:$0xff]
    %v644 = vld [vmem:[%s7 + $0x10] sm:$0xff]
    %v645 = vld [vmem:[%s7 + $0x18] sm:$0xff]
    %v646 = vld [vmem:[%s7 + $0x20] sm:$0xff]
    %v647 = vld [vmem:[%s7 + $0x28] sm:$0xff]
    %v648 = vld [vmem:[%s7 + $0x30] sm:$0xff]
    %v649 = vld [vmem:[%s7 + $0x38] sm:$0xff]
    %v650 = vpack.c.bf16 %v641, %v640
    %v651 = vld [vmem:[%s8] sm:$0x3]
    %v653 = vperm.slane %v651, 0
    %v654 = vperm.slane %v651, 1
    %v665 = vunpack.c.l.b16 %v642
    %v666 = vunpack.c.h.b16 %v642
    %v667 = vunpack.c.l.b16 %v643
    %v668 = vunpack.c.h.b16 %v643
    %v669 = vunpack.c.l.b16 %v644
    %v670 = vunpack.c.h.b16 %v644
    %v671 = vunpack.c.l.b16 %v645
    %v672 = vunpack.c.h.b16 %v645
    %v673 = vunpack.c.l.b16 %v646
    %v674 = vunpack.c.h.b16 %v646
    %v675 = vunpack.c.l.b16 %v647
    %v676 = vunpack.c.h.b16 %v647
    %v677 = vunpack.c.l.b16 %v648
    %v678 = vunpack.c.h.b16 %v648
    %v679 = vunpack.c.l.b16 %v649
    %v680 = vunpack.c.h.b16 %v649
    %v681 = vpack.c.b16 %v667, %v665
    %v682 = vpack.c.b16 %v668, %v666
    %v683 = vpack.c.b16 %v671, %v669
    %v684 = vpack.c.b16 %v672, %v670
    %v685 = vpack.c.b16 %v675, %v673
    %v686 = vpack.c.b16 %v676, %v674
    %v687 = vpack.c.b16 %v679, %v677
    %v688 = vpack.c.b16 %v680, %v678
    %v698 = vsel %vm579, %v650, 0
    %700 = vmatpush.bf16.msra.mxu0 0
    %701 = vmatpush.bf16.msra.mxu0 0
    %702 = vmatpush.bf16.msra.mxu0 0
    %703 = vmatpush.bf16.msra.mxu0 0
    %704 = vmatpush.bf16.msra.mxu0 %v687
    %705 = vmatpush.bf16.msra.mxu0 %v685
    %706 = vmatpush.bf16.msra.mxu0 %v683
    %707 = vmatpush.bf16.msra.mxu0 %v681
    %708 = vmatmul.bf16.gmra.mxu0 %v698
    %v709 = vpop.f32.mrf.mxu0
    %v710 = vadd.f32 %v653, %v709
    %v711 = vpop.f32.mrf.mxu0
    %v712 = vadd.f32 %v653, %v711
    %713 = vdwg.mxu0
    %714 = vmatpush.bf16.msra.mxu0 0
    %715 = vmatpush.bf16.msra.mxu0 0
    %716 = vmatpush.bf16.msra.mxu0 0
    %717 = vmatpush.bf16.msra.mxu0 0
    %718 = vmatpush.bf16.msra.mxu0 %v688
    %719 = vmatpush.bf16.msra.mxu0 %v686
    %720 = vmatpush.bf16.msra.mxu0 %v684
    %721 = vmatpush.bf16.msra.mxu0 %v682
    %722 = vmatmul.bf16.gmra.mxu0 %v698
    %v723 = vpop.f32.mrf.mxu0
    %v724 = vadd.f32 %v654, %v723
    %v725 = vpop.f32.mrf.mxu0
    %v726 = vadd.f32 %v654, %v725
    %727 = vdwg.mxu0
    %v728 = vpack.c.bf16 %v710, %v710
    %v729 = vpack.c.bf16 %v712, %v712
    %v730 = vpack.c.bf16 %v724, %v724
    %v731 = vpack.c.bf16 %v726, %v726
    %v733 = vunpack.c.l.b16 %v728
    %v734 = vpack.c.b16 %v733, %v733
    %735 = vrot.lane.b32.xlu0 %v734, 64
    %v736 = vpop.permute.xlu0 %735
    %vm737 = vcmask 130048
    %v739 = vsel %vm737, %v728, 0
    %v742 = vsel %vm737, %v736, 0
    %744 = vmatpush.bf16.xpose.msra.mxu0 0
    %745 = vmatpush.bf16.xpose.msra.mxu0 0
    %746 = vmatpush.bf16.xpose.msra.mxu0 0
    %747 = vmatpush.bf16.xpose.msra.mxu0 0
    %748 = vmatpush.bf16.xpose.msra.mxu0 0
    %749 = vmatpush.bf16.xpose.msra.mxu0 0
    %750 = vmatpush.bf16.xpose.msra.mxu0 0
    %751 = vmatpush.bf16.xpose.msra.mxu0 %v742
    %752 = vmatmul.bf16.gmra.mxu0 %v739
    %v753 = vpop.f32.mrf.mxu0
    %v754 = vadd.f32 0.0, %v753
    %v755 = vpop.f32.mrf.mxu0
    %756 = vdwg.mxu0
    %vm757 = vcmask 36864
    %v758 = vsel %vm757, %v754, -inf
    %759 = vmax.xlane.f32.xlu0 %v758
    %v760 = vpop.xlane.xlu0 %759
    %v761 = vsub.f32 %v754, %v760
    %v762 = vmul.f32 %v761, 1.442695
    %v763 = vpow.pop %v762
    %v764 = vsel %vm757, %v763, 0.0
    %765 = vadd.xlane.f32.xlu0 %v764
    %v766 = vpop.xlane.xlu0 %765
    %v767 = vrcp.pop %v766
    %v768 = vmul.f32 %v763, %v767
    %v769 = vpack.c.bf16 %v768, %v768
    %vm770 = vcmask 39936
    %v772 = vsel %vm770, %v769, 0
    %vm774 = vcmask 1041408
    %vm775 = vcmask 1042432
    %v776 = vsel %vm774, 4294967295, 65535
    %v777 = vsel %vm775, %v776, 0
    %v779 = vand.u32 %v730, %v777
    %781 = vmatpush.bf16.msra.mxu0 0
    %782 = vmatpush.bf16.msra.mxu0 0
    %783 = vmatpush.bf16.msra.mxu0 0
    %784 = vmatpush.bf16.msra.mxu0 0
    %785 = vmatpush.bf16.msra.mxu0 0
    %786 = vmatpush.bf16.msra.mxu0 0
    %787 = vmatpush.bf16.msra.mxu0 0
    %788 = vmatpush.bf16.msra.mxu0 %v779
    %789 = vmatmul.bf16.gmra.mxu0 %v772
    %v790 = vpop.f32.mrf.mxu0
    %v791 = vadd.f32 0.0, %v790
    %v792 = vpop.f32.mrf.mxu0
    %793 = vdwg.mxu0
    %794 = vrot.lane.b32.xlu0 %v734, 112
    %v795 = vpop.permute.xlu0 %794
    %796 = vrot.lane.b32.xlu0 %v734, 48
    %v797 = vpop.permute.xlu0 %796
    %v799 = vsel %vm737, %v795, 0
    %v802 = vsel %vm737, %v797, 0
    %804 = vmatpush.bf16.xpose.msra.mxu0 0
    %805 = vmatpush.bf16.xpose.msra.mxu0 0
    %806 = vmatpush.bf16.xpose.msra.mxu0 0
    %807 = vmatpush.bf16.xpose.msra.mxu0 0
    %808 = vmatpush.bf16.xpose.msra.mxu0 0
    %809 = vmatpush.bf16.xpose.msra.mxu0 0
    %810 = vmatpush.bf16.xpose.msra.mxu0 0
    %811 = vmatpush.bf16.xpose.msra.mxu0 %v802
    %812 = vmatmul.bf16.gmra.mxu0 %v799
    %v813 = vpop.f32.mrf.mxu0
    %v814 = vadd.f32 0.0, %v813
    %v815 = vpop.f32.mrf.mxu0
    %816 = vdwg.mxu0
    %v817 = vsel %vm757, %v814, -inf
    %818 = vmax.xlane.f32.xlu0 %v817
    %v819 = vpop.xlane.xlu0 %818
    %v820 = vsub.f32 %v814, %v819
    %v821 = vmul.f32 %v820, 1.442695
    %v822 = vpow.pop %v821
    %v823 = vsel %vm757, %v822, 0.0
    %824 = vadd.xlane.f32.xlu0 %v823
    %v825 = vpop.xlane.xlu0 %824
    %v826 = vrcp.pop %v825
    %v827 = vmul.f32 %v822, %v826
    %v828 = vpack.c.bf16 %v827, %v827
    %v830 = vunpack.c.l.b16 %v730
    %v831 = vpack.c.b16 %v830, %v830
    %832 = vrot.lane.b32.xlu0 %v831, 112
    %v833 = vpop.permute.xlu0 %832
    %v835 = vsel %vm770, %v828, 0
    %v838 = vand.u32 %v833, %v777
    %840 = vmatpush.bf16.msra.mxu0 0
    %841 = vmatpush.bf16.msra.mxu0 0
    %842 = vmatpush.bf16.msra.mxu0 0
    %843 = vmatpush.bf16.msra.mxu0 0
    %844 = vmatpush.bf16.msra.mxu0 0
    %845 = vmatpush.bf16.msra.mxu0 0
    %846 = vmatpush.bf16.msra.mxu0 0
    %847 = vmatpush.bf16.msra.mxu0 %v838
    %848 = vmatmul.bf16.gmra.mxu0 %v835
    %v849 = vpop.f32.mrf.mxu0
    %v850 = vadd.f32 0.0, %v849
    %v851 = vpop.f32.mrf.mxu0
    %852 = vdwg.mxu0
    %853 = vrot.lane.b32.xlu0 %v734, 96
    %v854 = vpop.permute.xlu0 %853
    %855 = vrot.lane.b32.xlu0 %v734, 32
    %v856 = vpop.permute.xlu0 %855
    %v858 = vsel %vm737, %v854, 0
    %v861 = vsel %vm737, %v856, 0
    %863 = vmatpush.bf16.xpose.msra.mxu0 0
    %864 = vmatpush.bf16.xpose.msra.mxu0 0
    %865 = vmatpush.bf16.xpose.msra.mxu0 0
    %866 = vmatpush.bf16.xpose.msra.mxu0 0
    %867 = vmatpush.bf16.xpose.msra.mxu0 0
    %868 = vmatpush.bf16.xpose.msra.mxu0 0
    %869 = vmatpush.bf16.xpose.msra.mxu0 0
    %870 = vmatpush.bf16.xpose.msra.mxu0 %v861
    %871 = vmatmul.bf16.gmra.mxu0 %v858
    %v872 = vpop.f32.mrf.mxu0
    %v873 = vadd.f32 0.0, %v872
    %v874 = vpop.f32.mrf.mxu0
    %875 = vdwg.mxu0
    %v876 = vsel %vm757, %v873, -inf
    %877 = vmax.xlane.f32.xlu0 %v876
    %v878 = vpop.xlane.xlu0 %877
    %v879 = vsub.f32 %v873, %v878
    %v880 = vmul.f32 %v879, 1.442695
    %v881 = vpow.pop %v880
    %v882 = vsel %vm757, %v881, 0.0
    %883 = vadd.xlane.f32.xlu0 %v882
    %v884 = vpop.xlane.xlu0 %883
    %v885 = vrcp.pop %v884
    %v886 = vmul.f32 %v881, %v885
    %v887 = vpack.c.bf16 %v886, %v886
    %888 = vrot.lane.b32.xlu0 %v831, 96
    %v889 = vpop.permute.xlu0 %888
    %v891 = vsel %vm770, %v887, 0
    %v894 = vand.u32 %v889, %v777
    %896 = vmatpush.bf16.msra.mxu0 0
    %897 = vmatpush.bf16.msra.mxu0 0
    %898 = vmatpush.bf16.msra.mxu0 0
    %899 = vmatpush.bf16.msra.mxu0 0
    %900 = vmatpush.bf16.msra.mxu0 0
    %901 = vmatpush.bf16.msra.mxu0 0
    %902 = vmatpush.bf16.msra.mxu0 0
    %903 = vmatpush.bf16.msra.mxu0 %v894
    %904 = vmatmul.bf16.gmra.mxu0 %v891
    %v905 = vpop.f32.mrf.mxu0
    %v906 = vadd.f32 0.0, %v905
    %v907 = vpop.f32.mrf.mxu0
    %908 = vdwg.mxu0
    %909 = vrot.lane.b32.xlu0 %v734, 80
    %v910 = vpop.permute.xlu0 %909
    %911 = vrot.lane.b32.xlu0 %v734, 16
    %v912 = vpop.permute.xlu0 %911
    %v914 = vsel %vm737, %v910, 0
    %v917 = vsel %vm737, %v912, 0
    %919 = vmatpush.bf16.xpose.msra.mxu0 0
    %920 = vmatpush.bf16.xpose.msra.mxu0 0
    %921 = vmatpush.bf16.xpose.msra.mxu0 0
    %922 = vmatpush.bf16.xpose.msra.mxu0 0
    %923 = vmatpush.bf16.xpose.msra.mxu0 0
    %924 = vmatpush.bf16.xpose.msra.mxu0 0
    %925 = vmatpush.bf16.xpose.msra.mxu0 0
    %926 = vmatpush.bf16.xpose.msra.mxu0 %v917
    %927 = vmatmul.bf16.gmra.mxu0 %v914
    %v928 = vpop.f32.mrf.mxu0
    %v929 = vadd.f32 0.0, %v928
    %v930 = vpop.f32.mrf.mxu0
    %931 = vdwg.mxu0
    %v932 = vsel %vm757, %v929, -inf
    %933 = vmax.xlane.f32.xlu0 %v932
    %v934 = vpop.xlane.xlu0 %933
    %v935 = vsub.f32 %v929, %v934
    %v936 = vmul.f32 %v935, 1.442695
    %v937 = vpow.pop %v936
    %v938 = vsel %vm757, %v937, 0.0
    %939 = vadd.xlane.f32.xlu0 %v938
    %v940 = vpop.xlane.xlu0 %939
    %v941 = vrcp.pop %v940
    %v942 = vmul.f32 %v937, %v941
    %v943 = vpack.c.bf16 %v942, %v942
    %944 = vrot.lane.b32.xlu0 %v831, 80
    %v945 = vpop.permute.xlu0 %944
    %v947 = vsel %vm770, %v943, 0
    %v950 = vand.u32 %v945, %v777
    %952 = vmatpush.bf16.msra.mxu0 0
    %953 = vmatpush.bf16.msra.mxu0 0
    %954 = vmatpush.bf16.msra.mxu0 0
    %955 = vmatpush.bf16.msra.mxu0 0
    %956 = vmatpush.bf16.msra.mxu0 0
    %957 = vmatpush.bf16.msra.mxu0 0
    %958 = vmatpush.bf16.msra.mxu0 0
    %959 = vmatpush.bf16.msra.mxu0 %v950
    %960 = vmatmul.bf16.gmra.mxu0 %v947
    %v961 = vpop.f32.mrf.mxu0
    %v962 = vadd.f32 0.0, %v961
    %v963 = vpop.f32.mrf.mxu0
    %964 = vdwg.mxu0
    %966 = vrot.lane.b32.xlu0 %v850, 16
    %v967 = vpop.permute.xlu0 %966
    %970 = vrot.lane.b32.xlu0 %v906, 32
    %v971 = vpop.permute.xlu0 %970
    %974 = vrot.lane.b32.xlu0 %v962, 48
    %v975 = vpop.permute.xlu0 %974
    %v977 = vsel %vm737, %v791, %v967
    %vm978 = vcmask 261120
    %v979 = vsel %vm978, %v977, %v971
    %vm980 = vcmask 392192
    %v981 = vsel %vm980, %v979, %v975
    %v983 = vunpack.c.l.b16 %v729
    %v984 = vpack.c.b16 %v983, %v733
    %v986 = vshrl.u32 %v984, 16
    %v988 = vrot.slane %v986, 2
    %v989 = vshll.u32 %v984, 16
    %v991 = vrot.slane %v989, 3
    %v992 = vor.u32 %v988, %v991
    %993 = vrot.lane.b32.xlu0 %v992, 64
    %v994 = vpop.permute.xlu0 %993
    %v996 = vsel %vm737, %v992, 0
    %v999 = vsel %vm737, %v994, 0
    %1001 = vmatpush.bf16.xpose.msra.mxu0 0
    %1002 = vmatpush.bf16.xpose.msra.mxu0 0
    %1003 = vmatpush.bf16.xpose.msra.mxu0 0
    %1004 = vmatpush.bf16.xpose.msra.mxu0 0
    %1005 = vmatpush.bf16.xpose.msra.mxu0 0
    %1006 = vmatpush.bf16.xpose.msra.mxu0 0
    %1007 = vmatpush.bf16.xpose.msra.mxu0 0
    %1008 = vmatpush.bf16.xpose.msra.mxu0 %v999
    %1009 = vmatmul.bf16.gmra.mxu0 %v996
    %v1010 = vpop.f32.mrf.mxu0
    %v1011 = vadd.f32 0.0, %v1010
    %v1012 = vpop.f32.mrf.mxu0
    %1013 = vdwg.mxu0
    %v1014 = vsel %vm757, %v1011, -inf
    %1015 = vmax.xlane.f32.xlu0 %v1014
    %v1016 = vpop.xlane.xlu0 %1015
    %v1017 = vsub.f32 %v1011, %v1016
    %v1018 = vmul.f32 %v1017, 1.442695
    %v1019 = vpow.pop %v1018
    %v1020 = vsel %vm757, %v1019, 0.0
    %1021 = vadd.xlane.f32.xlu0 %v1020
    %v1022 = vpop.xlane.xlu0 %1021
    %v1023 = vrcp.pop %v1022
    %v1024 = vmul.f32 %v1019, %v1023
    %v1025 = vpack.c.bf16 %v1024, %v1024
    %v1027 = vunpack.c.l.b16 %v731
    %v1028 = vpack.c.b16 %v1027, %v830
    %v1030 = vshrl.u32 %v1028, 16
    %v1032 = vrot.slane %v1030, 2
    %v1033 = vshll.u32 %v1028, 16
    %v1035 = vrot.slane %v1033, 3
    %v1036 = vor.u32 %v1032, %v1035
    %v1038 = vsel %vm770, %v1025, 0
    %v1041 = vand.u32 %v1036, %v777
    %1043 = vmatpush.bf16.msra.mxu0 0
    %1044 = vmatpush.bf16.msra.mxu0 0
    %1045 = vmatpush.bf16.msra.mxu0 0
    %1046 = vmatpush.bf16.msra.mxu0 0
    %1047 = vmatpush.bf16.msra.mxu0 0
    %1048 = vmatpush.bf16.msra.mxu0 0
    %1049 = vmatpush.bf16.msra.mxu0 0
    %1050 = vmatpush.bf16.msra.mxu0 %v1041
    %1051 = vmatmul.bf16.gmra.mxu0 %v1038
    %v1052 = vpop.f32.mrf.mxu0
    %v1053 = vadd.f32 0.0, %v1052
    %v1054 = vpop.f32.mrf.mxu0
    %1055 = vdwg.mxu0
    %1056 = vrot.lane.b32.xlu0 %v992, 112
    %v1057 = vpop.permute.xlu0 %1056
    %1058 = vrot.lane.b32.xlu0 %v992, 48
    %v1059 = vpop.permute.xlu0 %1058
    %v1061 = vsel %vm737, %v1057, 0
    %v1064 = vsel %vm737, %v1059, 0
    %1066 = vmatpush.bf16.xpose.msra.mxu0 0
    %1067 = vmatpush.bf16.xpose.msra.mxu0 0
    %1068 = vmatpush.bf16.xpose.msra.mxu0 0
    %1069 = vmatpush.bf16.xpose.msra.mxu0 0
    %1070 = vmatpush.bf16.xpose.msra.mxu0 0
    %1071 = vmatpush.bf16.xpose.msra.mxu0 0
    %1072 = vmatpush.bf16.xpose.msra.mxu0 0
    %1073 = vmatpush.bf16.xpose.msra.mxu0 %v1064
    %1074 = vmatmul.bf16.gmra.mxu0 %v1061
    %v1075 = vpop.f32.mrf.mxu0
    %v1076 = vadd.f32 0.0, %v1075
    %v1077 = vpop.f32.mrf.mxu0
    %1078 = vdwg.mxu0
    %v1079 = vsel %vm757, %v1076, -inf
    %1080 = vmax.xlane.f32.xlu0 %v1079
    %v1081 = vpop.xlane.xlu0 %1080
    %v1082 = vsub.f32 %v1076, %v1081
    %v1083 = vmul.f32 %v1082, 1.442695
    %v1084 = vpow.pop %v1083
    %v1085 = vsel %vm757, %v1084, 0.0
    %1086 = vadd.xlane.f32.xlu0 %v1085
    %v1087 = vpop.xlane.xlu0 %1086
    %v1088 = vrcp.pop %v1087
    %v1089 = vmul.f32 %v1084, %v1088
    %v1090 = vpack.c.bf16 %v1089, %v1089
    %1091 = vrot.lane.b32.xlu0 %v1036, 112
    %v1092 = vpop.permute.xlu0 %1091
    %v1094 = vsel %vm770, %v1090, 0
    %v1097 = vand.u32 %v1092, %v777
    %1099 = vmatpush.bf16.msra.mxu0 0
    %1100 = vmatpush.bf16.msra.mxu0 0
    %1101 = vmatpush.bf16.msra.mxu0 0
    %1102 = vmatpush.bf16.msra.mxu0 0
    %1103 = vmatpush.bf16.msra.mxu0 0
    %1104 = vmatpush.bf16.msra.mxu0 0
    %1105 = vmatpush.bf16.msra.mxu0 0
    %1106 = vmatpush.bf16.msra.mxu0 %v1097
    %1107 = vmatmul.bf16.gmra.mxu0 %v1094
    %v1108 = vpop.f32.mrf.mxu0
    %v1109 = vadd.f32 0.0, %v1108
    %v1110 = vpop.f32.mrf.mxu0
    %1111 = vdwg.mxu0
    %1112 = vrot.lane.b32.xlu0 %v992, 96
    %v1113 = vpop.permute.xlu0 %1112
    %1114 = vrot.lane.b32.xlu0 %v992, 32
    %v1115 = vpop.permute.xlu0 %1114
    %v1117 = vsel %vm737, %v1113, 0
    %v1120 = vsel %vm737, %v1115, 0
    %1122 = vmatpush.bf16.xpose.msra.mxu0 0
    %1123 = vmatpush.bf16.xpose.msra.mxu0 0
    %1124 = vmatpush.bf16.xpose.msra.mxu0 0
    %1125 = vmatpush.bf16.xpose.msra.mxu0 0
    %1126 = vmatpush.bf16.xpose.msra.mxu0 0
    %1127 = vmatpush.bf16.xpose.msra.mxu0 0
    %1128 = vmatpush.bf16.xpose.msra.mxu0 0
    %1129 = vmatpush.bf16.xpose.msra.mxu0 %v1120
    %1130 = vmatmul.bf16.gmra.mxu0 %v1117
    %v1131 = vpop.f32.mrf.mxu0
    %v1132 = vadd.f32 0.0, %v1131
    %v1133 = vpop.f32.mrf.mxu0
    %1134 = vdwg.mxu0
    %v1135 = vsel %vm757, %v1132, -inf
    %1136 = vmax.xlane.f32.xlu0 %v1135
    %v1137 = vpop.xlane.xlu0 %1136
    %v1138 = vsub.f32 %v1132, %v1137
    %v1139 = vmul.f32 %v1138, 1.442695
    %v1140 = vpow.pop %v1139
    %v1141 = vsel %vm757, %v1140, 0.0
    %1142 = vadd.xlane.f32.xlu0 %v1141
    %v1143 = vpop.xlane.xlu0 %1142
    %v1144 = vrcp.pop %v1143
    %v1145 = vmul.f32 %v1140, %v1144
    %v1146 = vpack.c.bf16 %v1145, %v1145
    %1147 = vrot.lane.b32.xlu0 %v1036, 96
    %v1148 = vpop.permute.xlu0 %1147
    %v1150 = vsel %vm770, %v1146, 0
    %v1153 = vand.u32 %v1148, %v777
    %1155 = vmatpush.bf16.msra.mxu0 0
    %1156 = vmatpush.bf16.msra.mxu0 0
    %1157 = vmatpush.bf16.msra.mxu0 0
    %1158 = vmatpush.bf16.msra.mxu0 0
    %1159 = vmatpush.bf16.msra.mxu0 0
    %1160 = vmatpush.bf16.msra.mxu0 0
    %1161 = vmatpush.bf16.msra.mxu0 0
    %1162 = vmatpush.bf16.msra.mxu0 %v1153
    %1163 = vmatmul.bf16.gmra.mxu0 %v1150
    %v1164 = vpop.f32.mrf.mxu0
    %v1165 = vadd.f32 0.0, %v1164
    %v1166 = vpop.f32.mrf.mxu0
    %1167 = vdwg.mxu0
    %1168 = vrot.lane.b32.xlu0 %v992, 80
    %v1169 = vpop.permute.xlu0 %1168
    %1170 = vrot.lane.b32.xlu0 %v992, 16
    %v1171 = vpop.permute.xlu0 %1170
    %v1173 = vsel %vm737, %v1169, 0
    %v1176 = vsel %vm737, %v1171, 0
    %1178 = vmatpush.bf16.xpose.msra.mxu0 0
    %1179 = vmatpush.bf16.xpose.msra.mxu0 0
    %1180 = vmatpush.bf16.xpose.msra.mxu0 0
    %1181 = vmatpush.bf16.xpose.msra.mxu0 0
    %1182 = vmatpush.bf16.xpose.msra.mxu0 0
    %1183 = vmatpush.bf16.xpose.msra.mxu0 0
    %1184 = vmatpush.bf16.xpose.msra.mxu0 0
    %1185 = vmatpush.bf16.xpose.msra.mxu0 %v1176
    %1186 = vmatmul.bf16.gmra.mxu0 %v1173
    %v1187 = vpop.f32.mrf.mxu0
    %v1188 = vadd.f32 0.0, %v1187
    %v1189 = vpop.f32.mrf.mxu0
    %1190 = vdwg.mxu0
    %v1191 = vsel %vm757, %v1188, -inf
    %1192 = vmax.xlane.f32.xlu0 %v1191
    %v1193 = vpop.xlane.xlu0 %1192
    %v1194 = vsub.f32 %v1188, %v1193
    %v1195 = vmul.f32 %v1194, 1.442695
    %v1196 = vpow.pop %v1195
    %v1197 = vsel %vm757, %v1196, 0.0
    %1198 = vadd.xlane.f32.xlu0 %v1197
    %v1199 = vpop.xlane.xlu0 %1198
    %v1200 = vrcp.pop %v1199
    %v1201 = vmul.f32 %v1196, %v1200
    %v1202 = vpack.c.bf16 %v1201, %v1201
    %1203 = vrot.lane.b32.xlu0 %v1036, 80
    %v1204 = vpop.permute.xlu0 %1203
    %v1206 = vsel %vm770, %v1202, 0
    %v1209 = vand.u32 %v1204, %v777
    %1211 = vmatpush.bf16.msra.mxu0 0
    %1212 = vmatpush.bf16.msra.mxu0 0
    %1213 = vmatpush.bf16.msra.mxu0 0
    %1214 = vmatpush.bf16.msra.mxu0 0
    %1215 = vmatpush.bf16.msra.mxu0 0
    %1216 = vmatpush.bf16.msra.mxu0 0
    %1217 = vmatpush.bf16.msra.mxu0 0
    %1218 = vmatpush.bf16.msra.mxu0 %v1209
    %1219 = vmatmul.bf16.gmra.mxu0 %v1206
    %v1220 = vpop.f32.mrf.mxu0
    %v1221 = vadd.f32 0.0, %v1220
    %v1222 = vpop.f32.mrf.mxu0
    %1223 = vdwg.mxu0
    %1225 = vrot.lane.b32.xlu0 %v1109, 16
    %v1226 = vpop.permute.xlu0 %1225
    %1229 = vrot.lane.b32.xlu0 %v1165, 32
    %v1230 = vpop.permute.xlu0 %1229
    %1233 = vrot.lane.b32.xlu0 %v1221, 48
    %v1234 = vpop.permute.xlu0 %1233
    %v1236 = vsel %vm737, %v1053, %v1226
    %v1237 = vsel %vm978, %v1236, %v1230
    %v1238 = vsel %vm980, %v1237, %v1234
    %v1240 = vrot.slane %v1238, 3
    %v1242 = vsel %vm575, %v981, %v1240
    %v1243 = vld [vmem:[%s9] sm:$0xf]
    %v1244 = vld [vmem:[%s9 + $0x4] sm:$0xf]
    %v1245 = vld [vmem:[%s9 + $0x8] sm:$0xf]
    %v1246 = vld [vmem:[%s9 + $0xc] sm:$0xf]
    %v1247 = vld [vmem:[%s9 + $0x10] sm:$0xf]
    %v1248 = vld [vmem:[%s9 + $0x14] sm:$0xf]
    %v1249 = vld [vmem:[%s9 + $0x18] sm:$0xf]
    %v1250 = vld [vmem:[%s9 + $0x1c] sm:$0xf]
    %v1251 = vpack.c.bf16 %v1240, %v1242
    %v1260 = vunpack.c.l.b16 %v1243
    %v1261 = vunpack.c.l.b16 %v1244
    %v1262 = vunpack.c.l.b16 %v1245
    %v1263 = vunpack.c.l.b16 %v1246
    %v1264 = vunpack.c.l.b16 %v1247
    %v1265 = vunpack.c.l.b16 %v1248
    %v1266 = vunpack.c.l.b16 %v1249
    %v1267 = vunpack.c.l.b16 %v1250
    %v1268 = vpack.c.b16 %v1261, %v1260
    %v1269 = vpack.c.b16 %v1263, %v1262
    %v1270 = vpack.c.b16 %v1265, %v1264
    %v1271 = vpack.c.b16 %v1267, %v1266
    %v1277 = vsel %vm579, %v1251, 0
    %1279 = vmatpush.bf16.msra.mxu0 0
    %1280 = vmatpush.bf16.msra.mxu0 0
    %1281 = vmatpush.bf16.msra.mxu0 0
    %1282 = vmatpush.bf16.msra.mxu0 0
    %1283 = vmatpush.bf16.msra.mxu0 %v1271
    %1284 = vmatpush.bf16.msra.mxu0 %v1270
    %1285 = vmatpush.bf16.msra.mxu0 %v1269
    %1286 = vmatpush.bf16.msra.mxu0 %v1268
    %1287 = vmatmul.bf16.gmra.mxu0 %v1277
    %v1288 = vpop.f32.mrf.mxu0
    %v1289 = vadd.f32 0.0, %v1288
    %v1290 = vpop.f32.mrf.mxu0
    %v1291 = vadd.f32 0.0, %v1290
    %1292 = vdwg.mxu0
    %v1293 = vadd.f32 %v576, %v1289
    %v1294 = vadd.f32 %v573, %v1291
    %v1295 = vld [vmem:[%s10] sm:$0x1]
    %v1297 = vperm.slane %v1295, 0
    %v1299 = vadd.f32 %v1293, %v1297
    %v1300 = vadd.f32 %v1294, %v1297
    %v1301 = vld [vmem:[%s11] sm:$0x1]
    %v1302 = vld [vmem:[%s12] sm:$0x1]
    %v1303 = vsel %vm579, %v1299, 0.0
    %1304 = vadd.xlane.f32.xlu0 %v1303
    %v1305 = vpop.xlane.xlu0 %1304
    %v1306 = vsel %vm583, %v1300, 0.0
    %1307 = vadd.xlane.f32.xlu0 %v1306
    %v1308 = vpop.xlane.xlu0 %1307
    %v1309 = vmul.f32 %v1305, %v593
    %v1310 = vmul.f32 %v1308, %v593
    %v1311 = vsub.f32 %v1299, %v1309
    %v1312 = vsub.f32 %v1300, %v1310
    %v1313 = vmul.f32 %v1311, %v1311
    %v1314 = vmul.f32 %v1312, %v1312
    %v1315 = vsel %vm579, %v1313, 0.0
    %1316 = vadd.xlane.f32.xlu0 %v1315
    %v1317 = vpop.xlane.xlu0 %1316
    %v1318 = vsel %vm583, %v1314, 0.0
    %1319 = vadd.xlane.f32.xlu0 %v1318
    %v1320 = vpop.xlane.xlu0 %1319
    %v1321 = vmul.f32 %v1317, %v593
    %v1322 = vmul.f32 %v1320, %v593
    %v1323 = vadd.f32 %v1321, 1e-06
    %v1324 = vadd.f32 %v1322, 1e-06
    %v1325 = vrsqrt.pop %v1323
    %v1326 = vmul.f32 %v1325, %v1323
    %v1327 = vmul.f32 %v1326, %v1325
    %v1328 = vmul.f32 0.5, %v1327
    %v1329 = vsub.f32 1.5, %v1328
    %v1330 = vmul.f32 %v1325, %v1329
    %vm1331 = vweird.f32 %v1323
    %vm1332 = vweird.f32 %v1325
    %vm1333 = vmor %vm1331, %vm1332
    %v1334 = vsel %vm1333, %v1325, %v1330
    %v1335 = vrsqrt.pop %v1324
    %v1336 = vmul.f32 %v1335, %v1324
    %v1337 = vmul.f32 %v1336, %v1335
    %v1338 = vmul.f32 0.5, %v1337
    %v1339 = vsub.f32 1.5, %v1338
    %v1340 = vmul.f32 %v1335, %v1339
    %vm1341 = vweird.f32 %v1324
    %vm1342 = vweird.f32 %v1335
    %vm1343 = vmor %vm1341, %vm1342
    %v1344 = vsel %vm1343, %v1335, %v1340
    %v1345 = vmul.f32 %v1311, %v1334
    %v1346 = vmul.f32 %v1312, %v1344
    %v1348 = vperm.slane %v1301, 0
    %v1350 = vmul.f32 %v1345, %v1348
    %v1351 = vmul.f32 %v1346, %v1348
    %v1353 = vperm.slane %v1302, 0
    %v1355 = vadd.f32 %v1350, %v1353
    %v1356 = vadd.f32 %v1351, %v1353
    %v1357 = vld [vmem:[%s13] sm:$0xff]
    %v1358 = vld [vmem:[%s13 + $0x8] sm:$0xff]
    %v1359 = vld [vmem:[%s13 + $0x10] sm:$0xff]
    %v1360 = vld [vmem:[%s13 + $0x18] sm:$0xff]
    %v1361 = vld [vmem:[%s13 + $0x20] sm:$0xff]
    %v1362 = vld [vmem:[%s13 + $0x28] sm:$0xff]
    %v1363 = vld [vmem:[%s13 + $0x30] sm:$0xff]
    %v1364 = vld [vmem:[%s13 + $0x38] sm:$0xff]
    %v1365 = vpack.c.bf16 %v1356, %v1355
    %v1366 = vld [vmem:[%s14] sm:$0x3]
    %v1368 = vperm.slane %v1366, 0
    %v1369 = vperm.slane %v1366, 1
    %v1380 = vunpack.c.l.b16 %v1357
    %v1381 = vunpack.c.h.b16 %v1357
    %v1382 = vunpack.c.l.b16 %v1358
    %v1383 = vunpack.c.h.b16 %v1358
    %v1384 = vunpack.c.l.b16 %v1359
    %v1385 = vunpack.c.h.b16 %v1359
    %v1386 = vunpack.c.l.b16 %v1360
    %v1387 = vunpack.c.h.b16 %v1360
    %v1388 = vunpack.c.l.b16 %v1361
    %v1389 = vunpack.c.h.b16 %v1361
    %v1390 = vunpack.c.l.b16 %v1362
    %v1391 = vunpack.c.h.b16 %v1362
    %v1392 = vunpack.c.l.b16 %v1363
    %v1393 = vunpack.c.h.b16 %v1363
    %v1394 = vunpack.c.l.b16 %v1364
    %v1395 = vunpack.c.h.b16 %v1364
    %v1396 = vpack.c.b16 %v1382, %v1380
    %v1397 = vpack.c.b16 %v1383, %v1381
    %v1398 = vpack.c.b16 %v1386, %v1384
    %v1399 = vpack.c.b16 %v1387, %v1385
    %v1400 = vpack.c.b16 %v1390, %v1388
    %v1401 = vpack.c.b16 %v1391, %v1389
    %v1402 = vpack.c.b16 %v1394, %v1392
    %v1403 = vpack.c.b16 %v1395, %v1393
    %v1413 = vsel %vm579, %v1365, 0
    %1415 = vmatpush.bf16.msra.mxu0 0
    %1416 = vmatpush.bf16.msra.mxu0 0
    %1417 = vmatpush.bf16.msra.mxu0 0
    %1418 = vmatpush.bf16.msra.mxu0 0
    %1419 = vmatpush.bf16.msra.mxu0 %v1402
    %1420 = vmatpush.bf16.msra.mxu0 %v1400
    %1421 = vmatpush.bf16.msra.mxu0 %v1398
    %1422 = vmatpush.bf16.msra.mxu0 %v1396
    %1423 = vmatmul.bf16.gmra.mxu0 %v1413
    %v1424 = vpop.f32.mrf.mxu0
    %v1425 = vadd.f32 %v1368, %v1424
    %v1426 = vpop.f32.mrf.mxu0
    %v1427 = vadd.f32 %v1368, %v1426
    %1428 = vdwg.mxu0
    %1429 = vmatpush.bf16.msra.mxu0 0
    %1430 = vmatpush.bf16.msra.mxu0 0
    %1431 = vmatpush.bf16.msra.mxu0 0
    %1432 = vmatpush.bf16.msra.mxu0 0
    %1433 = vmatpush.bf16.msra.mxu0 %v1403
    %1434 = vmatpush.bf16.msra.mxu0 %v1401
    %1435 = vmatpush.bf16.msra.mxu0 %v1399
    %1436 = vmatpush.bf16.msra.mxu0 %v1397
    %1437 = vmatmul.bf16.gmra.mxu0 %v1413
    %v1438 = vpop.f32.mrf.mxu0
    %v1439 = vadd.f32 %v1369, %v1438
    %v1440 = vpop.f32.mrf.mxu0
    %v1441 = vadd.f32 %v1369, %v1440
    %1442 = vdwg.mxu0
    %v1443 = vmul.f32 %v1425, 0.5
    %v1444 = vmul.f32 %v1439, 0.5
    %v1445 = vmul.f32 %v1427, 0.5
    %v1446 = vmul.f32 %v1441, 0.5
    %v1447 = vmul.f32 %v1425, 0.70710677
    %v1448 = vmul.f32 %v1439, 0.70710677
    %v1449 = vmul.f32 %v1427, 0.70710677
    %v1450 = vmul.f32 %v1441, 0.70710677
    %v1451 = vmul.f32 %v1447, %v1447
    %v1452 = vmin.f32 16.0, %v1451
    %v1453 = vmul.f32 %v1452, 2.1237322e-06
    %v1454 = vadd.f32 %v1453, 0.00028619796
    %v1455 = vmul.f32 %v1452, %v1454
    %v1456 = vadd.f32 %v1455, 0.0036580483
    %v1457 = vmul.f32 %v1452, %v1456
    %v1458 = vadd.f32 %v1457, 0.05243302
    %v1459 = vmul.f32 %v1452, %v1458
    %v1460 = vadd.f32 %v1459, 0.18741608
    %v1461 = vmul.f32 %v1452, %v1460
    %v1462 = vadd.f32 %v1461, 1.1283791
    %v1463 = vmul.f32 %v1447, %v1462
    %v1464 = vmul.f32 %v1452, 3.8918573e-05
    %v1465 = vadd.f32 %v1464, 0.001143296
    %v1466 = vmul.f32 %v1452, %v1465
    %v1467 = vadd.f32 %v1466, 0.014752088
    %v1468 = vmul.f32 %v1452, %v1467
    %v1469 = vadd.f32 %v1468, 0.112945676
    %v1470 = vmul.f32 %v1452, %v1469
    %v1471 = vadd.f32 %v1470, 0.4994258
    %v1472 = vmul.f32 %v1452, %v1471
    %v1473 = vadd.f32 %v1472, 1.0
    %v1474 = vrcp.pop %v1473
    %v1475 = vmul.f32 %v1473, %v1474
    %v1476 = vsub.f32 1.0, %v1475
    %v1477 = vmul.f32 %v1474, %v1476
    %v1478 = vadd.f32 %v1474, %v1477
    %vm1479 = vweird.f32 %v1473
    %vm1480 = vweird.f32 %v1474
    %vm1481 = vmor %vm1479, %vm1480
    %v1482 = vsel %vm1481, %v1474, %v1478
    %v1483 = vand.u32 2147483647, %v1473
    %vm1484 = vcmp.eq.f32.partialorder %v1483, 8.507059e+37
    %v1485 = vand.u32 %v1473, 2147483648
    %v1486 = vor.u32 1.1754944e-38, %v1485
    %v1487 = vsel %vm1484, %v1486, %v1482
    %v1488 = vmul.f32 %v1463, %v1487
    %v1489 = vmin.f32 %v1488, 1.0
    %v1490 = vmax.f32 %v1489, -1.0
    %v1491 = vmul.f32 %v1448, %v1448
    %v1492 = vmin.f32 16.0, %v1491
    %v1493 = vmul.f32 %v1492, 2.1237322e-06
    %v1494 = vadd.f32 %v1493, 0.00028619796
    %v1495 = vmul.f32 %v1492, %v1494
    %v1496 = vadd.f32 %v1495, 0.0036580483
    %v1497 = vmul.f32 %v1492, %v1496
    %v1498 = vadd.f32 %v1497, 0.05243302
    %v1499 = vmul.f32 %v1492, %v1498
    %v1500 = vadd.f32 %v1499, 0.18741608
    %v1501 = vmul.f32 %v1492, %v1500
    %v1502 = vadd.f32 %v1501, 1.1283791
    %v1503 = vmul.f32 %v1448, %v1502
    %v1504 = vmul.f32 %v1492, 3.8918573e-05
    %v1505 = vadd.f32 %v1504, 0.001143296
    %v1506 = vmul.f32 %v1492, %v1505
    %v1507 = vadd.f32 %v1506, 0.014752088
    %v1508 = vmul.f32 %v1492, %v1507
    %v1509 = vadd.f32 %v1508, 0.112945676
    %v1510 = vmul.f32 %v1492, %v1509
    %v1511 = vadd.f32 %v1510, 0.4994258
    %v1512 = vmul.f32 %v1492, %v1511
    %v1513 = vadd.f32 %v1512, 1.0
    %v1514 = vrcp.pop %v1513
    %v1515 = vmul.f32 %v1513, %v1514
    %v1516 = vsub.f32 1.0, %v1515
    %v1517 = vmul.f32 %v1514, %v1516
    %v1518 = vadd.f32 %v1514, %v1517
    %vm1519 = vweird.f32 %v1513
    %vm1520 = vweird.f32 %v1514
    %vm1521 = vmor %vm1519, %vm1520
    %v1522 = vsel %vm1521, %v1514, %v1518
    %v1523 = vand.u32 2147483647, %v1513
    %vm1524 = vcmp.eq.f32.partialorder %v1523, 8.507059e+37
    %v1525 = vand.u32 %v1513, 2147483648
    %v1526 = vor.u32 1.1754944e-38, %v1525
    %v1527 = vsel %vm1524, %v1526, %v1522
    %v1528 = vmul.f32 %v1503, %v1527
    %v1529 = vmin.f32 %v1528, 1.0
    %v1530 = vmax.f32 %v1529, -1.0
    %v1531 = vmul.f32 %v1449, %v1449
    %v1532 = vmin.f32 16.0, %v1531
    %v1533 = vmul.f32 %v1532, 2.1237322e-06
    %v1534 = vadd.f32 %v1533, 0.00028619796
    %v1535 = vmul.f32 %v1532, %v1534
    %v1536 = vadd.f32 %v1535, 0.0036580483
    %v1537 = vmul.f32 %v1532, %v1536
    %v1538 = vadd.f32 %v1537, 0.05243302
    %v1539 = vmul.f32 %v1532, %v1538
    %v1540 = vadd.f32 %v1539, 0.18741608
    %v1541 = vmul.f32 %v1532, %v1540
    %v1542 = vadd.f32 %v1541, 1.1283791
    %v1543 = vmul.f32 %v1449, %v1542
    %v1544 = vmul.f32 %v1532, 3.8918573e-05
    %v1545 = vadd.f32 %v1544, 0.001143296
    %v1546 = vmul.f32 %v1532, %v1545
    %v1547 = vadd.f32 %v1546, 0.014752088
    %v1548 = vmul.f32 %v1532, %v1547
    %v1549 = vadd.f32 %v1548, 0.112945676
    %v1550 = vmul.f32 %v1532, %v1549
    %v1551 = vadd.f32 %v1550, 0.4994258
    %v1552 = vmul.f32 %v1532, %v1551
    %v1553 = vadd.f32 %v1552, 1.0
    %v1554 = vrcp.pop %v1553
    %v1555 = vmul.f32 %v1553, %v1554
    %v1556 = vsub.f32 1.0, %v1555
    %v1557 = vmul.f32 %v1554, %v1556
    %v1558 = vadd.f32 %v1554, %v1557
    %vm1559 = vweird.f32 %v1553
    %vm1560 = vweird.f32 %v1554
    %vm1561 = vmor %vm1559, %vm1560
    %v1562 = vsel %vm1561, %v1554, %v1558
    %v1563 = vand.u32 2147483647, %v1553
    %vm1564 = vcmp.eq.f32.partialorder %v1563, 8.507059e+37
    %v1565 = vand.u32 %v1553, 2147483648
    %v1566 = vor.u32 1.1754944e-38, %v1565
    %v1567 = vsel %vm1564, %v1566, %v1562
    %v1568 = vmul.f32 %v1543, %v1567
    %v1569 = vmin.f32 %v1568, 1.0
    %v1570 = vmax.f32 %v1569, -1.0
    %v1571 = vmul.f32 %v1450, %v1450
    %v1572 = vmin.f32 16.0, %v1571
    %v1573 = vmul.f32 %v1572, 2.1237322e-06
    %v1574 = vadd.f32 %v1573, 0.00028619796
    %v1575 = vmul.f32 %v1572, %v1574
    %v1576 = vadd.f32 %v1575, 0.0036580483
    %v1577 = vmul.f32 %v1572, %v1576
    %v1578 = vadd.f32 %v1577, 0.05243302
    %v1579 = vmul.f32 %v1572, %v1578
    %v1580 = vadd.f32 %v1579, 0.18741608
    %v1581 = vmul.f32 %v1572, %v1580
    %v1582 = vadd.f32 %v1581, 1.1283791
    %v1583 = vmul.f32 %v1450, %v1582
    %v1584 = vmul.f32 %v1572, 3.8918573e-05
    %v1585 = vadd.f32 %v1584, 0.001143296
    %v1586 = vmul.f32 %v1572, %v1585
    %v1587 = vadd.f32 %v1586, 0.014752088
    %v1588 = vmul.f32 %v1572, %v1587
    %v1589 = vadd.f32 %v1588, 0.112945676
    %v1590 = vmul.f32 %v1572, %v1589
    %v1591 = vadd.f32 %v1590, 0.4994258
    %v1592 = vmul.f32 %v1572, %v1591
    %v1593 = vadd.f32 %v1592, 1.0
    %v1594 = vrcp.pop %v1593
    %v1595 = vmul.f32 %v1593, %v1594
    %v1596 = vsub.f32 1.0, %v1595
    %v1597 = vmul.f32 %v1594, %v1596
    %v1598 = vadd.f32 %v1594, %v1597
    %vm1599 = vweird.f32 %v1593
    %vm1600 = vweird.f32 %v1594
    %vm1601 = vmor %vm1599, %vm1600
    %v1602 = vsel %vm1601, %v1594, %v1598
    %v1603 = vand.u32 2147483647, %v1593
    %vm1604 = vcmp.eq.f32.partialorder %v1603, 8.507059e+37
    %v1605 = vand.u32 %v1593, 2147483648
    %v1606 = vor.u32 1.1754944e-38, %v1605
    %v1607 = vsel %vm1604, %v1606, %v1602
    %v1608 = vmul.f32 %v1583, %v1607
    %v1609 = vmin.f32 %v1608, 1.0
    %v1610 = vmax.f32 %v1609, -1.0
    %v1611 = vadd.f32 %v1490, 1.0
    %v1612 = vadd.f32 %v1530, 1.0
    %v1613 = vadd.f32 %v1570, 1.0
    %v1614 = vadd.f32 %v1610, 1.0
    %v1615 = vmul.f32 %v1443, %v1611
    %v1616 = vmul.f32 %v1444, %v1612
    %v1617 = vmul.f32 %v1445, %v1613
    %v1618 = vmul.f32 %v1446, %v1614
    %v1619 = vld [vmem:[%s15] sm:$0xf]
    %v1620 = vld [vmem:[%s15 + $0x4] sm:$0xf]
    %v1621 = vld [vmem:[%s15 + $0x8] sm:$0xf]
    %v1622 = vld [vmem:[%s15 + $0xc] sm:$0xf]
    %v1623 = vld [vmem:[%s15 + $0x10] sm:$0xf]
    %v1624 = vld [vmem:[%s15 + $0x14] sm:$0xf]
    %v1625 = vld [vmem:[%s15 + $0x18] sm:$0xf]
    %v1626 = vld [vmem:[%s15 + $0x1c] sm:$0xf]
    %v1627 = vld [vmem:[%s15 + $0x20] sm:$0xf]
    %v1628 = vld [vmem:[%s15 + $0x24] sm:$0xf]
    %v1629 = vld [vmem:[%s15 + $0x28] sm:$0xf]
    %v1630 = vld [vmem:[%s15 + $0x2c] sm:$0xf]
    %v1631 = vld [vmem:[%s15 + $0x30] sm:$0xf]
    %v1632 = vld [vmem:[%s15 + $0x34] sm:$0xf]
    %v1633 = vld [vmem:[%s15 + $0x38] sm:$0xf]
    %v1634 = vld [vmem:[%s15 + $0x3c] sm:$0xf]
    %v1635 = vld [vmem:[%s15 + $0x40] sm:$0xf]
    %v1636 = vld [vmem:[%s15 + $0x44] sm:$0xf]
    %v1637 = vld [vmem:[%s15 + $0x48] sm:$0xf]
    %v1638 = vld [vmem:[%s15 + $0x4c] sm:$0xf]
    %v1639 = vld [vmem:[%s15 + $0x50] sm:$0xf]
    %v1640 = vld [vmem:[%s15 + $0x54] sm:$0xf]
    %v1641 = vld [vmem:[%s15 + $0x58] sm:$0xf]
    %v1642 = vld [vmem:[%s15 + $0x5c] sm:$0xf]
    %v1643 = vld [vmem:[%s15 + $0x60] sm:$0xf]
    %v1644 = vld [vmem:[%s15 + $0x64] sm:$0xf]
    %v1645 = vld [vmem:[%s15 + $0x68] sm:$0xf]
    %v1646 = vld [vmem:[%s15 + $0x6c] sm:$0xf]
    %v1647 = vld [vmem:[%s15 + $0x70] sm:$0xf]
    %v1648 = vld [vmem:[%s15 + $0x74] sm:$0xf]
    %v1649 = vld [vmem:[%s15 + $0x78] sm:$0xf]
    %v1650 = vld [vmem:[%s15 + $0x7c] sm:$0xf]
    %v1651 = vpack.c.bf16 %v1617, %v1615
    %v1652 = vpack.c.bf16 %v1618, %v1616
    %v1685 = vunpack.c.l.b16 %v1619
    %v1686 = vunpack.c.l.b16 %v1620
    %v1687 = vunpack.c.l.b16 %v1621
    %v1688 = vunpack.c.l.b16 %v1622
    %v1689 = vunpack.c.l.b16 %v1623
    %v1690 = vunpack.c.l.b16 %v1624
    %v1691 = vunpack.c.l.b16 %v1625
    %v1692 = vunpack.c.l.b16 %v1626
    %v1693 = vunpack.c.l.b16 %v1627
    %v1694 = vunpack.c.l.b16 %v1628
    %v1695 = vunpack.c.l.b16 %v1629
    %v1696 = vunpack.c.l.b16 %v1630
    %v1697 = vunpack.c.l.b16 %v1631
    %v1698 = vunpack.c.l.b16 %v1632
    %v1699 = vunpack.c.l.b16 %v1633
    %v1700 = vunpack.c.l.b16 %v1634
    %v1701 = vunpack.c.l.b16 %v1635
    %v1702 = vunpack.c.l.b16 %v1636
    %v1703 = vunpack.c.l.b16 %v1637
    %v1704 = vunpack.c.l.b16 %v1638
    %v1705 = vunpack.c.l.b16 %v1639
    %v1706 = vunpack.c.l.b16 %v1640
    %v1707 = vunpack.c.l.b16 %v1641
    %v1708 = vunpack.c.l.b16 %v1642
    %v1709 = vunpack.c.l.b16 %v1643
    %v1710 = vunpack.c.l.b16 %v1644
    %v1711 = vunpack.c.l.b16 %v1645
    %v1712 = vunpack.c.l.b16 %v1646
    %v1713 = vunpack.c.l.b16 %v1647
    %v1714 = vunpack.c.l.b16 %v1648
    %v1715 = vunpack.c.l.b16 %v1649
    %v1716 = vunpack.c.l.b16 %v1650
    %v1717 = vpack.c.b16 %v1686, %v1685
    %v1718 = vpack.c.b16 %v1688, %v1687
    %v1719 = vpack.c.b16 %v1690, %v1689
    %v1720 = vpack.c.b16 %v1692, %v1691
    %v1721 = vpack.c.b16 %v1694, %v1693
    %v1722 = vpack.c.b16 %v1696, %v1695
    %v1723 = vpack.c.b16 %v1698, %v1697
    %v1724 = vpack.c.b16 %v1700, %v1699
    %v1725 = vpack.c.b16 %v1702, %v1701
    %v1726 = vpack.c.b16 %v1704, %v1703
    %v1727 = vpack.c.b16 %v1706, %v1705
    %v1728 = vpack.c.b16 %v1708, %v1707
    %v1729 = vpack.c.b16 %v1710, %v1709
    %v1730 = vpack.c.b16 %v1712, %v1711
    %v1731 = vpack.c.b16 %v1714, %v1713
    %v1732 = vpack.c.b16 %v1716, %v1715
    %1749 = vmatpush.bf16.msra.mxu0 %v1724
    %1750 = vmatpush.bf16.msra.mxu0 %v1723
    %1751 = vmatpush.bf16.msra.mxu0 %v1722
    %1752 = vmatpush.bf16.msra.mxu0 %v1721
    %1753 = vmatpush.bf16.msra.mxu0 %v1720
    %1754 = vmatpush.bf16.msra.mxu0 %v1719
    %1755 = vmatpush.bf16.msra.mxu0 %v1718
    %1756 = vmatpush.bf16.msra.mxu0 %v1717
    %1757 = vmatmul.bf16.gmra.mxu0 %v1651
    %v1758 = vpop.f32.mrf.mxu0
    %v1759 = vadd.f32 0.0, %v1758
    %v1760 = vpop.f32.mrf.mxu0
    %v1761 = vadd.f32 0.0, %v1760
    %1762 = vdwg.mxu0
    %1763 = vmatpush.bf16.msra.mxu0 %v1732
    %1764 = vmatpush.bf16.msra.mxu0 %v1731
    %1765 = vmatpush.bf16.msra.mxu0 %v1730
    %1766 = vmatpush.bf16.msra.mxu0 %v1729
    %1767 = vmatpush.bf16.msra.mxu0 %v1728
    %1768 = vmatpush.bf16.msra.mxu0 %v1727
    %1769 = vmatpush.bf16.msra.mxu0 %v1726
    %1770 = vmatpush.bf16.msra.mxu0 %v1725
    %1771 = vmatmul.bf16.gmra.mxu0 %v1652
    %v1772 = vpop.f32.mrf.mxu0
    %v1773 = vadd.f32 %v1759, %v1772
    %v1774 = vpop.f32.mrf.mxu0
    %v1775 = vadd.f32 %v1761, %v1774
    %1776 = vdwg.mxu0
    %v1777 = vadd.f32 %v1299, %v1773
    %v1778 = vadd.f32 %v1300, %v1775
    %v1779 = vld [vmem:[%s16] sm:$0x1]
    %v1781 = vperm.slane %v1779, 0
    %v1783 = vadd.f32 %v1777, %v1781
    %v1784 = vadd.f32 %v1778, %v1781
    %s1785 = scalar_lea.vmem %s5, 1
    %v1786 = vld [vmem:[%s1785] sm:$0x1]
    %s1787 = scalar_lea.vmem %s6, 1
    %v1788 = vld [vmem:[%s1787] sm:$0x1]
    %v1789 = vsel %vm579, %v1783, 0.0
    %1790 = vadd.xlane.f32.xlu0 %v1789
    %v1791 = vpop.xlane.xlu0 %1790
    %v1792 = vsel %vm583, %v1784, 0.0
    %1793 = vadd.xlane.f32.xlu0 %v1792
    %v1794 = vpop.xlane.xlu0 %1793
    %v1795 = vmul.f32 %v1791, %v593
    %v1796 = vmul.f32 %v1794, %v593
    %v1797 = vsub.f32 %v1783, %v1795
    %v1798 = vsub.f32 %v1784, %v1796
    %v1799 = vmul.f32 %v1797, %v1797
    %v1800 = vmul.f32 %v1798, %v1798
    %v1801 = vsel %vm579, %v1799, 0.0
    %1802 = vadd.xlane.f32.xlu0 %v1801
    %v1803 = vpop.xlane.xlu0 %1802
    %v1804 = vsel %vm583, %v1800, 0.0
    %1805 = vadd.xlane.f32.xlu0 %v1804
    %v1806 = vpop.xlane.xlu0 %1805
    %v1807 = vmul.f32 %v1803, %v593
    %v1808 = vmul.f32 %v1806, %v593
    %v1809 = vadd.f32 %v1807, 1e-06
    %v1810 = vadd.f32 %v1808, 1e-06
    %v1811 = vrsqrt.pop %v1809
    %v1812 = vmul.f32 %v1811, %v1809
    %v1813 = vmul.f32 %v1812, %v1811
    %v1814 = vmul.f32 0.5, %v1813
    %v1815 = vsub.f32 1.5, %v1814
    %v1816 = vmul.f32 %v1811, %v1815
    %vm1817 = vweird.f32 %v1809
    %vm1818 = vweird.f32 %v1811
    %vm1819 = vmor %vm1817, %vm1818
    %v1820 = vsel %vm1819, %v1811, %v1816
    %v1821 = vrsqrt.pop %v1810
    %v1822 = vmul.f32 %v1821, %v1810
    %v1823 = vmul.f32 %v1822, %v1821
    %v1824 = vmul.f32 0.5, %v1823
    %v1825 = vsub.f32 1.5, %v1824
    %v1826 = vmul.f32 %v1821, %v1825
    %vm1827 = vweird.f32 %v1810
    %vm1828 = vweird.f32 %v1821
    %vm1829 = vmor %vm1827, %vm1828
    %v1830 = vsel %vm1829, %v1821, %v1826
    %v1831 = vmul.f32 %v1797, %v1820
    %v1832 = vmul.f32 %v1798, %v1830
    %v1834 = vperm.slane %v1786, 0
    %v1836 = vmul.f32 %v1831, %v1834
    %v1837 = vmul.f32 %v1832, %v1834
    %v1839 = vperm.slane %v1788, 0
    %v1841 = vadd.f32 %v1836, %v1839
    %v1842 = vadd.f32 %v1837, %v1839
    %s1843 = scalar_lea.vmem %s7, 64
    %v1844 = vld [vmem:[%s1843] sm:$0xff]
    %v1845 = vld [vmem:[%s1843 + $0x8] sm:$0xff]
    %v1846 = vld [vmem:[%s1843 + $0x10] sm:$0xff]
    %v1847 = vld [vmem:[%s1843 + $0x18] sm:$0xff]
    %v1848 = vld [vmem:[%s1843 + $0x20] sm:$0xff]
    %v1849 = vld [vmem:[%s1843 + $0x28] sm:$0xff]
    %v1850 = vld [vmem:[%s1843 + $0x30] sm:$0xff]
    %v1851 = vld [vmem:[%s1843 + $0x38] sm:$0xff]
    %v1852 = vpack.c.bf16 %v1842, %v1841
    %s1853 = scalar_lea.vmem %s8, 2
    %v1854 = vld [vmem:[%s1853] sm:$0x3]
    %v1856 = vperm.slane %v1854, 0
    %v1857 = vperm.slane %v1854, 1
    %v1868 = vunpack.c.l.b16 %v1844
    %v1869 = vunpack.c.h.b16 %v1844
    %v1870 = vunpack.c.l.b16 %v1845
    %v1871 = vunpack.c.h.b16 %v1845
    %v1872 = vunpack.c.l.b16 %v1846
    %v1873 = vunpack.c.h.b16 %v1846
    %v1874 = vunpack.c.l.b16 %v1847
    %v1875 = vunpack.c.h.b16 %v1847
    %v1876 = vunpack.c.l.b16 %v1848
    %v1877 = vunpack.c.h.b16 %v1848
    %v1878 = vunpack.c.l.b16 %v1849
    %v1879 = vunpack.c.h.b16 %v1849
    %v1880 = vunpack.c.l.b16 %v1850
    %v1881 = vunpack.c.h.b16 %v1850
    %v1882 = vunpack.c.l.b16 %v1851
    %v1883 = vunpack.c.h.b16 %v1851
    %v1884 = vpack.c.b16 %v1870, %v1868
    %v1885 = vpack.c.b16 %v1871, %v1869
    %v1886 = vpack.c.b16 %v1874, %v1872
    %v1887 = vpack.c.b16 %v1875, %v1873
    %v1888 = vpack.c.b16 %v1878, %v1876
    %v1889 = vpack.c.b16 %v1879, %v1877
    %v1890 = vpack.c.b16 %v1882, %v1880
    %v1891 = vpack.c.b16 %v1883, %v1881
    %v1901 = vsel %vm579, %v1852, 0
    %1903 = vmatpush.bf16.msra.mxu0 0
    %1904 = vmatpush.bf16.msra.mxu0 0
    %1905 = vmatpush.bf16.msra.mxu0 0
    %1906 = vmatpush.bf16.msra.mxu0 0
    %1907 = vmatpush.bf16.msra.mxu0 %v1890
    %1908 = vmatpush.bf16.msra.mxu0 %v1888
    %1909 = vmatpush.bf16.msra.mxu0 %v1886
    %1910 = vmatpush.bf16.msra.mxu0 %v1884
    %1911 = vmatmul.bf16.gmra.mxu0 %v1901
    %v1912 = vpop.f32.mrf.mxu0
    %v1913 = vadd.f32 %v1856, %v1912
    %v1914 = vpop.f32.mrf.mxu0
    %v1915 = vadd.f32 %v1856, %v1914
    %1916 = vdwg.mxu0
    %1917 = vmatpush.bf16.msra.mxu0 0
    %1918 = vmatpush.bf16.msra.mxu0 0
    %1919 = vmatpush.bf16.msra.mxu0 0
    %1920 = vmatpush.bf16.msra.mxu0 0
    %1921 = vmatpush.bf16.msra.mxu0 %v1891
    %1922 = vmatpush.bf16.msra.mxu0 %v1889
    %1923 = vmatpush.bf16.msra.mxu0 %v1887
    %1924 = vmatpush.bf16.msra.mxu0 %v1885
    %1925 = vmatmul.bf16.gmra.mxu0 %v1901
    %v1926 = vpop.f32.mrf.mxu0
    %v1927 = vadd.f32 %v1857, %v1926
    %v1928 = vpop.f32.mrf.mxu0
    %v1929 = vadd.f32 %v1857, %v1928
    %1930 = vdwg.mxu0
    %v1931 = vpack.c.bf16 %v1913, %v1913
    %v1932 = vpack.c.bf16 %v1915, %v1915
    %v1933 = vpack.c.bf16 %v1927, %v1927
    %v1934 = vpack.c.bf16 %v1929, %v1929
    %v1936 = vunpack.c.l.b16 %v1931
    %v1937 = vpack.c.b16 %v1936, %v1936
    %1938 = vrot.lane.b32.xlu0 %v1937, 64
    %v1939 = vpop.permute.xlu0 %1938
    %v1941 = vsel %vm737, %v1931, 0
    %v1944 = vsel %vm737, %v1939, 0
    %1946 = vmatpush.bf16.xpose.msra.mxu0 0
    %1947 = vmatpush.bf16.xpose.msra.mxu0 0
    %1948 = vmatpush.bf16.xpose.msra.mxu0 0
    %1949 = vmatpush.bf16.xpose.msra.mxu0 0
    %1950 = vmatpush.bf16.xpose.msra.mxu0 0
    %1951 = vmatpush.bf16.xpose.msra.mxu0 0
    %1952 = vmatpush.bf16.xpose.msra.mxu0 0
    %1953 = vmatpush.bf16.xpose.msra.mxu0 %v1944
    %1954 = vmatmul.bf16.gmra.mxu0 %v1941
    %v1955 = vpop.f32.mrf.mxu0
    %v1956 = vadd.f32 0.0, %v1955
    %v1957 = vpop.f32.mrf.mxu0
    %1958 = vdwg.mxu0
    %v1959 = vsel %vm757, %v1956, -inf
    %1960 = vmax.xlane.f32.xlu0 %v1959
    %v1961 = vpop.xlane.xlu0 %1960
    %v1962 = vsub.f32 %v1956, %v1961
    %v1963 = vmul.f32 %v1962, 1.442695
    %v1964 = vpow.pop %v1963
    %v1965 = vsel %vm757, %v1964, 0.0
    %1966 = vadd.xlane.f32.xlu0 %v1965
    %v1967 = vpop.xlane.xlu0 %1966
    %v1968 = vrcp.pop %v1967
    %v1969 = vmul.f32 %v1964, %v1968
    %v1970 = vpack.c.bf16 %v1969, %v1969
    %v1972 = vsel %vm770, %v1970, 0
    %v1975 = vand.u32 %v1933, %v777
    %1977 = vmatpush.bf16.msra.mxu0 0
    %1978 = vmatpush.bf16.msra.mxu0 0
    %1979 = vmatpush.bf16.msra.mxu0 0
    %1980 = vmatpush.bf16.msra.mxu0 0
    %1981 = vmatpush.bf16.msra.mxu0 0
    %1982 = vmatpush.bf16.msra.mxu0 0
    %1983 = vmatpush.bf16.msra.mxu0 0
    %1984 = vmatpush.bf16.msra.mxu0 %v1975
    %1985 = vmatmul.bf16.gmra.mxu0 %v1972
    %v1986 = vpop.f32.mrf.mxu0
    %v1987 = vadd.f32 0.0, %v1986
    %v1988 = vpop.f32.mrf.mxu0
    %1989 = vdwg.mxu0
    %1990 = vrot.lane.b32.xlu0 %v1937, 112
    %v1991 = vpop.permute.xlu0 %1990
    %1992 = vrot.lane.b32.xlu0 %v1937, 48
    %v1993 = vpop.permute.xlu0 %1992
    %v1995 = vsel %vm737, %v1991, 0
    %v1998 = vsel %vm737, %v1993, 0
    %2000 = vmatpush.bf16.xpose.msra.mxu0 0
    %2001 = vmatpush.bf16.xpose.msra.mxu0 0
    %2002 = vmatpush.bf16.xpose.msra.mxu0 0
    %2003 = vmatpush.bf16.xpose.msra.mxu0 0
    %2004 = vmatpush.bf16.xpose.msra.mxu0 0
    %2005 = vmatpush.bf16.xpose.msra.mxu0 0
    %2006 = vmatpush.bf16.xpose.msra.mxu0 0
    %2007 = vmatpush.bf16.xpose.msra.mxu0 %v1998
    %2008 = vmatmul.bf16.gmra.mxu0 %v1995
    %v2009 = vpop.f32.mrf.mxu0
    %v2010 = vadd.f32 0.0, %v2009
    %v2011 = vpop.f32.mrf.mxu0
    %2012 = vdwg.mxu0
    %v2013 = vsel %vm757, %v2010, -inf
    %2014 = vmax.xlane.f32.xlu0 %v2013
    %v2015 = vpop.xlane.xlu0 %2014
    %v2016 = vsub.f32 %v2010, %v2015
    %v2017 = vmul.f32 %v2016, 1.442695
    %v2018 = vpow.pop %v2017
    %v2019 = vsel %vm757, %v2018, 0.0
    %2020 = vadd.xlane.f32.xlu0 %v2019
    %v2021 = vpop.xlane.xlu0 %2020
    %v2022 = vrcp.pop %v2021
    %v2023 = vmul.f32 %v2018, %v2022
    %v2024 = vpack.c.bf16 %v2023, %v2023
    %v2026 = vunpack.c.l.b16 %v1933
    %v2027 = vpack.c.b16 %v2026, %v2026
    %2028 = vrot.lane.b32.xlu0 %v2027, 112
    %v2029 = vpop.permute.xlu0 %2028
    %v2031 = vsel %vm770, %v2024, 0
    %v2034 = vand.u32 %v2029, %v777
    %2036 = vmatpush.bf16.msra.mxu0 0
    %2037 = vmatpush.bf16.msra.mxu0 0
    %2038 = vmatpush.bf16.msra.mxu0 0
    %2039 = vmatpush.bf16.msra.mxu0 0
    %2040 = vmatpush.bf16.msra.mxu0 0
    %2041 = vmatpush.bf16.msra.mxu0 0
    %2042 = vmatpush.bf16.msra.mxu0 0
    %2043 = vmatpush.bf16.msra.mxu0 %v2034
    %2044 = vmatmul.bf16.gmra.mxu0 %v2031
    %v2045 = vpop.f32.mrf.mxu0
    %v2046 = vadd.f32 0.0, %v2045
    %v2047 = vpop.f32.mrf.mxu0
    %2048 = vdwg.mxu0
    %2049 = vrot.lane.b32.xlu0 %v1937, 96
    %v2050 = vpop.permute.xlu0 %2049
    %2051 = vrot.lane.b32.xlu0 %v1937, 32
    %v2052 = vpop.permute.xlu0 %2051
    %v2054 = vsel %vm737, %v2050, 0
    %v2057 = vsel %vm737, %v2052, 0
    %2059 = vmatpush.bf16.xpose.msra.mxu0 0
    %2060 = vmatpush.bf16.xpose.msra.mxu0 0
    %2061 = vmatpush.bf16.xpose.msra.mxu0 0
    %2062 = vmatpush.bf16.xpose.msra.mxu0 0
    %2063 = vmatpush.bf16.xpose.msra.mxu0 0
    %2064 = vmatpush.bf16.xpose.msra.mxu0 0
    %2065 = vmatpush.bf16.xpose.msra.mxu0 0
    %2066 = vmatpush.bf16.xpose.msra.mxu0 %v2057
    %2067 = vmatmul.bf16.gmra.mxu0 %v2054
    %v2068 = vpop.f32.mrf.mxu0
    %v2069 = vadd.f32 0.0, %v2068
    %v2070 = vpop.f32.mrf.mxu0
    %2071 = vdwg.mxu0
    %v2072 = vsel %vm757, %v2069, -inf
    %2073 = vmax.xlane.f32.xlu0 %v2072
    %v2074 = vpop.xlane.xlu0 %2073
    %v2075 = vsub.f32 %v2069, %v2074
    %v2076 = vmul.f32 %v2075, 1.442695
    %v2077 = vpow.pop %v2076
    %v2078 = vsel %vm757, %v2077, 0.0
    %2079 = vadd.xlane.f32.xlu0 %v2078
    %v2080 = vpop.xlane.xlu0 %2079
    %v2081 = vrcp.pop %v2080
    %v2082 = vmul.f32 %v2077, %v2081
    %v2083 = vpack.c.bf16 %v2082, %v2082
    %2084 = vrot.lane.b32.xlu0 %v2027, 96
    %v2085 = vpop.permute.xlu0 %2084
    %v2087 = vsel %vm770, %v2083, 0
    %v2090 = vand.u32 %v2085, %v777
    %2092 = vmatpush.bf16.msra.mxu0 0
    %2093 = vmatpush.bf16.msra.mxu0 0
    %2094 = vmatpush.bf16.msra.mxu0 0
    %2095 = vmatpush.bf16.msra.mxu0 0
    %2096 = vmatpush.bf16.msra.mxu0 0
    %2097 = vmatpush.bf16.msra.mxu0 0
    %2098 = vmatpush.bf16.msra.mxu0 0
    %2099 = vmatpush.bf16.msra.mxu0 %v2090
    %2100 = vmatmul.bf16.gmra.mxu0 %v2087
    %v2101 = vpop.f32.mrf.mxu0
    %v2102 = vadd.f32 0.0, %v2101
    %v2103 = vpop.f32.mrf.mxu0
    %2104 = vdwg.mxu0
    %2105 = vrot.lane.b32.xlu0 %v1937, 80
    %v2106 = vpop.permute.xlu0 %2105
    %2107 = vrot.lane.b32.xlu0 %v1937, 16
    %v2108 = vpop.permute.xlu0 %2107
    %v2110 = vsel %vm737, %v2106, 0
    %v2113 = vsel %vm737, %v2108, 0
    %2115 = vmatpush.bf16.xpose.msra.mxu0 0
    %2116 = vmatpush.bf16.xpose.msra.mxu0 0
    %2117 = vmatpush.bf16.xpose.msra.mxu0 0
    %2118 = vmatpush.bf16.xpose.msra.mxu0 0
    %2119 = vmatpush.bf16.xpose.msra.mxu0 0
    %2120 = vmatpush.bf16.xpose.msra.mxu0 0
    %2121 = vmatpush.bf16.xpose.msra.mxu0 0
    %2122 = vmatpush.bf16.xpose.msra.mxu0 %v2113
    %2123 = vmatmul.bf16.gmra.mxu0 %v2110
    %v2124 = vpop.f32.mrf.mxu0
    %v2125 = vadd.f32 0.0, %v2124
    %v2126 = vpop.f32.mrf.mxu0
    %2127 = vdwg.mxu0
    %v2128 = vsel %vm757, %v2125, -inf
    %2129 = vmax.xlane.f32.xlu0 %v2128
    %v2130 = vpop.xlane.xlu0 %2129
    %v2131 = vsub.f32 %v2125, %v2130
    %v2132 = vmul.f32 %v2131, 1.442695
    %v2133 = vpow.pop %v2132
    %v2134 = vsel %vm757, %v2133, 0.0
    %2135 = vadd.xlane.f32.xlu0 %v2134
    %v2136 = vpop.xlane.xlu0 %2135
    %v2137 = vrcp.pop %v2136
    %v2138 = vmul.f32 %v2133, %v2137
    %v2139 = vpack.c.bf16 %v2138, %v2138
    %2140 = vrot.lane.b32.xlu0 %v2027, 80
    %v2141 = vpop.permute.xlu0 %2140
    %v2143 = vsel %vm770, %v2139, 0
    %v2146 = vand.u32 %v2141, %v777
    %2148 = vmatpush.bf16.msra.mxu0 0
    %2149 = vmatpush.bf16.msra.mxu0 0
    %2150 = vmatpush.bf16.msra.mxu0 0
    %2151 = vmatpush.bf16.msra.mxu0 0
    %2152 = vmatpush.bf16.msra.mxu0 0
    %2153 = vmatpush.bf16.msra.mxu0 0
    %2154 = vmatpush.bf16.msra.mxu0 0
    %2155 = vmatpush.bf16.msra.mxu0 %v2146
    %2156 = vmatmul.bf16.gmra.mxu0 %v2143
    %v2157 = vpop.f32.mrf.mxu0
    %v2158 = vadd.f32 0.0, %v2157
    %v2159 = vpop.f32.mrf.mxu0
    %2160 = vdwg.mxu0
    %2162 = vrot.lane.b32.xlu0 %v2046, 16
    %v2163 = vpop.permute.xlu0 %2162
    %2166 = vrot.lane.b32.xlu0 %v2102, 32
    %v2167 = vpop.permute.xlu0 %2166
    %2170 = vrot.lane.b32.xlu0 %v2158, 48
    %v2171 = vpop.permute.xlu0 %2170
    %v2173 = vsel %vm737, %v1987, %v2163
    %v2174 = vsel %vm978, %v2173, %v2167
    %v2175 = vsel %vm980, %v2174, %v2171
    %v2177 = vunpack.c.l.b16 %v1932
    %v2178 = vpack.c.b16 %v2177, %v1936
    %v2180 = vshrl.u32 %v2178, 16
    %v2182 = vrot.slane %v2180, 2
    %v2183 = vshll.u32 %v2178, 16
    %v2185 = vrot.slane %v2183, 3
    %v2186 = vor.u32 %v2182, %v2185
    %2187 = vrot.lane.b32.xlu0 %v2186, 64
    %v2188 = vpop.permute.xlu0 %2187
    %v2190 = vsel %vm737, %v2186, 0
    %v2193 = vsel %vm737, %v2188, 0
    %2195 = vmatpush.bf16.xpose.msra.mxu0 0
    %2196 = vmatpush.bf16.xpose.msra.mxu0 0
    %2197 = vmatpush.bf16.xpose.msra.mxu0 0
    %2198 = vmatpush.bf16.xpose.msra.mxu0 0
    %2199 = vmatpush.bf16.xpose.msra.mxu0 0
    %2200 = vmatpush.bf16.xpose.msra.mxu0 0
    %2201 = vmatpush.bf16.xpose.msra.mxu0 0
    %2202 = vmatpush.bf16.xpose.msra.mxu0 %v2193
    %2203 = vmatmul.bf16.gmra.mxu0 %v2190
    %v2204 = vpop.f32.mrf.mxu0
    %v2205 = vadd.f32 0.0, %v2204
    %v2206 = vpop.f32.mrf.mxu0
    %2207 = vdwg.mxu0
    %v2208 = vsel %vm757, %v2205, -inf
    %2209 = vmax.xlane.f32.xlu0 %v2208
    %v2210 = vpop.xlane.xlu0 %2209
    %v2211 = vsub.f32 %v2205, %v2210
    %v2212 = vmul.f32 %v2211, 1.442695
    %v2213 = vpow.pop %v2212
    %v2214 = vsel %vm757, %v2213, 0.0
    %2215 = vadd.xlane.f32.xlu0 %v2214
    %v2216 = vpop.xlane.xlu0 %2215
    %v2217 = vrcp.pop %v2216
    %v2218 = vmul.f32 %v2213, %v2217
    %v2219 = vpack.c.bf16 %v2218, %v2218
    %v2221 = vunpack.c.l.b16 %v1934
    %v2222 = vpack.c.b16 %v2221, %v2026
    %v2224 = vshrl.u32 %v2222, 16
    %v2226 = vrot.slane %v2224, 2
    %v2227 = vshll.u32 %v2222, 16
    %v2229 = vrot.slane %v2227, 3
    %v2230 = vor.u32 %v2226, %v2229
    %v2232 = vsel %vm770, %v2219, 0
    %v2235 = vand.u32 %v2230, %v777
    %2237 = vmatpush.bf16.msra.mxu0 0
    %2238 = vmatpush.bf16.msra.mxu0 0
    %2239 = vmatpush.bf16.msra.mxu0 0
    %2240 = vmatpush.bf16.msra.mxu0 0
    %2241 = vmatpush.bf16.msra.mxu0 0
    %2242 = vmatpush.bf16.msra.mxu0 0
    %2243 = vmatpush.bf16.msra.mxu0 0
    %2244 = vmatpush.bf16.msra.mxu0 %v2235
    %2245 = vmatmul.bf16.gmra.mxu0 %v2232
    %v2246 = vpop.f32.mrf.mxu0
    %v2247 = vadd.f32 0.0, %v2246
    %v2248 = vpop.f32.mrf.mxu0
    %2249 = vdwg.mxu0
    %2250 = vrot.lane.b32.xlu0 %v2186, 112
    %v2251 = vpop.permute.xlu0 %2250
    %2252 = vrot.lane.b32.xlu0 %v2186, 48
    %v2253 = vpop.permute.xlu0 %2252
    %v2255 = vsel %vm737, %v2251, 0
    %v2258 = vsel %vm737, %v2253, 0
    %2260 = vmatpush.bf16.xpose.msra.mxu0 0
    %2261 = vmatpush.bf16.xpose.msra.mxu0 0
    %2262 = vmatpush.bf16.xpose.msra.mxu0 0
    %2263 = vmatpush.bf16.xpose.msra.mxu0 0
    %2264 = vmatpush.bf16.xpose.msra.mxu0 0
    %2265 = vmatpush.bf16.xpose.msra.mxu0 0
    %2266 = vmatpush.bf16.xpose.msra.mxu0 0
    %2267 = vmatpush.bf16.xpose.msra.mxu0 %v2258
    %2268 = vmatmul.bf16.gmra.mxu0 %v2255
    %v2269 = vpop.f32.mrf.mxu0
    %v2270 = vadd.f32 0.0, %v2269
    %v2271 = vpop.f32.mrf.mxu0
    %2272 = vdwg.mxu0
    %v2273 = vsel %vm757, %v2270, -inf
    %2274 = vmax.xlane.f32.xlu0 %v2273
    %v2275 = vpop.xlane.xlu0 %2274
    %v2276 = vsub.f32 %v2270, %v2275
    %v2277 = vmul.f32 %v2276, 1.442695
    %v2278 = vpow.pop %v2277
    %v2279 = vsel %vm757, %v2278, 0.0
    %2280 = vadd.xlane.f32.xlu0 %v2279
    %v2281 = vpop.xlane.xlu0 %2280
    %v2282 = vrcp.pop %v2281
    %v2283 = vmul.f32 %v2278, %v2282
    %v2284 = vpack.c.bf16 %v2283, %v2283
    %2285 = vrot.lane.b32.xlu0 %v2230, 112
    %v2286 = vpop.permute.xlu0 %2285
    %v2288 = vsel %vm770, %v2284, 0
    %v2291 = vand.u32 %v2286, %v777
    %2293 = vmatpush.bf16.msra.mxu0 0
    %2294 = vmatpush.bf16.msra.mxu0 0
    %2295 = vmatpush.bf16.msra.mxu0 0
    %2296 = vmatpush.bf16.msra.mxu0 0
    %2297 = vmatpush.bf16.msra.mxu0 0
    %2298 = vmatpush.bf16.msra.mxu0 0
    %2299 = vmatpush.bf16.msra.mxu0 0
    %2300 = vmatpush.bf16.msra.mxu0 %v2291
    %2301 = vmatmul.bf16.gmra.mxu0 %v2288
    %v2302 = vpop.f32.mrf.mxu0
    %v2303 = vadd.f32 0.0, %v2302
    %v2304 = vpop.f32.mrf.mxu0
    %2305 = vdwg.mxu0
    %2306 = vrot.lane.b32.xlu0 %v2186, 96
    %v2307 = vpop.permute.xlu0 %2306
    %2308 = vrot.lane.b32.xlu0 %v2186, 32
    %v2309 = vpop.permute.xlu0 %2308
    %v2311 = vsel %vm737, %v2307, 0
    %v2314 = vsel %vm737, %v2309, 0
    %2316 = vmatpush.bf16.xpose.msra.mxu0 0
    %2317 = vmatpush.bf16.xpose.msra.mxu0 0
    %2318 = vmatpush.bf16.xpose.msra.mxu0 0
    %2319 = vmatpush.bf16.xpose.msra.mxu0 0
    %2320 = vmatpush.bf16.xpose.msra.mxu0 0
    %2321 = vmatpush.bf16.xpose.msra.mxu0 0
    %2322 = vmatpush.bf16.xpose.msra.mxu0 0
    %2323 = vmatpush.bf16.xpose.msra.mxu0 %v2314
    %2324 = vmatmul.bf16.gmra.mxu0 %v2311
    %v2325 = vpop.f32.mrf.mxu0
    %v2326 = vadd.f32 0.0, %v2325
    %v2327 = vpop.f32.mrf.mxu0
    %2328 = vdwg.mxu0
    %v2329 = vsel %vm757, %v2326, -inf
    %2330 = vmax.xlane.f32.xlu0 %v2329
    %v2331 = vpop.xlane.xlu0 %2330
    %v2332 = vsub.f32 %v2326, %v2331
    %v2333 = vmul.f32 %v2332, 1.442695
    %v2334 = vpow.pop %v2333
    %v2335 = vsel %vm757, %v2334, 0.0
    %2336 = vadd.xlane.f32.xlu0 %v2335
    %v2337 = vpop.xlane.xlu0 %2336
    %v2338 = vrcp.pop %v2337
    %v2339 = vmul.f32 %v2334, %v2338
    %v2340 = vpack.c.bf16 %v2339, %v2339
    %2341 = vrot.lane.b32.xlu0 %v2230, 96
    %v2342 = vpop.permute.xlu0 %2341
    %v2344 = vsel %vm770, %v2340, 0
    %v2347 = vand.u32 %v2342, %v777
    %2349 = vmatpush.bf16.msra.mxu0 0
    %2350 = vmatpush.bf16.msra.mxu0 0
    %2351 = vmatpush.bf16.msra.mxu0 0
    %2352 = vmatpush.bf16.msra.mxu0 0
    %2353 = vmatpush.bf16.msra.mxu0 0
    %2354 = vmatpush.bf16.msra.mxu0 0
    %2355 = vmatpush.bf16.msra.mxu0 0
    %2356 = vmatpush.bf16.msra.mxu0 %v2347
    %2357 = vmatmul.bf16.gmra.mxu0 %v2344
    %v2358 = vpop.f32.mrf.mxu0
    %v2359 = vadd.f32 0.0, %v2358
    %v2360 = vpop.f32.mrf.mxu0
    %2361 = vdwg.mxu0
    %2362 = vrot.lane.b32.xlu0 %v2186, 80
    %v2363 = vpop.permute.xlu0 %2362
    %2364 = vrot.lane.b32.xlu0 %v2186, 16
    %v2365 = vpop.permute.xlu0 %2364
    %v2367 = vsel %vm737, %v2363, 0
    %v2370 = vsel %vm737, %v2365, 0
    %2372 = vmatpush.bf16.xpose.msra.mxu0 0
    %2373 = vmatpush.bf16.xpose.msra.mxu0 0
    %2374 = vmatpush.bf16.xpose.msra.mxu0 0
    %2375 = vmatpush.bf16.xpose.msra.mxu0 0
    %2376 = vmatpush.bf16.xpose.msra.mxu0 0
    %2377 = vmatpush.bf16.xpose.msra.mxu0 0
    %2378 = vmatpush.bf16.xpose.msra.mxu0 0
    %2379 = vmatpush.bf16.xpose.msra.mxu0 %v2370
    %2380 = vmatmul.bf16.gmra.mxu0 %v2367
    %v2381 = vpop.f32.mrf.mxu0
    %v2382 = vadd.f32 0.0, %v2381
    %v2383 = vpop.f32.mrf.mxu0
    %2384 = vdwg.mxu0
    %v2385 = vsel %vm757, %v2382, -inf
    %2386 = vmax.xlane.f32.xlu0 %v2385
    %v2387 = vpop.xlane.xlu0 %2386
    %v2388 = vsub.f32 %v2382, %v2387
    %v2389 = vmul.f32 %v2388, 1.442695
    %v2390 = vpow.pop %v2389
    %v2391 = vsel %vm757, %v2390, 0.0
    %2392 = vadd.xlane.f32.xlu0 %v2391
    %v2393 = vpop.xlane.xlu0 %2392
    %v2394 = vrcp.pop %v2393
    %v2395 = vmul.f32 %v2390, %v2394
    %v2396 = vpack.c.bf16 %v2395, %v2395
    %2397 = vrot.lane.b32.xlu0 %v2230, 80
    %v2398 = vpop.permute.xlu0 %2397
    %v2400 = vsel %vm770, %v2396, 0
    %v2403 = vand.u32 %v2398, %v777
    %2405 = vmatpush.bf16.msra.mxu0 0
    %2406 = vmatpush.bf16.msra.mxu0 0
    %2407 = vmatpush.bf16.msra.mxu0 0
    %2408 = vmatpush.bf16.msra.mxu0 0
    %2409 = vmatpush.bf16.msra.mxu0 0
    %2410 = vmatpush.bf16.msra.mxu0 0
    %2411 = vmatpush.bf16.msra.mxu0 0
    %2412 = vmatpush.bf16.msra.mxu0 %v2403
    %2413 = vmatmul.bf16.gmra.mxu0 %v2400
    %v2414 = vpop.f32.mrf.mxu0
    %v2415 = vadd.f32 0.0, %v2414
    %v2416 = vpop.f32.mrf.mxu0
    %2417 = vdwg.mxu0
    %2419 = vrot.lane.b32.xlu0 %v2303, 16
    %v2420 = vpop.permute.xlu0 %2419
    %2423 = vrot.lane.b32.xlu0 %v2359, 32
    %v2424 = vpop.permute.xlu0 %2423
    %2427 = vrot.lane.b32.xlu0 %v2415, 48
    %v2428 = vpop.permute.xlu0 %2427
    %v2430 = vsel %vm737, %v2247, %v2420
    %v2431 = vsel %vm978, %v2430, %v2424
    %v2432 = vsel %vm980, %v2431, %v2428
    %v2434 = vrot.slane %v2432, 3
    %v2436 = vsel %vm575, %v2175, %v2434
    %s2437 = scalar_lea.vmem %s9, 32
    %v2438 = vld [vmem:[%s2437] sm:$0xf]
    %v2439 = vld [vmem:[%s2437 + $0x4] sm:$0xf]
    %v2440 = vld [vmem:[%s2437 + $0x8] sm:$0xf]
    %v2441 = vld [vmem:[%s2437 + $0xc] sm:$0xf]
    %v2442 = vld [vmem:[%s2437 + $0x10] sm:$0xf]
    %v2443 = vld [vmem:[%s2437 + $0x14] sm:$0xf]
    %v2444 = vld [vmem:[%s2437 + $0x18] sm:$0xf]
    %v2445 = vld [vmem:[%s2437 + $0x1c] sm:$0xf]
    %v2446 = vpack.c.bf16 %v2434, %v2436
    %v2455 = vunpack.c.l.b16 %v2438
    %v2456 = vunpack.c.l.b16 %v2439
    %v2457 = vunpack.c.l.b16 %v2440
    %v2458 = vunpack.c.l.b16 %v2441
    %v2459 = vunpack.c.l.b16 %v2442
    %v2460 = vunpack.c.l.b16 %v2443
    %v2461 = vunpack.c.l.b16 %v2444
    %v2462 = vunpack.c.l.b16 %v2445
    %v2463 = vpack.c.b16 %v2456, %v2455
    %v2464 = vpack.c.b16 %v2458, %v2457
    %v2465 = vpack.c.b16 %v2460, %v2459
    %v2466 = vpack.c.b16 %v2462, %v2461
    %v2472 = vsel %vm579, %v2446, 0
    %2474 = vmatpush.bf16.msra.mxu0 0
    %2475 = vmatpush.bf16.msra.mxu0 0
    %2476 = vmatpush.bf16.msra.mxu0 0
    %2477 = vmatpush.bf16.msra.mxu0 0
    %2478 = vmatpush.bf16.msra.mxu0 %v2466
    %2479 = vmatpush.bf16.msra.mxu0 %v2465
    %2480 = vmatpush.bf16.msra.mxu0 %v2464
    %2481 = vmatpush.bf16.msra.mxu0 %v2463
    %2482 = vmatmul.bf16.gmra.mxu0 %v2472
    %v2483 = vpop.f32.mrf.mxu0
    %v2484 = vadd.f32 0.0, %v2483
    %v2485 = vpop.f32.mrf.mxu0
    %v2486 = vadd.f32 0.0, %v2485
    %2487 = vdwg.mxu0
    %v2488 = vadd.f32 %v1783, %v2484
    %v2489 = vadd.f32 %v1784, %v2486
    %s2490 = scalar_lea.vmem %s10, 1
    %v2491 = vld [vmem:[%s2490] sm:$0x1]
    %v2493 = vperm.slane %v2491, 0
    %v2495 = vadd.f32 %v2488, %v2493
    %v2496 = vadd.f32 %v2489, %v2493
    %s2497 = scalar_lea.vmem %s11, 1
    %v2498 = vld [vmem:[%s2497] sm:$0x1]
    %s2499 = scalar_lea.vmem %s12, 1
    %v2500 = vld [vmem:[%s2499] sm:$0x1]
    %v2501 = vsel %vm579, %v2495, 0.0
    %2502 = vadd.xlane.f32.xlu0 %v2501
    %v2503 = vpop.xlane.xlu0 %2502
    %v2504 = vsel %vm583, %v2496, 0.0
    %2505 = vadd.xlane.f32.xlu0 %v2504
    %v2506 = vpop.xlane.xlu0 %2505
    %v2507 = vmul.f32 %v2503, %v593
    %v2508 = vmul.f32 %v2506, %v593
    %v2509 = vsub.f32 %v2495, %v2507
    %v2510 = vsub.f32 %v2496, %v2508
    %v2511 = vmul.f32 %v2509, %v2509
    %v2512 = vmul.f32 %v2510, %v2510
    %v2513 = vsel %vm579, %v2511, 0.0
    %2514 = vadd.xlane.f32.xlu0 %v2513
    %v2515 = vpop.xlane.xlu0 %2514
    %v2516 = vsel %vm583, %v2512, 0.0
    %2517 = vadd.xlane.f32.xlu0 %v2516
    %v2518 = vpop.xlane.xlu0 %2517
    %v2519 = vmul.f32 %v2515, %v593
    %v2520 = vmul.f32 %v2518, %v593
    %v2521 = vadd.f32 %v2519, 1e-06
    %v2522 = vadd.f32 %v2520, 1e-06
    %v2523 = vrsqrt.pop %v2521
    %v2524 = vmul.f32 %v2523, %v2521
    %v2525 = vmul.f32 %v2524, %v2523
    %v2526 = vmul.f32 0.5, %v2525
    %v2527 = vsub.f32 1.5, %v2526
    %v2528 = vmul.f32 %v2523, %v2527
    %vm2529 = vweird.f32 %v2521
    %vm2530 = vweird.f32 %v2523
    %vm2531 = vmor %vm2529, %vm2530
    %v2532 = vsel %vm2531, %v2523, %v2528
    %v2533 = vrsqrt.pop %v2522
    %v2534 = vmul.f32 %v2533, %v2522
    %v2535 = vmul.f32 %v2534, %v2533
    %v2536 = vmul.f32 0.5, %v2535
    %v2537 = vsub.f32 1.5, %v2536
    %v2538 = vmul.f32 %v2533, %v2537
    %vm2539 = vweird.f32 %v2522
    %vm2540 = vweird.f32 %v2533
    %vm2541 = vmor %vm2539, %vm2540
    %v2542 = vsel %vm2541, %v2533, %v2538
    %v2543 = vmul.f32 %v2509, %v2532
    %v2544 = vmul.f32 %v2510, %v2542
    %v2546 = vperm.slane %v2498, 0
    %v2548 = vmul.f32 %v2543, %v2546
    %v2549 = vmul.f32 %v2544, %v2546
    %v2551 = vperm.slane %v2500, 0
    %v2553 = vadd.f32 %v2548, %v2551
    %v2554 = vadd.f32 %v2549, %v2551
    %s2555 = scalar_lea.vmem %s13, 64
    %v2556 = vld [vmem:[%s2555] sm:$0xff]
    %v2557 = vld [vmem:[%s2555 + $0x8] sm:$0xff]
    %v2558 = vld [vmem:[%s2555 + $0x10] sm:$0xff]
    %v2559 = vld [vmem:[%s2555 + $0x18] sm:$0xff]
    %v2560 = vld [vmem:[%s2555 + $0x20] sm:$0xff]
    %v2561 = vld [vmem:[%s2555 + $0x28] sm:$0xff]
    %v2562 = vld [vmem:[%s2555 + $0x30] sm:$0xff]
    %v2563 = vld [vmem:[%s2555 + $0x38] sm:$0xff]
    %v2564 = vpack.c.bf16 %v2554, %v2553
    %s2565 = scalar_lea.vmem %s14, 2
    %v2566 = vld [vmem:[%s2565] sm:$0x3]
    %v2568 = vperm.slane %v2566, 0
    %v2569 = vperm.slane %v2566, 1
    %v2580 = vunpack.c.l.b16 %v2556
    %v2581 = vunpack.c.h.b16 %v2556
    %v2582 = vunpack.c.l.b16 %v2557
    %v2583 = vunpack.c.h.b16 %v2557
    %v2584 = vunpack.c.l.b16 %v2558
    %v2585 = vunpack.c.h.b16 %v2558
    %v2586 = vunpack.c.l.b16 %v2559
    %v2587 = vunpack.c.h.b16 %v2559
    %v2588 = vunpack.c.l.b16 %v2560
    %v2589 = vunpack.c.h.b16 %v2560
    %v2590 = vunpack.c.l.b16 %v2561
    %v2591 = vunpack.c.h.b16 %v2561
    %v2592 = vunpack.c.l.b16 %v2562
    %v2593 = vunpack.c.h.b16 %v2562
    %v2594 = vunpack.c.l.b16 %v2563
    %v2595 = vunpack.c.h.b16 %v2563
    %v2596 = vpack.c.b16 %v2582, %v2580
    %v2597 = vpack.c.b16 %v2583, %v2581
    %v2598 = vpack.c.b16 %v2586, %v2584
    %v2599 = vpack.c.b16 %v2587, %v2585
    %v2600 = vpack.c.b16 %v2590, %v2588
    %v2601 = vpack.c.b16 %v2591, %v2589
    %v2602 = vpack.c.b16 %v2594, %v2592
    %v2603 = vpack.c.b16 %v2595, %v2593
    %v2613 = vsel %vm579, %v2564, 0
    %2615 = vmatpush.bf16.msra.mxu0 0
    %2616 = vmatpush.bf16.msra.mxu0 0
    %2617 = vmatpush.bf16.msra.mxu0 0
    %2618 = vmatpush.bf16.msra.mxu0 0
    %2619 = vmatpush.bf16.msra.mxu0 %v2602
    %2620 = vmatpush.bf16.msra.mxu0 %v2600
    %2621 = vmatpush.bf16.msra.mxu0 %v2598
    %2622 = vmatpush.bf16.msra.mxu0 %v2596
    %2623 = vmatmul.bf16.gmra.mxu0 %v2613
    %v2624 = vpop.f32.mrf.mxu0
    %v2625 = vadd.f32 %v2568, %v2624
    %v2626 = vpop.f32.mrf.mxu0
    %v2627 = vadd.f32 %v2568, %v2626
    %2628 = vdwg.mxu0
    %2629 = vmatpush.bf16.msra.mxu0 0
    %2630 = vmatpush.bf16.msra.mxu0 0
    %2631 = vmatpush.bf16.msra.mxu0 0
    %2632 = vmatpush.bf16.msra.mxu0 0
    %2633 = vmatpush.bf16.msra.mxu0 %v2603
    %2634 = vmatpush.bf16.msra.mxu0 %v2601
    %2635 = vmatpush.bf16.msra.mxu0 %v2599
    %2636 = vmatpush.bf16.msra.mxu0 %v2597
    %2637 = vmatmul.bf16.gmra.mxu0 %v2613
    %v2638 = vpop.f32.mrf.mxu0
    %v2639 = vadd.f32 %v2569, %v2638
    %v2640 = vpop.f32.mrf.mxu0
    %v2641 = vadd.f32 %v2569, %v2640
    %2642 = vdwg.mxu0
    %v2643 = vmul.f32 %v2625, 0.5
    %v2644 = vmul.f32 %v2639, 0.5
    %v2645 = vmul.f32 %v2627, 0.5
    %v2646 = vmul.f32 %v2641, 0.5
    %v2647 = vmul.f32 %v2625, 0.70710677
    %v2648 = vmul.f32 %v2639, 0.70710677
    %v2649 = vmul.f32 %v2627, 0.70710677
    %v2650 = vmul.f32 %v2641, 0.70710677
    %v2651 = vmul.f32 %v2647, %v2647
    %v2652 = vmin.f32 16.0, %v2651
    %v2653 = vmul.f32 %v2652, 2.1237322e-06
    %v2654 = vadd.f32 %v2653, 0.00028619796
    %v2655 = vmul.f32 %v2652, %v2654
    %v2656 = vadd.f32 %v2655, 0.0036580483
    %v2657 = vmul.f32 %v2652, %v2656
    %v2658 = vadd.f32 %v2657, 0.05243302
    %v2659 = vmul.f32 %v2652, %v2658
    %v2660 = vadd.f32 %v2659, 0.18741608
    %v2661 = vmul.f32 %v2652, %v2660
    %v2662 = vadd.f32 %v2661, 1.1283791
    %v2663 = vmul.f32 %v2647, %v2662
    %v2664 = vmul.f32 %v2652, 3.8918573e-05
    %v2665 = vadd.f32 %v2664, 0.001143296
    %v2666 = vmul.f32 %v2652, %v2665
    %v2667 = vadd.f32 %v2666, 0.014752088
    %v2668 = vmul.f32 %v2652, %v2667
    %v2669 = vadd.f32 %v2668, 0.112945676
    %v2670 = vmul.f32 %v2652, %v2669
    %v2671 = vadd.f32 %v2670, 0.4994258
    %v2672 = vmul.f32 %v2652, %v2671
    %v2673 = vadd.f32 %v2672, 1.0
    %v2674 = vrcp.pop %v2673
    %v2675 = vmul.f32 %v2673, %v2674
    %v2676 = vsub.f32 1.0, %v2675
    %v2677 = vmul.f32 %v2674, %v2676
    %v2678 = vadd.f32 %v2674, %v2677
    %vm2679 = vweird.f32 %v2673
    %vm2680 = vweird.f32 %v2674
    %vm2681 = vmor %vm2679, %vm2680
    %v2682 = vsel %vm2681, %v2674, %v2678
    %v2683 = vand.u32 2147483647, %v2673
    %vm2684 = vcmp.eq.f32.partialorder %v2683, 8.507059e+37
    %v2685 = vand.u32 %v2673, 2147483648
    %v2686 = vor.u32 1.1754944e-38, %v2685
    %v2687 = vsel %vm2684, %v2686, %v2682
    %v2688 = vmul.f32 %v2663, %v2687
    %v2689 = vmin.f32 %v2688, 1.0
    %v2690 = vmax.f32 %v2689, -1.0
    %v2691 = vmul.f32 %v2648, %v2648
    %v2692 = vmin.f32 16.0, %v2691
    %v2693 = vmul.f32 %v2692, 2.1237322e-06
    %v2694 = vadd.f32 %v2693, 0.00028619796
    %v2695 = vmul.f32 %v2692, %v2694
    %v2696 = vadd.f32 %v2695, 0.0036580483
    %v2697 = vmul.f32 %v2692, %v2696
    %v2698 = vadd.f32 %v2697, 0.05243302
    %v2699 = vmul.f32 %v2692, %v2698
    %v2700 = vadd.f32 %v2699, 0.18741608
    %v2701 = vmul.f32 %v2692, %v2700
    %v2702 = vadd.f32 %v2701, 1.1283791
    %v2703 = vmul.f32 %v2648, %v2702
    %v2704 = vmul.f32 %v2692, 3.8918573e-05
    %v2705 = vadd.f32 %v2704, 0.001143296
    %v2706 = vmul.f32 %v2692, %v2705
    %v2707 = vadd.f32 %v2706, 0.014752088
    %v2708 = vmul.f32 %v2692, %v2707
    %v2709 = vadd.f32 %v2708, 0.112945676
    %v2710 = vmul.f32 %v2692, %v2709
    %v2711 = vadd.f32 %v2710, 0.4994258
    %v2712 = vmul.f32 %v2692, %v2711
    %v2713 = vadd.f32 %v2712, 1.0
    %v2714 = vrcp.pop %v2713
    %v2715 = vmul.f32 %v2713, %v2714
    %v2716 = vsub.f32 1.0, %v2715
    %v2717 = vmul.f32 %v2714, %v2716
    %v2718 = vadd.f32 %v2714, %v2717
    %vm2719 = vweird.f32 %v2713
    %vm2720 = vweird.f32 %v2714
    %vm2721 = vmor %vm2719, %vm2720
    %v2722 = vsel %vm2721, %v2714, %v2718
    %v2723 = vand.u32 2147483647, %v2713
    %vm2724 = vcmp.eq.f32.partialorder %v2723, 8.507059e+37
    %v2725 = vand.u32 %v2713, 2147483648
    %v2726 = vor.u32 1.1754944e-38, %v2725
    %v2727 = vsel %vm2724, %v2726, %v2722
    %v2728 = vmul.f32 %v2703, %v2727
    %v2729 = vmin.f32 %v2728, 1.0
    %v2730 = vmax.f32 %v2729, -1.0
    %v2731 = vmul.f32 %v2649, %v2649
    %v2732 = vmin.f32 16.0, %v2731
    %v2733 = vmul.f32 %v2732, 2.1237322e-06
    %v2734 = vadd.f32 %v2733, 0.00028619796
    %v2735 = vmul.f32 %v2732, %v2734
    %v2736 = vadd.f32 %v2735, 0.0036580483
    %v2737 = vmul.f32 %v2732, %v2736
    %v2738 = vadd.f32 %v2737, 0.05243302
    %v2739 = vmul.f32 %v2732, %v2738
    %v2740 = vadd.f32 %v2739, 0.18741608
    %v2741 = vmul.f32 %v2732, %v2740
    %v2742 = vadd.f32 %v2741, 1.1283791
    %v2743 = vmul.f32 %v2649, %v2742
    %v2744 = vmul.f32 %v2732, 3.8918573e-05
    %v2745 = vadd.f32 %v2744, 0.001143296
    %v2746 = vmul.f32 %v2732, %v2745
    %v2747 = vadd.f32 %v2746, 0.014752088
    %v2748 = vmul.f32 %v2732, %v2747
    %v2749 = vadd.f32 %v2748, 0.112945676
    %v2750 = vmul.f32 %v2732, %v2749
    %v2751 = vadd.f32 %v2750, 0.4994258
    %v2752 = vmul.f32 %v2732, %v2751
    %v2753 = vadd.f32 %v2752, 1.0
    %v2754 = vrcp.pop %v2753
    %v2755 = vmul.f32 %v2753, %v2754
    %v2756 = vsub.f32 1.0, %v2755
    %v2757 = vmul.f32 %v2754, %v2756
    %v2758 = vadd.f32 %v2754, %v2757
    %vm2759 = vweird.f32 %v2753
    %vm2760 = vweird.f32 %v2754
    %vm2761 = vmor %vm2759, %vm2760
    %v2762 = vsel %vm2761, %v2754, %v2758
    %v2763 = vand.u32 2147483647, %v2753
    %vm2764 = vcmp.eq.f32.partialorder %v2763, 8.507059e+37
    %v2765 = vand.u32 %v2753, 2147483648
    %v2766 = vor.u32 1.1754944e-38, %v2765
    %v2767 = vsel %vm2764, %v2766, %v2762
    %v2768 = vmul.f32 %v2743, %v2767
    %v2769 = vmin.f32 %v2768, 1.0
    %v2770 = vmax.f32 %v2769, -1.0
    %v2771 = vmul.f32 %v2650, %v2650
    %v2772 = vmin.f32 16.0, %v2771
    %v2773 = vmul.f32 %v2772, 2.1237322e-06
    %v2774 = vadd.f32 %v2773, 0.00028619796
    %v2775 = vmul.f32 %v2772, %v2774
    %v2776 = vadd.f32 %v2775, 0.0036580483
    %v2777 = vmul.f32 %v2772, %v2776
    %v2778 = vadd.f32 %v2777, 0.05243302
    %v2779 = vmul.f32 %v2772, %v2778
    %v2780 = vadd.f32 %v2779, 0.18741608
    %v2781 = vmul.f32 %v2772, %v2780
    %v2782 = vadd.f32 %v2781, 1.1283791
    %v2783 = vmul.f32 %v2650, %v2782
    %v2784 = vmul.f32 %v2772, 3.8918573e-05
    %v2785 = vadd.f32 %v2784, 0.001143296
    %v2786 = vmul.f32 %v2772, %v2785
    %v2787 = vadd.f32 %v2786, 0.014752088
    %v2788 = vmul.f32 %v2772, %v2787
    %v2789 = vadd.f32 %v2788, 0.112945676
    %v2790 = vmul.f32 %v2772, %v2789
    %v2791 = vadd.f32 %v2790, 0.4994258
    %v2792 = vmul.f32 %v2772, %v2791
    %v2793 = vadd.f32 %v2792, 1.0
    %v2794 = vrcp.pop %v2793
    %v2795 = vmul.f32 %v2793, %v2794
    %v2796 = vsub.f32 1.0, %v2795
    %v2797 = vmul.f32 %v2794, %v2796
    %v2798 = vadd.f32 %v2794, %v2797
    %vm2799 = vweird.f32 %v2793
    %vm2800 = vweird.f32 %v2794
    %vm2801 = vmor %vm2799, %vm2800
    %v2802 = vsel %vm2801, %v2794, %v2798
    %v2803 = vand.u32 2147483647, %v2793
    %vm2804 = vcmp.eq.f32.partialorder %v2803, 8.507059e+37
    %v2805 = vand.u32 %v2793, 2147483648
    %v2806 = vor.u32 1.1754944e-38, %v2805
    %v2807 = vsel %vm2804, %v2806, %v2802
    %v2808 = vmul.f32 %v2783, %v2807
    %v2809 = vmin.f32 %v2808, 1.0
    %v2810 = vmax.f32 %v2809, -1.0
    %v2811 = vadd.f32 %v2690, 1.0
    %v2812 = vadd.f32 %v2730, 1.0
    %v2813 = vadd.f32 %v2770, 1.0
    %v2814 = vadd.f32 %v2810, 1.0
    %v2815 = vmul.f32 %v2643, %v2811
    %v2816 = vmul.f32 %v2644, %v2812
    %v2817 = vmul.f32 %v2645, %v2813
    %v2818 = vmul.f32 %v2646, %v2814
    %s2819 = scalar_lea.vmem %s15, 128
    %v2820 = vld [vmem:[%s2819] sm:$0xf]
    %v2821 = vld [vmem:[%s2819 + $0x4] sm:$0xf]
    %v2822 = vld [vmem:[%s2819 + $0x8] sm:$0xf]
    %v2823 = vld [vmem:[%s2819 + $0xc] sm:$0xf]
    %v2824 = vld [vmem:[%s2819 + $0x10] sm:$0xf]
    %v2825 = vld [vmem:[%s2819 + $0x14] sm:$0xf]
    %v2826 = vld [vmem:[%s2819 + $0x18] sm:$0xf]
    %v2827 = vld [vmem:[%s2819 + $0x1c] sm:$0xf]
    %v2828 = vld [vmem:[%s2819 + $0x20] sm:$0xf]
    %v2829 = vld [vmem:[%s2819 + $0x24] sm:$0xf]
    %v2830 = vld [vmem:[%s2819 + $0x28] sm:$0xf]
    %v2831 = vld [vmem:[%s2819 + $0x2c] sm:$0xf]
    %v2832 = vld [vmem:[%s2819 + $0x30] sm:$0xf]
    %v2833 = vld [vmem:[%s2819 + $0x34] sm:$0xf]
    %v2834 = vld [vmem:[%s2819 + $0x38] sm:$0xf]
    %v2835 = vld [vmem:[%s2819 + $0x3c] sm:$0xf]
    %v2836 = vld [vmem:[%s2819 + $0x40] sm:$0xf]
    %v2837 = vld [vmem:[%s2819 + $0x44] sm:$0xf]
    %v2838 = vld [vmem:[%s2819 + $0x48] sm:$0xf]
    %v2839 = vld [vmem:[%s2819 + $0x4c] sm:$0xf]
    %v2840 = vld [vmem:[%s2819 + $0x50] sm:$0xf]
    %v2841 = vld [vmem:[%s2819 + $0x54] sm:$0xf]
    %v2842 = vld [vmem:[%s2819 + $0x58] sm:$0xf]
    %v2843 = vld [vmem:[%s2819 + $0x5c] sm:$0xf]
    %v2844 = vld [vmem:[%s2819 + $0x60] sm:$0xf]
    %v2845 = vld [vmem:[%s2819 + $0x64] sm:$0xf]
    %v2846 = vld [vmem:[%s2819 + $0x68] sm:$0xf]
    %v2847 = vld [vmem:[%s2819 + $0x6c] sm:$0xf]
    %v2848 = vld [vmem:[%s2819 + $0x70] sm:$0xf]
    %v2849 = vld [vmem:[%s2819 + $0x74] sm:$0xf]
    %v2850 = vld [vmem:[%s2819 + $0x78] sm:$0xf]
    %v2851 = vld [vmem:[%s2819 + $0x7c] sm:$0xf]
    %v2852 = vpack.c.bf16 %v2817, %v2815
    %v2853 = vpack.c.bf16 %v2818, %v2816
    %v2886 = vunpack.c.l.b16 %v2820
    %v2887 = vunpack.c.l.b16 %v2821
    %v2888 = vunpack.c.l.b16 %v2822
    %v2889 = vunpack.c.l.b16 %v2823
    %v2890 = vunpack.c.l.b16 %v2824
    %v2891 = vunpack.c.l.b16 %v2825
    %v2892 = vunpack.c.l.b16 %v2826
    %v2893 = vunpack.c.l.b16 %v2827
    %v2894 = vunpack.c.l.b16 %v2828
    %v2895 = vunpack.c.l.b16 %v2829
    %v2896 = vunpack.c.l.b16 %v2830
    %v2897 = vunpack.c.l.b16 %v2831
    %v2898 = vunpack.c.l.b16 %v2832
    %v2899 = vunpack.c.l.b16 %v2833
    %v2900 = vunpack.c.l.b16 %v2834
    %v2901 = vunpack.c.l.b16 %v2835
    %v2902 = vunpack.c.l.b16 %v2836
    %v2903 = vunpack.c.l.b16 %v2837
    %v2904 = vunpack.c.l.b16 %v2838
    %v2905 = vunpack.c.l.b16 %v2839
    %v2906 = vunpack.c.l.b16 %v2840
    %v2907 = vunpack.c.l.b16 %v2841
    %v2908 = vunpack.c.l.b16 %v2842
    %v2909 = vunpack.c.l.b16 %v2843
    %v2910 = vunpack.c.l.b16 %v2844
    %v2911 = vunpack.c.l.b16 %v2845
    %v2912 = vunpack.c.l.b16 %v2846
    %v2913 = vunpack.c.l.b16 %v2847
    %v2914 = vunpack.c.l.b16 %v2848
    %v2915 = vunpack.c.l.b16 %v2849
    %v2916 = vunpack.c.l.b16 %v2850
    %v2917 = vunpack.c.l.b16 %v2851
    %v2918 = vpack.c.b16 %v2887, %v2886
    %v2919 = vpack.c.b16 %v2889, %v2888
    %v2920 = vpack.c.b16 %v2891, %v2890
    %v2921 = vpack.c.b16 %v2893, %v2892
    %v2922 = vpack.c.b16 %v2895, %v2894
    %v2923 = vpack.c.b16 %v2897, %v2896
    %v2924 = vpack.c.b16 %v2899, %v2898
    %v2925 = vpack.c.b16 %v2901, %v2900
    %v2926 = vpack.c.b16 %v2903, %v2902
    %v2927 = vpack.c.b16 %v2905, %v2904
    %v2928 = vpack.c.b16 %v2907, %v2906
    %v2929 = vpack.c.b16 %v2909, %v2908
    %v2930 = vpack.c.b16 %v2911, %v2910
    %v2931 = vpack.c.b16 %v2913, %v2912
    %v2932 = vpack.c.b16 %v2915, %v2914
    %v2933 = vpack.c.b16 %v2917, %v2916
    %2950 = vmatpush.bf16.msra.mxu0 %v2925
    %2951 = vmatpush.bf16.msra.mxu0 %v2924
    %2952 = vmatpush.bf16.msra.mxu0 %v2923
    %2953 = vmatpush.bf16.msra.mxu0 %v2922
    %2954 = vmatpush.bf16.msra.mxu0 %v2921
    %2955 = vmatpush.bf16.msra.mxu0 %v2920
    %2956 = vmatpush.bf16.msra.mxu0 %v2919
    %2957 = vmatpush.bf16.msra.mxu0 %v2918
    %2958 = vmatmul.bf16.gmra.mxu0 %v2852
    %v2959 = vpop.f32.mrf.mxu0
    %v2960 = vadd.f32 0.0, %v2959
    %v2961 = vpop.f32.mrf.mxu0
    %2962 = vdwg.mxu0
    %2963 = vmatpush.bf16.msra.mxu0 %v2933
    %2964 = vmatpush.bf16.msra.mxu0 %v2932
    %2965 = vmatpush.bf16.msra.mxu0 %v2931
    %2966 = vmatpush.bf16.msra.mxu0 %v2930
    %2967 = vmatpush.bf16.msra.mxu0 %v2929
    %2968 = vmatpush.bf16.msra.mxu0 %v2928
    %2969 = vmatpush.bf16.msra.mxu0 %v2927
    %2970 = vmatpush.bf16.msra.mxu0 %v2926
    %2971 = vmatmul.bf16.gmra.mxu0 %v2853
    %v2972 = vpop.f32.mrf.mxu0
    %v2973 = vadd.f32 %v2960, %v2972
    %v2974 = vpop.f32.mrf.mxu0
    %2975 = vdwg.mxu0
    %v2976 = vadd.f32 %v2495, %v2973
    %s2977 = scalar_lea.vmem %s16, 1
    %v2978 = vld [vmem:[%s2977] sm:$0x1]
    %v2980 = vperm.slane %v2978, 0
    %v2982 = vadd.f32 %v2976, %v2980
    %v2984 = vrot.slane %v2982, 4
    %v2986 = vsel %vm565, %v2982, %v2984
    %v2987 = vld [vmem:[%s17] sm:$0x1]
    %v2988 = vld [vmem:[%s18] sm:$0x1]
    %v2989 = vsel %vm583, %v2986, 0.0
    %2990 = vadd.xlane.f32.xlu0 %v2989
    %v2991 = vpop.xlane.xlu0 %2990
    %v2992 = vmul.f32 %v2991, %v593
    %v2993 = vsub.f32 %v2986, %v2992
    %v2994 = vmul.f32 %v2993, %v2993
    %v2995 = vsel %vm583, %v2994, 0.0
    %2996 = vadd.xlane.f32.xlu0 %v2995
    %v2997 = vpop.xlane.xlu0 %2996
    %v2998 = vmul.f32 %v2997, %v593
    %v2999 = vadd.f32 %v2998, 1e-06
    %v3000 = vrsqrt.pop %v2999
    %v3001 = vmul.f32 %v3000, %v2999
    %v3002 = vmul.f32 %v3001, %v3000
    %v3003 = vmul.f32 0.5, %v3002
    %v3004 = vsub.f32 1.5, %v3003
    %v3005 = vmul.f32 %v3000, %v3004
    %vm3006 = vweird.f32 %v2999
    %vm3007 = vweird.f32 %v3000
    %vm3008 = vmor %vm3006, %vm3007
    %v3009 = vsel %vm3008, %v3000, %v3005
    %v3010 = vmul.f32 %v2993, %v3009
    %v3012 = vperm.slane %v2987, 0
    %v3014 = vmul.f32 %v3010, %v3012
    %v3016 = vperm.slane %v2988, 0
    %v3018 = vadd.f32 %v3014, %v3016
    %v3019 = vld [vmem:[%s19] sm:$0xf]
    %v3020 = vld [vmem:[%s19 + $0x4] sm:$0xf]
    %v3021 = vld [vmem:[%s19 + $0x8] sm:$0xf]
    %v3022 = vld [vmem:[%s19 + $0xc] sm:$0xf]
    %v3023 = vld [vmem:[%s19 + $0x10] sm:$0xf]
    %v3024 = vld [vmem:[%s19 + $0x14] sm:$0xf]
    %v3025 = vld [vmem:[%s19 + $0x18] sm:$0xf]
    %v3026 = vld [vmem:[%s19 + $0x1c] sm:$0xf]
    %v3027 = vpack.c.bf16 %v3018, %v3018
    %v3028 = vld [vmem:[%s20] sm:$0x1]
    %v3030 = vperm.slane %v3028, 0
    %v3040 = vunpack.c.l.b16 %v3019
    %v3041 = vunpack.c.l.b16 %v3020
    %v3042 = vunpack.c.l.b16 %v3021
    %v3043 = vunpack.c.l.b16 %v3022
    %v3044 = vunpack.c.l.b16 %v3023
    %v3045 = vunpack.c.l.b16 %v3024
    %v3046 = vunpack.c.l.b16 %v3025
    %v3047 = vunpack.c.l.b16 %v3026
    %v3048 = vpack.c.b16 %v3041, %v3040
    %v3049 = vpack.c.b16 %v3043, %v3042
    %v3050 = vpack.c.b16 %v3045, %v3044
    %v3051 = vpack.c.b16 %v3047, %v3046
    %v3057 = vsel %vm579, %v3027, 0
    %3059 = vmatpush.bf16.msra.mxu0 0
    %3060 = vmatpush.bf16.msra.mxu0 0
    %3061 = vmatpush.bf16.msra.mxu0 0
    %3062 = vmatpush.bf16.msra.mxu0 0
    %3063 = vmatpush.bf16.msra.mxu0 %v3051
    %3064 = vmatpush.bf16.msra.mxu0 %v3050
    %3065 = vmatpush.bf16.msra.mxu0 %v3049
    %3066 = vmatpush.bf16.msra.mxu0 %v3048
    %3067 = vmatmul.bf16.gmra.mxu0 %v3057
    %v3068 = vpop.f32.mrf.mxu0
    %v3069 = vadd.f32 %v3030, %v3068
    %v3070 = vpop.f32.mrf.mxu0
    %3071 = vdwg.mxu0
    %vm3072 = vcmask 254976
    %3073 = vst.msk [vmem:[#allocation2] sm:$0x3] %vm3072, %v3069
    // Predicated region
    $region86: #{encoder_forward.1} parent=1 // pred_check
      _
    $region87: #{encoder_forward.1} parent=1 // pred_check_branch
      %3075 = sbr.rel (0) target = $region89
    $region88: #{encoder_forward.1} parent=1 // pred_region
      %3077 = vsyncadd [#allocation3], 0
      %s3079 = sshll.u32 [#allocation2], 4
      %s3080 = int_to_ptr.vmem [resolvable:$true] %s3079
      %s3081 = sshll.u32 %s21, 4
      %s3082 = int_to_ptr.hbm [resolvable:$true] %s3081
      %3084 = dma.vmem_to_hbm [thread:$0]  %s3080, 32, %s3082, [#allocation3]
    $region89: #{encoder_forward.1} parent=1 // pred_fallthru
      _
    // Predicated region
    $region90: #{encoder_forward.1} parent=1 // pred_check
      _
    $region91: #{encoder_forward.1} parent=1 // pred_check_branch
      %3086 = sbr.rel (0) target = $region93
    $region92: #{encoder_forward.1} parent=1 // pred_region
      %3088 = dma.done [#allocation3], 32
    $region93: #{encoder_forward.1} parent=1 // pred_fallthru
      _
    %3089 = vsyncpa [#allocation3], 1

</llo_original>
